<compile_context>
chip_gen: v7x
topology: tpu7x:2x2x1
jax: 0.10.0
libtpu: 0.0.40
codegen_flags: <defaults>
</compile_context>

<pallas_src>
import jax
import jax.numpy as jnp
from jax.experimental import pallas as pl
from jax.experimental.pallas import tpu as pltpu

NB_INPUT = 10   # sequence length (nbInput in the PyTorch module)
HID = 100       # self.hidNb
BATCH = 4

LANE = 128
SUBLANE = 8


def _round_up(n, m):
    return (n + m - 1) // m * m


def gru_linear_kernel(x_ref, w_ref, vec_ref, out_ref):
    """x_ref:   (T*Bp, 1)   f32   input, time-major, batch on sublanes
       w_ref:   (Hp, 9*Hp)  bf16  [whh0 | wih1 | whh1], gate blocks [r|z|n] on lanes
       vec_ref: (8, 3*Hp)   f32   packed row vectors (see init_params)
       out_ref: (Bp, 1)     f32
    """
    Bp = out_ref.shape[0]
    Hp = w_ref.shape[0]
    G = 3 * Hp
    T = x_ref.shape[0] // Bp

    # ---- packed small parameters (single DMA) ----
    wih0 = vec_ref[0:1, :]              # (1, G)  layer-0 input weight row (input_size==1)
    gib0 = vec_ref[1:2, :]              # (1, G)  layer-0 b_ih (+ b_hh folded for r,z)
    gib1 = vec_ref[2:3, :]              # (1, G)  layer-1 b_ih (+ b_hh folded for r,z)
    bhh0n = vec_ref[3:4, 0:Hp]          # (1, Hp) layer-0 b_hh of the n gate
    bhh1n = vec_ref[3:4, Hp:2 * Hp]     # (1, Hp) layer-1 b_hh of the n gate
    wlin = vec_ref[3:4, 2 * Hp:G]       # (1, Hp) final Linear weight row
    blin = vec_ref[4:5, 0:1]            # (1, 1)  final Linear bias

    def cell(gi, gh, h, bhh_n):
        # One fused (Bp, 2*Hp) sigmoid over the adjacent r|z lane blocks (EUP).
        rz = jax.nn.sigmoid(gi[:, 0:2 * Hp] + gh[:, 0:2 * Hp])
        r = rz[:, 0:Hp]
        z = rz[:, Hp:2 * Hp]
        n = jnp.tanh(gi[:, 2 * Hp:G] + r * (gh[:, 2 * Hp:G] + bhh_n))
        return (1.0 - z) * n + z * h

    h0 = jnp.zeros((Bp, Hp), jnp.float32)   # f32 state carry
    h1 = jnp.zeros((Bp, Hp), jnp.float32)

    # Wavefront over both stacked layers, fully unrolled (T+1 steps).
    for s in range(T + 1):
        gh0 = None
        gi1 = None
        if s == 0:
            gh0 = jnp.zeros((Bp, G), jnp.float32)                  # h0 == 0, skip matmul
        elif s < T:
            # Fused matmul: [gh0 | gi1_raw] = h0[s-1] @ [whh0 | wih1]
            gg = jnp.dot(h0.astype(jnp.bfloat16), w_ref[:, 0:2 * G],
                         preferred_element_type=jnp.float32)
            gh0 = gg[:, 0:G]
            gi1 = gg[:, G:2 * G] + gib1
        else:
            # Last wavefront step: only layer-1's input projection is needed.
            gi1 = jnp.dot(h0.astype(jnp.bfloat16), w_ref[:, G:2 * G],
                          preferred_element_type=jnp.float32) + gib1

        # ---- layer-1 GRU timestep s-1 (input = h0[s-1], state = h1[s-2]) ----
        if s == 1:
            gh1 = jnp.zeros((Bp, G), jnp.float32)                  # h1 == 0, skip matmul
            h1 = cell(gi1, gh1, h1, bhh1n)
        elif s >= 2:
            gh1 = jnp.dot(h1.astype(jnp.bfloat16), w_ref[:, 2 * G:3 * G],
                          preferred_element_type=jnp.float32)
            h1 = cell(gi1, gh1, h1, bhh1n)

        # ---- layer-0 GRU timestep s ----
        if s < T:
            x_t = x_ref[pl.ds(s * Bp, Bp), :]                      # (Bp, 1)
            gi0 = x_t * wih0 + gib0                                # input_size == 1 broadcast
            h0 = cell(gi0, gh0, h0, bhh0n)

    # ---- final Linear(H, 1) on the last-timestep top-layer output ----
    # VPU mul + lane reduce instead of a 1-column MXU matmul.
    out_ref[...] = jnp.sum(h1 * wlin, axis=1, keepdims=True) + blin


@jax.jit
def my_rnn_forward(x, kernel_params):
    """x: (B, nbInput) float32 — matches PyTorch myRNN.forward input.
    Returns (B, 1) float32 (eval-mode forward)."""
    w_all, vec = kernel_params
    B, T = x.shape
    Bp = _round_up(B, SUBLANE)

    # time-major, batch zero-padded onto sublanes, single lane: (T*Bp, 1)
    x_col = jnp.pad(x.T, ((0, 0), (0, Bp - B))).reshape(T * Bp, 1)

    vmem = pl.BlockSpec(memory_space=pltpu.MemorySpace.VMEM)
    # Whole problem fits in < 0.5 MiB of VMEM: no grid / BlockSpec tiling needed.
    out = pl.pallas_call(
        gru_linear_kernel,
        out_shape=jax.ShapeDtypeStruct((Bp, 1), jnp.float32),
        in_specs=[vmem, vmem, vmem],
        out_specs=vmem,
    )(x_col, w_all, vec)

    return out[:B, :]   # (B, 1), matching self.lin(ret[:, -1, :])


def init_params(key, H):
    """Deterministic parameter init mirroring the PyTorch module's shapes."""
    scale = 1.0 / jnp.sqrt(jnp.float32(H))
    ks = jax.random.split(key, 10)
    u = lambda k, shape: jax.random.uniform(k, shape, jnp.float32, -scale, scale)

    w_ih_l0 = u(ks[0], (3 * H, 1))      # nn.GRU weight_ih_l0
    w_hh_l0 = u(ks[1], (3 * H, H))      # nn.GRU weight_hh_l0
    b_ih_l0 = u(ks[2], (3 * H,))
    b_hh_l0 = u(ks[3], (3 * H,))
    w_ih_l1 = u(ks[4], (3 * H, H))      # nn.GRU weight_ih_l1
    w_hh_l1 = u(ks[5], (3 * H, H))
    b_ih_l1 = u(ks[6], (3 * H,))
    b_hh_l1 = u(ks[7], (3 * H,))
    w_lin = u(ks[8], (1, H))            # nn.Linear(hidNb, 1)
    b_lin = u(ks[9], (1,))

    torch_params = (w_ih_l0, w_hh_l0, b_ih_l0, b_hh_l0,
                    w_ih_l1, w_hh_l1, b_ih_l1, b_hh_l1,
                    w_lin, b_lin)

    Hp = _round_up(H, LANE)
    G = 3 * Hp

    def pad_gates_row(v):
        # (3H,) -> (3*Hp,): each gate block zero-padded H -> Hp on lanes.
        g = jnp.pad(v.reshape(3, H), ((0, 0), (0, Hp - H)))
        return g.reshape(3 * Hp)

    def prep_w(w):
        # (3H, K) torch layout -> (Hp, 3*Hp): transposed, gate blocks on lanes,
        # K and H zero-padded to Hp.
        K = w.shape[1]
        wt = w.T.reshape(K, 3, H)
        wt = jnp.pad(wt, ((0, Hp - K), (0, 0), (0, Hp - H)))
        return wt.reshape(Hp, 3 * Hp)

    def fold_bias(b_ih, b_hh):
        # Fold b_hh into b_ih for the r and z gates (exact); n keeps b_ih only,
        # its b_hh is applied separately inside r * (gh_n + b_hh_n).
        bi = b_ih.reshape(3, H)
        bh = b_hh.reshape(3, H)
        return pad_gates_row(jnp.concatenate([bi[0] + bh[0], bi[1] + bh[1], bi[2]]))

    # ---- one (Hp, 9*Hp) bf16 weight slab: [whh0 | wih1 | whh1] (single DMA) ----
    w_all = jnp.concatenate(
        [prep_w(w_hh_l0), prep_w(w_ih_l1), prep_w(w_hh_l1)], axis=1
    ).astype(jnp.bfloat16)

    # ---- one (8, 3*Hp) f32 slab for all row vectors / scalars (single DMA) ----
    vec = jnp.zeros((SUBLANE, G), jnp.float32)
    vec = vec.at[0, :].set(pad_gates_row(w_ih_l0[:, 0]))                    # wih0 row
    vec = vec.at[1, :].set(fold_bias(b_ih_l0, b_hh_l0))                     # gib0
    vec = vec.at[2, :].set(fold_bias(b_ih_l1, b_hh_l1))                     # gib1
    vec = vec.at[3, 0:Hp].set(jnp.pad(b_hh_l0[2 * H:], (0, Hp - H)))        # bhh0_n
    vec = vec.at[3, Hp:2 * Hp].set(jnp.pad(b_hh_l1[2 * H:], (0, Hp - H)))   # bhh1_n
    vec = vec.at[3, 2 * Hp:G].set(jnp.pad(w_lin[0], (0, Hp - H)))           # wlin row
    vec = vec.at[4, 0].set(b_lin[0])                                        # blin

    return torch_params, (w_all, vec)


def reference_forward(x, torch_params):
    """Pure-JAX f32 re-implementation of myRNN.forward (eval mode) for checking."""
    (w_ih_l0, w_hh_l0, b_ih_l0, b_hh_l0,
     w_ih_l1, w_hh_l1, b_ih_l1, b_hh_l1,
     w_lin, b_lin) = torch_params
    B, T = x.shape
    H = w_hh_l0.shape[-1]

    def cell(x_in, h, w_ih, w_hh, b_ih, b_hh):
        gi = x_in @ w_ih.T + b_ih
        gh = h @ w_hh.T + b_hh
        i_r, i_z, i_n = jnp.split(gi, 3, axis=1)
        h_r, h_z, h_n = jnp.split(gh, 3, axis=1)
        r = jax.nn.sigmoid(i_r + h_r)
        z = jax.nn.sigmoid(i_z + h_z)
        n = jnp.tanh(i_n + r * h_n)
        return (1.0 - z) * n + z * h

    h0 = jnp.zeros((B, H), jnp.float32)
    h1 = jnp.zeros((B, H), jnp.float32)
    for t in range(T):
        xt = x[:, t:t + 1]  # reshape(x, (s0, s1, 1)) then slice timestep t
        h0 = cell(xt, h0, w_ih_l0, w_hh_l0, b_ih_l0, b_hh_l0)
        h1 = cell(h0, h1, w_ih_l1, w_hh_l1, b_ih_l1, b_hh_l1)
    return h1 @ w_lin.T + b_lin  # (B, 1)


if __name__ == "__main__":
    key = jax.random.PRNGKey(0)
    k_x, k_p = jax.random.split(key)

    x = jax.random.normal(k_x, (BATCH, NB_INPUT), jnp.float32)  # (B, nbInput)
    torch_params, kernel_params = init_params(k_p, HID)

    out = my_rnn_forward(x, kernel_params)
    out = jax.block_until_ready(out)

    ref = reference_forward(x, torch_params)
    assert out.shape == (BATCH, 1)
    # bf16 MXU operands => looser tolerance vs the f32 reference.
    assert jnp.allclose(out, ref, atol=5e-2, rtol=5e-2), (out, ref)

    print("KERNEL_OK")
</pallas_src>

<mosaic_0001>
module attributes {stable_mosaic.version = 11 : i64} {
  func.func @gru_linear_kernel(%arg0: memref<80x1xf32, #tpu.memory_space<vmem>>, %arg1: memref<128x1152xbf16, #tpu.memory_space<vmem>>, %arg2: memref<8x384xf32, #tpu.memory_space<vmem>>, %arg3: memref<8x1xf32, #tpu.memory_space<vmem>>) attributes {dimension_semantics = [], scalar_prefetch = 0 : i64, scratch_operands = 0 : i64, tpu.core_type = #tpu.core_type<tc>} {
    %c0 = arith.constant 0 : index
    %c0_0 = arith.constant 0 : index
    %0 = vector.load %arg2[%c0, %c0_0] : memref<8x384xf32, #tpu.memory_space<vmem>>, vector<1x384xf32>
    %c1 = arith.constant 1 : index
    %c0_1 = arith.constant 0 : index
    %1 = vector.load %arg2[%c1, %c0_1] : memref<8x384xf32, #tpu.memory_space<vmem>>, vector<1x384xf32>
    %c2 = arith.constant 2 : index
    %c0_2 = arith.constant 0 : index
    %2 = vector.load %arg2[%c2, %c0_2] : memref<8x384xf32, #tpu.memory_space<vmem>>, vector<1x384xf32>
    %c3 = arith.constant 3 : index
    %c0_3 = arith.constant 0 : index
    %3 = vector.load %arg2[%c3, %c0_3] : memref<8x384xf32, #tpu.memory_space<vmem>>, vector<1x128xf32>
    %c3_4 = arith.constant 3 : index
    %c128 = arith.constant 128 : index
    %4 = vector.load %arg2[%c3_4, %c128] : memref<8x384xf32, #tpu.memory_space<vmem>>, vector<1x128xf32>
    %c3_5 = arith.constant 3 : index
    %c256 = arith.constant 256 : index
    %5 = vector.load %arg2[%c3_5, %c256] : memref<8x384xf32, #tpu.memory_space<vmem>>, vector<1x128xf32>
    %c4 = arith.constant 4 : index
    %c0_6 = arith.constant 0 : index
    %6 = vector.load %arg2[%c4, %c0_6] : memref<8x384xf32, #tpu.memory_space<vmem>>, vector<1x1xf32>
    %cst = arith.constant 0.000000e+00 : f32
    %7 = vector.broadcast %cst : f32 to vector<8x128xf32>
    %cst_7 = arith.constant 0.000000e+00 : f32
    %8 = vector.broadcast %cst_7 : f32 to vector<8x128xf32>
    %cst_8 = arith.constant 0.000000e+00 : f32
    %9 = vector.broadcast %cst_8 : f32 to vector<8x384xf32>
    %c0_9 = arith.constant 0 : index
    %c0_10 = arith.constant 0 : index
    %10 = vector.load %arg0[%c0_9, %c0_10] : memref<80x1xf32, #tpu.memory_space<vmem>>, vector<8x1xf32>
    %11 = vector.broadcast %10 : vector<8x1xf32> to vector<8x384xf32>
    %12 = vector.broadcast %0 : vector<1x384xf32> to vector<8x384xf32>
    %13 = arith.mulf %11, %12 : vector<8x384xf32>
    %14 = vector.broadcast %1 : vector<1x384xf32> to vector<8x384xf32>
    %15 = arith.addf %13, %14 : vector<8x384xf32>
    %16 = vector.extract_strided_slice %15 {offsets = [0, 0], sizes = [8, 256], strides = [1, 1]} : vector<8x384xf32> to vector<8x256xf32>
    %17 = vector.extract_strided_slice %9 {offsets = [0, 0], sizes = [8, 256], strides = [1, 1]} : vector<8x384xf32> to vector<8x256xf32>
    %18 = arith.addf %16, %17 : vector<8x256xf32>
    %19 = arith.negf %18 : vector<8x256xf32>
    %20 = math.exp %19 : vector<8x256xf32>
    %cst_11 = arith.constant 1.000000e+00 : f32
    %21 = vector.broadcast %cst_11 : f32 to vector<8x256xf32>
    %22 = arith.addf %21, %20 : vector<8x256xf32>
    %23 = arith.divf %21, %22 : vector<8x256xf32>
    %24 = vector.extract_strided_slice %23 {offsets = [0, 0], sizes = [8, 128], strides = [1, 1]} : vector<8x256xf32> to vector<8x128xf32>
    %25 = vector.extract_strided_slice %23 {offsets = [0, 128], sizes = [8, 128], strides = [1, 1]} : vector<8x256xf32> to vector<8x128xf32>
    %26 = vector.extract_strided_slice %15 {offsets = [0, 256], sizes = [8, 128], strides = [1, 1]} : vector<8x384xf32> to vector<8x128xf32>
    %27 = vector.extract_strided_slice %9 {offsets = [0, 256], sizes = [8, 128], strides = [1, 1]} : vector<8x384xf32> to vector<8x128xf32>
    %28 = vector.broadcast %3 : vector<1x128xf32> to vector<8x128xf32>
    %29 = arith.addf %27, %28 : vector<8x128xf32>
    %30 = arith.mulf %24, %29 : vector<8x128xf32>
    %31 = arith.addf %26, %30 : vector<8x128xf32>
    %32 = math.tanh %31 : vector<8x128xf32>
    %cst_12 = arith.constant 1.000000e+00 : f32
    %33 = vector.broadcast %cst_12 : f32 to vector<8x128xf32>
    %34 = arith.subf %33, %25 : vector<8x128xf32>
    %35 = arith.mulf %34, %32 : vector<8x128xf32>
    %36 = arith.mulf %25, %7 : vector<8x128xf32>
    %37 = arith.addf %35, %36 : vector<8x128xf32>
    %38 = arith.truncf %37 : vector<8x128xf32> to vector<8x128xbf16>
    %c0_13 = arith.constant 0 : index
    %c0_14 = arith.constant 0 : index
    %39 = vector.load %arg1[%c0_13, %c0_14] : memref<128x1152xbf16, #tpu.memory_space<vmem>>, vector<128x768xbf16>
    %cst_15 = arith.constant dense<0.000000e+00> : vector<8x768xf32>
    %40 = tpu.matmul %38, %39, %cst_15 {dimension_numbers = #tpu.dot_dimension_numbers<[1], [0], [0], [1], [0, 0, 1, 1], [], []>} : vector<8x128xbf16>, vector<128x768xbf16>, vector<8x768xf32> -> vector<8x768xf32>
    %41 = vector.extract_strided_slice %40 {offsets = [0, 0], sizes = [8, 384], strides = [1, 1]} : vector<8x768xf32> to vector<8x384xf32>
    %42 = vector.extract_strided_slice %40 {offsets = [0, 384], sizes = [8, 384], strides = [1, 1]} : vector<8x768xf32> to vector<8x384xf32>
    %43 = vector.broadcast %2 : vector<1x384xf32> to vector<8x384xf32>
    %44 = arith.addf %42, %43 : vector<8x384xf32>
    %cst_16 = arith.constant 0.000000e+00 : f32
    %45 = vector.broadcast %cst_16 : f32 to vector<8x384xf32>
    %46 = vector.extract_strided_slice %44 {offsets = [0, 0], sizes = [8, 256], strides = [1, 1]} : vector<8x384xf32> to vector<8x256xf32>
    %47 = vector.extract_strided_slice %45 {offsets = [0, 0], sizes = [8, 256], strides = [1, 1]} : vector<8x384xf32> to vector<8x256xf32>
    %48 = arith.addf %46, %47 : vector<8x256xf32>
    %49 = arith.negf %48 : vector<8x256xf32>
    %50 = math.exp %49 : vector<8x256xf32>
    %cst_17 = arith.constant 1.000000e+00 : f32
    %51 = vector.broadcast %cst_17 : f32 to vector<8x256xf32>
    %52 = arith.addf %51, %50 : vector<8x256xf32>
    %53 = arith.divf %51, %52 : vector<8x256xf32>
    %54 = vector.extract_strided_slice %53 {offsets = [0, 0], sizes = [8, 128], strides = [1, 1]} : vector<8x256xf32> to vector<8x128xf32>
    %55 = vector.extract_strided_slice %53 {offsets = [0, 128], sizes = [8, 128], strides = [1, 1]} : vector<8x256xf32> to vector<8x128xf32>
    %56 = vector.extract_strided_slice %44 {offsets = [0, 256], sizes = [8, 128], strides = [1, 1]} : vector<8x384xf32> to vector<8x128xf32>
    %57 = vector.extract_strided_slice %45 {offsets = [0, 256], sizes = [8, 128], strides = [1, 1]} : vector<8x384xf32> to vector<8x128xf32>
    %58 = vector.broadcast %4 : vector<1x128xf32> to vector<8x128xf32>
    %59 = arith.addf %57, %58 : vector<8x128xf32>
    %60 = arith.mulf %54, %59 : vector<8x128xf32>
    %61 = arith.addf %56, %60 : vector<8x128xf32>
    %62 = math.tanh %61 : vector<8x128xf32>
    %cst_18 = arith.constant 1.000000e+00 : f32
    %63 = vector.broadcast %cst_18 : f32 to vector<8x128xf32>
    %64 = arith.subf %63, %55 : vector<8x128xf32>
    %65 = arith.mulf %64, %62 : vector<8x128xf32>
    %66 = arith.mulf %55, %8 : vector<8x128xf32>
    %67 = arith.addf %65, %66 : vector<8x128xf32>
    %c8 = arith.constant 8 : index
    %c0_19 = arith.constant 0 : index
    %68 = vector.load %arg0[%c8, %c0_19] : memref<80x1xf32, #tpu.memory_space<vmem>>, vector<8x1xf32>
    %69 = vector.broadcast %68 : vector<8x1xf32> to vector<8x384xf32>
    %70 = vector.broadcast %0 : vector<1x384xf32> to vector<8x384xf32>
    %71 = arith.mulf %69, %70 : vector<8x384xf32>
    %72 = vector.broadcast %1 : vector<1x384xf32> to vector<8x384xf32>
    %73 = arith.addf %71, %72 : vector<8x384xf32>
    %74 = vector.extract_strided_slice %73 {offsets = [0, 0], sizes = [8, 256], strides = [1, 1]} : vector<8x384xf32> to vector<8x256xf32>
    %75 = vector.extract_strided_slice %41 {offsets = [0, 0], sizes = [8, 256], strides = [1, 1]} : vector<8x384xf32> to vector<8x256xf32>
    %76 = arith.addf %74, %75 : vector<8x256xf32>
    %77 = arith.negf %76 : vector<8x256xf32>
    %78 = math.exp %77 : vector<8x256xf32>
    %cst_20 = arith.constant 1.000000e+00 : f32
    %79 = vector.broadcast %cst_20 : f32 to vector<8x256xf32>
    %80 = arith.addf %79, %78 : vector<8x256xf32>
    %81 = arith.divf %79, %80 : vector<8x256xf32>
    %82 = vector.extract_strided_slice %81 {offsets = [0, 0], sizes = [8, 128], strides = [1, 1]} : vector<8x256xf32> to vector<8x128xf32>
    %83 = vector.extract_strided_slice %81 {offsets = [0, 128], sizes = [8, 128], strides = [1, 1]} : vector<8x256xf32> to vector<8x128xf32>
    %84 = vector.extract_strided_slice %73 {offsets = [0, 256], sizes = [8, 128], strides = [1, 1]} : vector<8x384xf32> to vector<8x128xf32>
    %85 = vector.extract_strided_slice %41 {offsets = [0, 256], sizes = [8, 128], strides = [1, 1]} : vector<8x384xf32> to vector<8x128xf32>
    %86 = vector.broadcast %3 : vector<1x128xf32> to vector<8x128xf32>
    %87 = arith.addf %85, %86 : vector<8x128xf32>
    %88 = arith.mulf %82, %87 : vector<8x128xf32>
    %89 = arith.addf %84, %88 : vector<8x128xf32>
    %90 = math.tanh %89 : vector<8x128xf32>
    %cst_21 = arith.constant 1.000000e+00 : f32
    %91 = vector.broadcast %cst_21 : f32 to vector<8x128xf32>
    %92 = arith.subf %91, %83 : vector<8x128xf32>
    %93 = arith.mulf %92, %90 : vector<8x128xf32>
    %94 = arith.mulf %83, %37 : vector<8x128xf32>
    %95 = arith.addf %93, %94 : vector<8x128xf32>
    %96 = arith.truncf %95 : vector<8x128xf32> to vector<8x128xbf16>
    %c0_22 = arith.constant 0 : index
    %c0_23 = arith.constant 0 : index
    %97 = vector.load %arg1[%c0_22, %c0_23] : memref<128x1152xbf16, #tpu.memory_space<vmem>>, vector<128x768xbf16>
    %cst_24 = arith.constant dense<0.000000e+00> : vector<8x768xf32>
    %98 = tpu.matmul %96, %97, %cst_24 {dimension_numbers = #tpu.dot_dimension_numbers<[1], [0], [0], [1], [0, 0, 1, 1], [], []>} : vector<8x128xbf16>, vector<128x768xbf16>, vector<8x768xf32> -> vector<8x768xf32>
    %99 = vector.extract_strided_slice %98 {offsets = [0, 0], sizes = [8, 384], strides = [1, 1]} : vector<8x768xf32> to vector<8x384xf32>
    %100 = vector.extract_strided_slice %98 {offsets = [0, 384], sizes = [8, 384], strides = [1, 1]} : vector<8x768xf32> to vector<8x384xf32>
    %101 = vector.broadcast %2 : vector<1x384xf32> to vector<8x384xf32>
    %102 = arith.addf %100, %101 : vector<8x384xf32>
    %103 = arith.truncf %67 : vector<8x128xf32> to vector<8x128xbf16>
    %c0_25 = arith.constant 0 : index
    %c768 = arith.constant 768 : index
    %104 = vector.load %arg1[%c0_25, %c768] : memref<128x1152xbf16, #tpu.memory_space<vmem>>, vector<128x384xbf16>
    %cst_26 = arith.constant dense<0.000000e+00> : vector<8x384xf32>
    %105 = tpu.matmul %103, %104, %cst_26 {dimension_numbers = #tpu.dot_dimension_numbers<[1], [0], [0], [1], [0, 0, 1, 1], [], []>} : vector<8x128xbf16>, vector<128x384xbf16>, vector<8x384xf32> -> vector<8x384xf32>
    %106 = vector.extract_strided_slice %102 {offsets = [0, 0], sizes = [8, 256], strides = [1, 1]} : vector<8x384xf32> to vector<8x256xf32>
    %107 = vector.extract_strided_slice %105 {offsets = [0, 0], sizes = [8, 256], strides = [1, 1]} : vector<8x384xf32> to vector<8x256xf32>
    %108 = arith.addf %106, %107 : vector<8x256xf32>
    %109 = arith.negf %108 : vector<8x256xf32>
    %110 = math.exp %109 : vector<8x256xf32>
    %cst_27 = arith.constant 1.000000e+00 : f32
    %111 = vector.broadcast %cst_27 : f32 to vector<8x256xf32>
    %112 = arith.addf %111, %110 : vector<8x256xf32>
    %113 = arith.divf %111, %112 : vector<8x256xf32>
    %114 = vector.extract_strided_slice %113 {offsets = [0, 0], sizes = [8, 128], strides = [1, 1]} : vector<8x256xf32> to vector<8x128xf32>
    %115 = vector.extract_strided_slice %113 {offsets = [0, 128], sizes = [8, 128], strides = [1, 1]} : vector<8x256xf32> to vector<8x128xf32>
    %116 = vector.extract_strided_slice %102 {offsets = [0, 256], sizes = [8, 128], strides = [1, 1]} : vector<8x384xf32> to vector<8x128xf32>
    %117 = vector.extract_strided_slice %105 {offsets = [0, 256], sizes = [8, 128], strides = [1, 1]} : vector<8x384xf32> to vector<8x128xf32>
    %118 = vector.broadcast %4 : vector<1x128xf32> to vector<8x128xf32>
    %119 = arith.addf %117, %118 : vector<8x128xf32>
    %120 = arith.mulf %114, %119 : vector<8x128xf32>
    %121 = arith.addf %116, %120 : vector<8x128xf32>
    %122 = math.tanh %121 : vector<8x128xf32>
    %cst_28 = arith.constant 1.000000e+00 : f32
    %123 = vector.broadcast %cst_28 : f32 to vector<8x128xf32>
    %124 = arith.subf %123, %115 : vector<8x128xf32>
    %125 = arith.mulf %124, %122 : vector<8x128xf32>
    %126 = arith.mulf %115, %67 : vector<8x128xf32>
    %127 = arith.addf %125, %126 : vector<8x128xf32>
    %c16 = arith.constant 16 : index
    %c0_29 = arith.constant 0 : index
    %128 = vector.load %arg0[%c16, %c0_29] : memref<80x1xf32, #tpu.memory_space<vmem>>, vector<8x1xf32>
    %129 = vector.broadcast %128 : vector<8x1xf32> to vector<8x384xf32>
    %130 = vector.broadcast %0 : vector<1x384xf32> to vector<8x384xf32>
    %131 = arith.mulf %129, %130 : vector<8x384xf32>
    %132 = vector.broadcast %1 : vector<1x384xf32> to vector<8x384xf32>
    %133 = arith.addf %131, %132 : vector<8x384xf32>
    %134 = vector.extract_strided_slice %133 {offsets = [0, 0], sizes = [8, 256], strides = [1, 1]} : vector<8x384xf32> to vector<8x256xf32>
    %135 = vector.extract_strided_slice %99 {offsets = [0, 0], sizes = [8, 256], strides = [1, 1]} : vector<8x384xf32> to vector<8x256xf32>
    %136 = arith.addf %134, %135 : vector<8x256xf32>
    %137 = arith.negf %136 : vector<8x256xf32>
    %138 = math.exp %137 : vector<8x256xf32>
    %cst_30 = arith.constant 1.000000e+00 : f32
    %139 = vector.broadcast %cst_30 : f32 to vector<8x256xf32>
    %140 = arith.addf %139, %138 : vector<8x256xf32>
    %141 = arith.divf %139, %140 : vector<8x256xf32>
    %142 = vector.extract_strided_slice %141 {offsets = [0, 0], sizes = [8, 128], strides = [1, 1]} : vector<8x256xf32> to vector<8x128xf32>
    %143 = vector.extract_strided_slice %141 {offsets = [0, 128], sizes = [8, 128], strides = [1, 1]} : vector<8x256xf32> to vector<8x128xf32>
    %144 = vector.extract_strided_slice %133 {offsets = [0, 256], sizes = [8, 128], strides = [1, 1]} : vector<8x384xf32> to vector<8x128xf32>
    %145 = vector.extract_strided_slice %99 {offsets = [0, 256], sizes = [8, 128], strides = [1, 1]} : vector<8x384xf32> to vector<8x128xf32>
    %146 = vector.broadcast %3 : vector<1x128xf32> to vector<8x128xf32>
    %147 = arith.addf %145, %146 : vector<8x128xf32>
    %148 = arith.mulf %142, %147 : vector<8x128xf32>
    %149 = arith.addf %144, %148 : vector<8x128xf32>
    %150 = math.tanh %149 : vector<8x128xf32>
    %cst_31 = arith.constant 1.000000e+00 : f32
    %151 = vector.broadcast %cst_31 : f32 to vector<8x128xf32>
    %152 = arith.subf %151, %143 : vector<8x128xf32>
    %153 = arith.mulf %152, %150 : vector<8x128xf32>
    %154 = arith.mulf %143, %95 : vector<8x128xf32>
    %155 = arith.addf %153, %154 : vector<8x128xf32>
    %156 = arith.truncf %155 : vector<8x128xf32> to vector<8x128xbf16>
    %c0_32 = arith.constant 0 : index
    %c0_33 = arith.constant 0 : index
    %157 = vector.load %arg1[%c0_32, %c0_33] : memref<128x1152xbf16, #tpu.memory_space<vmem>>, vector<128x768xbf16>
    %cst_34 = arith.constant dense<0.000000e+00> : vector<8x768xf32>
    %158 = tpu.matmul %156, %157, %cst_34 {dimension_numbers = #tpu.dot_dimension_numbers<[1], [0], [0], [1], [0, 0, 1, 1], [], []>} : vector<8x128xbf16>, vector<128x768xbf16>, vector<8x768xf32> -> vector<8x768xf32>
    %159 = vector.extract_strided_slice %158 {offsets = [0, 0], sizes = [8, 384], strides = [1, 1]} : vector<8x768xf32> to vector<8x384xf32>
    %160 = vector.extract_strided_slice %158 {offsets = [0, 384], sizes = [8, 384], strides = [1, 1]} : vector<8x768xf32> to vector<8x384xf32>
    %161 = vector.broadcast %2 : vector<1x384xf32> to vector<8x384xf32>
    %162 = arith.addf %160, %161 : vector<8x384xf32>
    %163 = arith.truncf %127 : vector<8x128xf32> to vector<8x128xbf16>
    %c0_35 = arith.constant 0 : index
    %c768_36 = arith.constant 768 : index
    %164 = vector.load %arg1[%c0_35, %c768_36] : memref<128x1152xbf16, #tpu.memory_space<vmem>>, vector<128x384xbf16>
    %cst_37 = arith.constant dense<0.000000e+00> : vector<8x384xf32>
    %165 = tpu.matmul %163, %164, %cst_37 {dimension_numbers = #tpu.dot_dimension_numbers<[1], [0], [0], [1], [0, 0, 1, 1], [], []>} : vector<8x128xbf16>, vector<128x384xbf16>, vector<8x384xf32> -> vector<8x384xf32>
    %166 = vector.extract_strided_slice %162 {offsets = [0, 0], sizes = [8, 256], strides = [1, 1]} : vector<8x384xf32> to vector<8x256xf32>
    %167 = vector.extract_strided_slice %165 {offsets = [0, 0], sizes = [8, 256], strides = [1, 1]} : vector<8x384xf32> to vector<8x256xf32>
    %168 = arith.addf %166, %167 : vector<8x256xf32>
    %169 = arith.negf %168 : vector<8x256xf32>
    %170 = math.exp %169 : vector<8x256xf32>
    %cst_38 = arith.constant 1.000000e+00 : f32
    %171 = vector.broadcast %cst_38 : f32 to vector<8x256xf32>
    %172 = arith.addf %171, %170 : vector<8x256xf32>
    %173 = arith.divf %171, %172 : vector<8x256xf32>
    %174 = vector.extract_strided_slice %173 {offsets = [0, 0], sizes = [8, 128], strides = [1, 1]} : vector<8x256xf32> to vector<8x128xf32>
    %175 = vector.extract_strided_slice %173 {offsets = [0, 128], sizes = [8, 128], strides = [1, 1]} : vector<8x256xf32> to vector<8x128xf32>
    %176 = vector.extract_strided_slice %162 {offsets = [0, 256], sizes = [8, 128], strides = [1, 1]} : vector<8x384xf32> to vector<8x128xf32>
    %177 = vector.extract_strided_slice %165 {offsets = [0, 256], sizes = [8, 128], strides = [1, 1]} : vector<8x384xf32> to vector<8x128xf32>
    %178 = vector.broadcast %4 : vector<1x128xf32> to vector<8x128xf32>
    %179 = arith.addf %177, %178 : vector<8x128xf32>
    %180 = arith.mulf %174, %179 : vector<8x128xf32>
    %181 = arith.addf %176, %180 : vector<8x128xf32>
    %182 = math.tanh %181 : vector<8x128xf32>
    %cst_39 = arith.constant 1.000000e+00 : f32
    %183 = vector.broadcast %cst_39 : f32 to vector<8x128xf32>
    %184 = arith.subf %183, %175 : vector<8x128xf32>
    %185 = arith.mulf %184, %182 : vector<8x128xf32>
    %186 = arith.mulf %175, %127 : vector<8x128xf32>
    %187 = arith.addf %185, %186 : vector<8x128xf32>
    %c24 = arith.constant 24 : index
    %c0_40 = arith.constant 0 : index
    %188 = vector.load %arg0[%c24, %c0_40] : memref<80x1xf32, #tpu.memory_space<vmem>>, vector<8x1xf32>
    %189 = vector.broadcast %188 : vector<8x1xf32> to vector<8x384xf32>
    %190 = vector.broadcast %0 : vector<1x384xf32> to vector<8x384xf32>
    %191 = arith.mulf %189, %190 : vector<8x384xf32>
    %192 = vector.broadcast %1 : vector<1x384xf32> to vector<8x384xf32>
    %193 = arith.addf %191, %192 : vector<8x384xf32>
    %194 = vector.extract_strided_slice %193 {offsets = [0, 0], sizes = [8, 256], strides = [1, 1]} : vector<8x384xf32> to vector<8x256xf32>
    %195 = vector.extract_strided_slice %159 {offsets = [0, 0], sizes = [8, 256], strides = [1, 1]} : vector<8x384xf32> to vector<8x256xf32>
    %196 = arith.addf %194, %195 : vector<8x256xf32>
    %197 = arith.negf %196 : vector<8x256xf32>
    %198 = math.exp %197 : vector<8x256xf32>
    %cst_41 = arith.constant 1.000000e+00 : f32
    %199 = vector.broadcast %cst_41 : f32 to vector<8x256xf32>
    %200 = arith.addf %199, %198 : vector<8x256xf32>
    %201 = arith.divf %199, %200 : vector<8x256xf32>
    %202 = vector.extract_strided_slice %201 {offsets = [0, 0], sizes = [8, 128], strides = [1, 1]} : vector<8x256xf32> to vector<8x128xf32>
    %203 = vector.extract_strided_slice %201 {offsets = [0, 128], sizes = [8, 128], strides = [1, 1]} : vector<8x256xf32> to vector<8x128xf32>
    %204 = vector.extract_strided_slice %193 {offsets = [0, 256], sizes = [8, 128], strides = [1, 1]} : vector<8x384xf32> to vector<8x128xf32>
    %205 = vector.extract_strided_slice %159 {offsets = [0, 256], sizes = [8, 128], strides = [1, 1]} : vector<8x384xf32> to vector<8x128xf32>
    %206 = vector.broadcast %3 : vector<1x128xf32> to vector<8x128xf32>
    %207 = arith.addf %205, %206 : vector<8x128xf32>
    %208 = arith.mulf %202, %207 : vector<8x128xf32>
    %209 = arith.addf %204, %208 : vector<8x128xf32>
    %210 = math.tanh %209 : vector<8x128xf32>
    %cst_42 = arith.constant 1.000000e+00 : f32
    %211 = vector.broadcast %cst_42 : f32 to vector<8x128xf32>
    %212 = arith.subf %211, %203 : vector<8x128xf32>
    %213 = arith.mulf %212, %210 : vector<8x128xf32>
    %214 = arith.mulf %203, %155 : vector<8x128xf32>
    %215 = arith.addf %213, %214 : vector<8x128xf32>
    %216 = arith.truncf %215 : vector<8x128xf32> to vector<8x128xbf16>
    %c0_43 = arith.constant 0 : index
    %c0_44 = arith.constant 0 : index
    %217 = vector.load %arg1[%c0_43, %c0_44] : memref<128x1152xbf16, #tpu.memory_space<vmem>>, vector<128x768xbf16>
    %cst_45 = arith.constant dense<0.000000e+00> : vector<8x768xf32>
    %218 = tpu.matmul %216, %217, %cst_45 {dimension_numbers = #tpu.dot_dimension_numbers<[1], [0], [0], [1], [0, 0, 1, 1], [], []>} : vector<8x128xbf16>, vector<128x768xbf16>, vector<8x768xf32> -> vector<8x768xf32>
    %219 = vector.extract_strided_slice %218 {offsets = [0, 0], sizes = [8, 384], strides = [1, 1]} : vector<8x768xf32> to vector<8x384xf32>
    %220 = vector.extract_strided_slice %218 {offsets = [0, 384], sizes = [8, 384], strides = [1, 1]} : vector<8x768xf32> to vector<8x384xf32>
    %221 = vector.broadcast %2 : vector<1x384xf32> to vector<8x384xf32>
    %222 = arith.addf %220, %221 : vector<8x384xf32>
    %223 = arith.truncf %187 : vector<8x128xf32> to vector<8x128xbf16>
    %c0_46 = arith.constant 0 : index
    %c768_47 = arith.constant 768 : index
    %224 = vector.load %arg1[%c0_46, %c768_47] : memref<128x1152xbf16, #tpu.memory_space<vmem>>, vector<128x384xbf16>
    %cst_48 = arith.constant dense<0.000000e+00> : vector<8x384xf32>
    %225 = tpu.matmul %223, %224, %cst_48 {dimension_numbers = #tpu.dot_dimension_numbers<[1], [0], [0], [1], [0, 0, 1, 1], [], []>} : vector<8x128xbf16>, vector<128x384xbf16>, vector<8x384xf32> -> vector<8x384xf32>
    %226 = vector.extract_strided_slice %222 {offsets = [0, 0], sizes = [8, 256], strides = [1, 1]} : vector<8x384xf32> to vector<8x256xf32>
    %227 = vector.extract_strided_slice %225 {offsets = [0, 0], sizes = [8, 256], strides = [1, 1]} : vector<8x384xf32> to vector<8x256xf32>
    %228 = arith.addf %226, %227 : vector<8x256xf32>
    %229 = arith.negf %228 : vector<8x256xf32>
    %230 = math.exp %229 : vector<8x256xf32>
    %cst_49 = arith.constant 1.000000e+00 : f32
    %231 = vector.broadcast %cst_49 : f32 to vector<8x256xf32>
    %232 = arith.addf %231, %230 : vector<8x256xf32>
    %233 = arith.divf %231, %232 : vector<8x256xf32>
    %234 = vector.extract_strided_slice %233 {offsets = [0, 0], sizes = [8, 128], strides = [1, 1]} : vector<8x256xf32> to vector<8x128xf32>
    %235 = vector.extract_strided_slice %233 {offsets = [0, 128], sizes = [8, 128], strides = [1, 1]} : vector<8x256xf32> to vector<8x128xf32>
    %236 = vector.extract_strided_slice %222 {offsets = [0, 256], sizes = [8, 128], strides = [1, 1]} : vector<8x384xf32> to vector<8x128xf32>
    %237 = vector.extract_strided_slice %225 {offsets = [0, 256], sizes = [8, 128], strides = [1, 1]} : vector<8x384xf32> to vector<8x128xf32>
    %238 = vector.broadcast %4 : vector<1x128xf32> to vector<8x128xf32>
    %239 = arith.addf %237, %238 : vector<8x128xf32>
    %240 = arith.mulf %234, %239 : vector<8x128xf32>
    %241 = arith.addf %236, %240 : vector<8x128xf32>
    %242 = math.tanh %241 : vector<8x128xf32>
    %cst_50 = arith.constant 1.000000e+00 : f32
    %243 = vector.broadcast %cst_50 : f32 to vector<8x128xf32>
    %244 = arith.subf %243, %235 : vector<8x128xf32>
    %245 = arith.mulf %244, %242 : vector<8x128xf32>
    %246 = arith.mulf %235, %187 : vector<8x128xf32>
    %247 = arith.addf %245, %246 : vector<8x128xf32>
    %c32 = arith.constant 32 : index
    %c0_51 = arith.constant 0 : index
    %248 = vector.load %arg0[%c32, %c0_51] : memref<80x1xf32, #tpu.memory_space<vmem>>, vector<8x1xf32>
    %249 = vector.broadcast %248 : vector<8x1xf32> to vector<8x384xf32>
    %250 = vector.broadcast %0 : vector<1x384xf32> to vector<8x384xf32>
    %251 = arith.mulf %249, %250 : vector<8x384xf32>
    %252 = vector.broadcast %1 : vector<1x384xf32> to vector<8x384xf32>
    %253 = arith.addf %251, %252 : vector<8x384xf32>
    %254 = vector.extract_strided_slice %253 {offsets = [0, 0], sizes = [8, 256], strides = [1, 1]} : vector<8x384xf32> to vector<8x256xf32>
    %255 = vector.extract_strided_slice %219 {offsets = [0, 0], sizes = [8, 256], strides = [1, 1]} : vector<8x384xf32> to vector<8x256xf32>
    %256 = arith.addf %254, %255 : vector<8x256xf32>
    %257 = arith.negf %256 : vector<8x256xf32>
    %258 = math.exp %257 : vector<8x256xf32>
    %cst_52 = arith.constant 1.000000e+00 : f32
    %259 = vector.broadcast %cst_52 : f32 to vector<8x256xf32>
    %260 = arith.addf %259, %258 : vector<8x256xf32>
    %261 = arith.divf %259, %260 : vector<8x256xf32>
    %262 = vector.extract_strided_slice %261 {offsets = [0, 0], sizes = [8, 128], strides = [1, 1]} : vector<8x256xf32> to vector<8x128xf32>
    %263 = vector.extract_strided_slice %261 {offsets = [0, 128], sizes = [8, 128], strides = [1, 1]} : vector<8x256xf32> to vector<8x128xf32>
    %264 = vector.extract_strided_slice %253 {offsets = [0, 256], sizes = [8, 128], strides = [1, 1]} : vector<8x384xf32> to vector<8x128xf32>
    %265 = vector.extract_strided_slice %219 {offsets = [0, 256], sizes = [8, 128], strides = [1, 1]} : vector<8x384xf32> to vector<8x128xf32>
    %266 = vector.broadcast %3 : vector<1x128xf32> to vector<8x128xf32>
    %267 = arith.addf %265, %266 : vector<8x128xf32>
    %268 = arith.mulf %262, %267 : vector<8x128xf32>
    %269 = arith.addf %264, %268 : vector<8x128xf32>
    %270 = math.tanh %269 : vector<8x128xf32>
    %cst_53 = arith.constant 1.000000e+00 : f32
    %271 = vector.broadcast %cst_53 : f32 to vector<8x128xf32>
    %272 = arith.subf %271, %263 : vector<8x128xf32>
    %273 = arith.mulf %272, %270 : vector<8x128xf32>
    %274 = arith.mulf %263, %215 : vector<8x128xf32>
    %275 = arith.addf %273, %274 : vector<8x128xf32>
    %276 = arith.truncf %275 : vector<8x128xf32> to vector<8x128xbf16>
    %c0_54 = arith.constant 0 : index
    %c0_55 = arith.constant 0 : index
    %277 = vector.load %arg1[%c0_54, %c0_55] : memref<128x1152xbf16, #tpu.memory_space<vmem>>, vector<128x768xbf16>
    %cst_56 = arith.constant dense<0.000000e+00> : vector<8x768xf32>
    %278 = tpu.matmul %276, %277, %cst_56 {dimension_numbers = #tpu.dot_dimension_numbers<[1], [0], [0], [1], [0, 0, 1, 1], [], []>} : vector<8x128xbf16>, vector<128x768xbf16>, vector<8x768xf32> -> vector<8x768xf32>
    %279 = vector.extract_strided_slice %278 {offsets = [0, 0], sizes = [8, 384], strides = [1, 1]} : vector<8x768xf32> to vector<8x384xf32>
    %280 = vector.extract_strided_slice %278 {offsets = [0, 384], sizes = [8, 384], strides = [1, 1]} : vector<8x768xf32> to vector<8x384xf32>
    %281 = vector.broadcast %2 : vector<1x384xf32> to vector<8x384xf32>
    %282 = arith.addf %280, %281 : vector<8x384xf32>
    %283 = arith.truncf %247 : vector<8x128xf32> to vector<8x128xbf16>
    %c0_57 = arith.constant 0 : index
    %c768_58 = arith.constant 768 : index
    %284 = vector.load %arg1[%c0_57, %c768_58] : memref<128x1152xbf16, #tpu.memory_space<vmem>>, vector<128x384xbf16>
    %cst_59 = arith.constant dense<0.000000e+00> : vector<8x384xf32>
    %285 = tpu.matmul %283, %284, %cst_59 {dimension_numbers = #tpu.dot_dimension_numbers<[1], [0], [0], [1], [0, 0, 1, 1], [], []>} : vector<8x128xbf16>, vector<128x384xbf16>, vector<8x384xf32> -> vector<8x384xf32>
    %286 = vector.extract_strided_slice %282 {offsets = [0, 0], sizes = [8, 256], strides = [1, 1]} : vector<8x384xf32> to vector<8x256xf32>
    %287 = vector.extract_strided_slice %285 {offsets = [0, 0], sizes = [8, 256], strides = [1, 1]} : vector<8x384xf32> to vector<8x256xf32>
    %288 = arith.addf %286, %287 : vector<8x256xf32>
    %289 = arith.negf %288 : vector<8x256xf32>
    %290 = math.exp %289 : vector<8x256xf32>
    %cst_60 = arith.constant 1.000000e+00 : f32
    %291 = vector.broadcast %cst_60 : f32 to vector<8x256xf32>
    %292 = arith.addf %291, %290 : vector<8x256xf32>
    %293 = arith.divf %291, %292 : vector<8x256xf32>
    %294 = vector.extract_strided_slice %293 {offsets = [0, 0], sizes = [8, 128], strides = [1, 1]} : vector<8x256xf32> to vector<8x128xf32>
    %295 = vector.extract_strided_slice %293 {offsets = [0, 128], sizes = [8, 128], strides = [1, 1]} : vector<8x256xf32> to vector<8x128xf32>
    %296 = vector.extract_strided_slice %282 {offsets = [0, 256], sizes = [8, 128], strides = [1, 1]} : vector<8x384xf32> to vector<8x128xf32>
    %297 = vector.extract_strided_slice %285 {offsets = [0, 256], sizes = [8, 128], strides = [1, 1]} : vector<8x384xf32> to vector<8x128xf32>
    %298 = vector.broadcast %4 : vector<1x128xf32> to vector<8x128xf32>
    %299 = arith.addf %297, %298 : vector<8x128xf32>
    %300 = arith.mulf %294, %299 : vector<8x128xf32>
    %301 = arith.addf %296, %300 : vector<8x128xf32>
    %302 = math.tanh %301 : vector<8x128xf32>
    %cst_61 = arith.constant 1.000000e+00 : f32
    %303 = vector.broadcast %cst_61 : f32 to vector<8x128xf32>
    %304 = arith.subf %303, %295 : vector<8x128xf32>
    %305 = arith.mulf %304, %302 : vector<8x128xf32>
    %306 = arith.mulf %295, %247 : vector<8x128xf32>
    %307 = arith.addf %305, %306 : vector<8x128xf32>
    %c40 = arith.constant 40 : index
    %c0_62 = arith.constant 0 : index
    %308 = vector.load %arg0[%c40, %c0_62] : memref<80x1xf32, #tpu.memory_space<vmem>>, vector<8x1xf32>
    %309 = vector.broadcast %308 : vector<8x1xf32> to vector<8x384xf32>
    %310 = vector.broadcast %0 : vector<1x384xf32> to vector<8x384xf32>
    %311 = arith.mulf %309, %310 : vector<8x384xf32>
    %312 = vector.broadcast %1 : vector<1x384xf32> to vector<8x384xf32>
    %313 = arith.addf %311, %312 : vector<8x384xf32>
    %314 = vector.extract_strided_slice %313 {offsets = [0, 0], sizes = [8, 256], strides = [1, 1]} : vector<8x384xf32> to vector<8x256xf32>
    %315 = vector.extract_strided_slice %279 {offsets = [0, 0], sizes = [8, 256], strides = [1, 1]} : vector<8x384xf32> to vector<8x256xf32>
    %316 = arith.addf %314, %315 : vector<8x256xf32>
    %317 = arith.negf %316 : vector<8x256xf32>
    %318 = math.exp %317 : vector<8x256xf32>
    %cst_63 = arith.constant 1.000000e+00 : f32
    %319 = vector.broadcast %cst_63 : f32 to vector<8x256xf32>
    %320 = arith.addf %319, %318 : vector<8x256xf32>
    %321 = arith.divf %319, %320 : vector<8x256xf32>
    %322 = vector.extract_strided_slice %321 {offsets = [0, 0], sizes = [8, 128], strides = [1, 1]} : vector<8x256xf32> to vector<8x128xf32>
    %323 = vector.extract_strided_slice %321 {offsets = [0, 128], sizes = [8, 128], strides = [1, 1]} : vector<8x256xf32> to vector<8x128xf32>
    %324 = vector.extract_strided_slice %313 {offsets = [0, 256], sizes = [8, 128], strides = [1, 1]} : vector<8x384xf32> to vector<8x128xf32>
    %325 = vector.extract_strided_slice %279 {offsets = [0, 256], sizes = [8, 128], strides = [1, 1]} : vector<8x384xf32> to vector<8x128xf32>
    %326 = vector.broadcast %3 : vector<1x128xf32> to vector<8x128xf32>
    %327 = arith.addf %325, %326 : vector<8x128xf32>
    %328 = arith.mulf %322, %327 : vector<8x128xf32>
    %329 = arith.addf %324, %328 : vector<8x128xf32>
    %330 = math.tanh %329 : vector<8x128xf32>
    %cst_64 = arith.constant 1.000000e+00 : f32
    %331 = vector.broadcast %cst_64 : f32 to vector<8x128xf32>
    %332 = arith.subf %331, %323 : vector<8x128xf32>
    %333 = arith.mulf %332, %330 : vector<8x128xf32>
    %334 = arith.mulf %323, %275 : vector<8x128xf32>
    %335 = arith.addf %333, %334 : vector<8x128xf32>
    %336 = arith.truncf %335 : vector<8x128xf32> to vector<8x128xbf16>
    %c0_65 = arith.constant 0 : index
    %c0_66 = arith.constant 0 : index
    %337 = vector.load %arg1[%c0_65, %c0_66] : memref<128x1152xbf16, #tpu.memory_space<vmem>>, vector<128x768xbf16>
    %cst_67 = arith.constant dense<0.000000e+00> : vector<8x768xf32>
    %338 = tpu.matmul %336, %337, %cst_67 {dimension_numbers = #tpu.dot_dimension_numbers<[1], [0], [0], [1], [0, 0, 1, 1], [], []>} : vector<8x128xbf16>, vector<128x768xbf16>, vector<8x768xf32> -> vector<8x768xf32>
    %339 = vector.extract_strided_slice %338 {offsets = [0, 0], sizes = [8, 384], strides = [1, 1]} : vector<8x768xf32> to vector<8x384xf32>
    %340 = vector.extract_strided_slice %338 {offsets = [0, 384], sizes = [8, 384], strides = [1, 1]} : vector<8x768xf32> to vector<8x384xf32>
    %341 = vector.broadcast %2 : vector<1x384xf32> to vector<8x384xf32>
    %342 = arith.addf %340, %341 : vector<8x384xf32>
    %343 = arith.truncf %307 : vector<8x128xf32> to vector<8x128xbf16>
    %c0_68 = arith.constant 0 : index
    %c768_69 = arith.constant 768 : index
    %344 = vector.load %arg1[%c0_68, %c768_69] : memref<128x1152xbf16, #tpu.memory_space<vmem>>, vector<128x384xbf16>
    %cst_70 = arith.constant dense<0.000000e+00> : vector<8x384xf32>
    %345 = tpu.matmul %343, %344, %cst_70 {dimension_numbers = #tpu.dot_dimension_numbers<[1], [0], [0], [1], [0, 0, 1, 1], [], []>} : vector<8x128xbf16>, vector<128x384xbf16>, vector<8x384xf32> -> vector<8x384xf32>
    %346 = vector.extract_strided_slice %342 {offsets = [0, 0], sizes = [8, 256], strides = [1, 1]} : vector<8x384xf32> to vector<8x256xf32>
    %347 = vector.extract_strided_slice %345 {offsets = [0, 0], sizes = [8, 256], strides = [1, 1]} : vector<8x384xf32> to vector<8x256xf32>
    %348 = arith.addf %346, %347 : vector<8x256xf32>
    %349 = arith.negf %348 : vector<8x256xf32>
    %350 = math.exp %349 : vector<8x256xf32>
    %cst_71 = arith.constant 1.000000e+00 : f32
    %351 = vector.broadcast %cst_71 : f32 to vector<8x256xf32>
    %352 = arith.addf %351, %350 : vector<8x256xf32>
    %353 = arith.divf %351, %352 : vector<8x256xf32>
    %354 = vector.extract_strided_slice %353 {offsets = [0, 0], sizes = [8, 128], strides = [1, 1]} : vector<8x256xf32> to vector<8x128xf32>
    %355 = vector.extract_strided_slice %353 {offsets = [0, 128], sizes = [8, 128], strides = [1, 1]} : vector<8x256xf32> to vector<8x128xf32>
    %356 = vector.extract_strided_slice %342 {offsets = [0, 256], sizes = [8, 128], strides = [1, 1]} : vector<8x384xf32> to vector<8x128xf32>
    %357 = vector.extract_strided_slice %345 {offsets = [0, 256], sizes = [8, 128], strides = [1, 1]} : vector<8x384xf32> to vector<8x128xf32>
    %358 = vector.broadcast %4 : vector<1x128xf32> to vector<8x128xf32>
    %359 = arith.addf %357, %358 : vector<8x128xf32>
    %360 = arith.mulf %354, %359 : vector<8x128xf32>
    %361 = arith.addf %356, %360 : vector<8x128xf32>
    %362 = math.tanh %361 : vector<8x128xf32>
    %cst_72 = arith.constant 1.000000e+00 : f32
    %363 = vector.broadcast %cst_72 : f32 to vector<8x128xf32>
    %364 = arith.subf %363, %355 : vector<8x128xf32>
    %365 = arith.mulf %364, %362 : vector<8x128xf32>
    %366 = arith.mulf %355, %307 : vector<8x128xf32>
    %367 = arith.addf %365, %366 : vector<8x128xf32>
    %c48 = arith.constant 48 : index
    %c0_73 = arith.constant 0 : index
    %368 = vector.load %arg0[%c48, %c0_73] : memref<80x1xf32, #tpu.memory_space<vmem>>, vector<8x1xf32>
    %369 = vector.broadcast %368 : vector<8x1xf32> to vector<8x384xf32>
    %370 = vector.broadcast %0 : vector<1x384xf32> to vector<8x384xf32>
    %371 = arith.mulf %369, %370 : vector<8x384xf32>
    %372 = vector.broadcast %1 : vector<1x384xf32> to vector<8x384xf32>
    %373 = arith.addf %371, %372 : vector<8x384xf32>
    %374 = vector.extract_strided_slice %373 {offsets = [0, 0], sizes = [8, 256], strides = [1, 1]} : vector<8x384xf32> to vector<8x256xf32>
    %375 = vector.extract_strided_slice %339 {offsets = [0, 0], sizes = [8, 256], strides = [1, 1]} : vector<8x384xf32> to vector<8x256xf32>
    %376 = arith.addf %374, %375 : vector<8x256xf32>
    %377 = arith.negf %376 : vector<8x256xf32>
    %378 = math.exp %377 : vector<8x256xf32>
    %cst_74 = arith.constant 1.000000e+00 : f32
    %379 = vector.broadcast %cst_74 : f32 to vector<8x256xf32>
    %380 = arith.addf %379, %378 : vector<8x256xf32>
    %381 = arith.divf %379, %380 : vector<8x256xf32>
    %382 = vector.extract_strided_slice %381 {offsets = [0, 0], sizes = [8, 128], strides = [1, 1]} : vector<8x256xf32> to vector<8x128xf32>
    %383 = vector.extract_strided_slice %381 {offsets = [0, 128], sizes = [8, 128], strides = [1, 1]} : vector<8x256xf32> to vector<8x128xf32>
    %384 = vector.extract_strided_slice %373 {offsets = [0, 256], sizes = [8, 128], strides = [1, 1]} : vector<8x384xf32> to vector<8x128xf32>
    %385 = vector.extract_strided_slice %339 {offsets = [0, 256], sizes = [8, 128], strides = [1, 1]} : vector<8x384xf32> to vector<8x128xf32>
    %386 = vector.broadcast %3 : vector<1x128xf32> to vector<8x128xf32>
    %387 = arith.addf %385, %386 : vector<8x128xf32>
    %388 = arith.mulf %382, %387 : vector<8x128xf32>
    %389 = arith.addf %384, %388 : vector<8x128xf32>
    %390 = math.tanh %389 : vector<8x128xf32>
    %cst_75 = arith.constant 1.000000e+00 : f32
    %391 = vector.broadcast %cst_75 : f32 to vector<8x128xf32>
    %392 = arith.subf %391, %383 : vector<8x128xf32>
    %393 = arith.mulf %392, %390 : vector<8x128xf32>
    %394 = arith.mulf %383, %335 : vector<8x128xf32>
    %395 = arith.addf %393, %394 : vector<8x128xf32>
    %396 = arith.truncf %395 : vector<8x128xf32> to vector<8x128xbf16>
    %c0_76 = arith.constant 0 : index
    %c0_77 = arith.constant 0 : index
    %397 = vector.load %arg1[%c0_76, %c0_77] : memref<128x1152xbf16, #tpu.memory_space<vmem>>, vector<128x768xbf16>
    %cst_78 = arith.constant dense<0.000000e+00> : vector<8x768xf32>
    %398 = tpu.matmul %396, %397, %cst_78 {dimension_numbers = #tpu.dot_dimension_numbers<[1], [0], [0], [1], [0, 0, 1, 1], [], []>} : vector<8x128xbf16>, vector<128x768xbf16>, vector<8x768xf32> -> vector<8x768xf32>
    %399 = vector.extract_strided_slice %398 {offsets = [0, 0], sizes = [8, 384], strides = [1, 1]} : vector<8x768xf32> to vector<8x384xf32>
    %400 = vector.extract_strided_slice %398 {offsets = [0, 384], sizes = [8, 384], strides = [1, 1]} : vector<8x768xf32> to vector<8x384xf32>
    %401 = vector.broadcast %2 : vector<1x384xf32> to vector<8x384xf32>
    %402 = arith.addf %400, %401 : vector<8x384xf32>
    %403 = arith.truncf %367 : vector<8x128xf32> to vector<8x128xbf16>
    %c0_79 = arith.constant 0 : index
    %c768_80 = arith.constant 768 : index
    %404 = vector.load %arg1[%c0_79, %c768_80] : memref<128x1152xbf16, #tpu.memory_space<vmem>>, vector<128x384xbf16>
    %cst_81 = arith.constant dense<0.000000e+00> : vector<8x384xf32>
    %405 = tpu.matmul %403, %404, %cst_81 {dimension_numbers = #tpu.dot_dimension_numbers<[1], [0], [0], [1], [0, 0, 1, 1], [], []>} : vector<8x128xbf16>, vector<128x384xbf16>, vector<8x384xf32> -> vector<8x384xf32>
    %406 = vector.extract_strided_slice %402 {offsets = [0, 0], sizes = [8, 256], strides = [1, 1]} : vector<8x384xf32> to vector<8x256xf32>
    %407 = vector.extract_strided_slice %405 {offsets = [0, 0], sizes = [8, 256], strides = [1, 1]} : vector<8x384xf32> to vector<8x256xf32>
    %408 = arith.addf %406, %407 : vector<8x256xf32>
    %409 = arith.negf %408 : vector<8x256xf32>
    %410 = math.exp %409 : vector<8x256xf32>
    %cst_82 = arith.constant 1.000000e+00 : f32
    %411 = vector.broadcast %cst_82 : f32 to vector<8x256xf32>
    %412 = arith.addf %411, %410 : vector<8x256xf32>
    %413 = arith.divf %411, %412 : vector<8x256xf32>
    %414 = vector.extract_strided_slice %413 {offsets = [0, 0], sizes = [8, 128], strides = [1, 1]} : vector<8x256xf32> to vector<8x128xf32>
    %415 = vector.extract_strided_slice %413 {offsets = [0, 128], sizes = [8, 128], strides = [1, 1]} : vector<8x256xf32> to vector<8x128xf32>
    %416 = vector.extract_strided_slice %402 {offsets = [0, 256], sizes = [8, 128], strides = [1, 1]} : vector<8x384xf32> to vector<8x128xf32>
    %417 = vector.extract_strided_slice %405 {offsets = [0, 256], sizes = [8, 128], strides = [1, 1]} : vector<8x384xf32> to vector<8x128xf32>
    %418 = vector.broadcast %4 : vector<1x128xf32> to vector<8x128xf32>
    %419 = arith.addf %417, %418 : vector<8x128xf32>
    %420 = arith.mulf %414, %419 : vector<8x128xf32>
    %421 = arith.addf %416, %420 : vector<8x128xf32>
    %422 = math.tanh %421 : vector<8x128xf32>
    %cst_83 = arith.constant 1.000000e+00 : f32
    %423 = vector.broadcast %cst_83 : f32 to vector<8x128xf32>
    %424 = arith.subf %423, %415 : vector<8x128xf32>
    %425 = arith.mulf %424, %422 : vector<8x128xf32>
    %426 = arith.mulf %415, %367 : vector<8x128xf32>
    %427 = arith.addf %425, %426 : vector<8x128xf32>
    %c56 = arith.constant 56 : index
    %c0_84 = arith.constant 0 : index
    %428 = vector.load %arg0[%c56, %c0_84] : memref<80x1xf32, #tpu.memory_space<vmem>>, vector<8x1xf32>
    %429 = vector.broadcast %428 : vector<8x1xf32> to vector<8x384xf32>
    %430 = vector.broadcast %0 : vector<1x384xf32> to vector<8x384xf32>
    %431 = arith.mulf %429, %430 : vector<8x384xf32>
    %432 = vector.broadcast %1 : vector<1x384xf32> to vector<8x384xf32>
    %433 = arith.addf %431, %432 : vector<8x384xf32>
    %434 = vector.extract_strided_slice %433 {offsets = [0, 0], sizes = [8, 256], strides = [1, 1]} : vector<8x384xf32> to vector<8x256xf32>
    %435 = vector.extract_strided_slice %399 {offsets = [0, 0], sizes = [8, 256], strides = [1, 1]} : vector<8x384xf32> to vector<8x256xf32>
    %436 = arith.addf %434, %435 : vector<8x256xf32>
    %437 = arith.negf %436 : vector<8x256xf32>
    %438 = math.exp %437 : vector<8x256xf32>
    %cst_85 = arith.constant 1.000000e+00 : f32
    %439 = vector.broadcast %cst_85 : f32 to vector<8x256xf32>
    %440 = arith.addf %439, %438 : vector<8x256xf32>
    %441 = arith.divf %439, %440 : vector<8x256xf32>
    %442 = vector.extract_strided_slice %441 {offsets = [0, 0], sizes = [8, 128], strides = [1, 1]} : vector<8x256xf32> to vector<8x128xf32>
    %443 = vector.extract_strided_slice %441 {offsets = [0, 128], sizes = [8, 128], strides = [1, 1]} : vector<8x256xf32> to vector<8x128xf32>
    %444 = vector.extract_strided_slice %433 {offsets = [0, 256], sizes = [8, 128], strides = [1, 1]} : vector<8x384xf32> to vector<8x128xf32>
    %445 = vector.extract_strided_slice %399 {offsets = [0, 256], sizes = [8, 128], strides = [1, 1]} : vector<8x384xf32> to vector<8x128xf32>
    %446 = vector.broadcast %3 : vector<1x128xf32> to vector<8x128xf32>
    %447 = arith.addf %445, %446 : vector<8x128xf32>
    %448 = arith.mulf %442, %447 : vector<8x128xf32>
    %449 = arith.addf %444, %448 : vector<8x128xf32>
    %450 = math.tanh %449 : vector<8x128xf32>
    %cst_86 = arith.constant 1.000000e+00 : f32
    %451 = vector.broadcast %cst_86 : f32 to vector<8x128xf32>
    %452 = arith.subf %451, %443 : vector<8x128xf32>
    %453 = arith.mulf %452, %450 : vector<8x128xf32>
    %454 = arith.mulf %443, %395 : vector<8x128xf32>
    %455 = arith.addf %453, %454 : vector<8x128xf32>
    %456 = arith.truncf %455 : vector<8x128xf32> to vector<8x128xbf16>
    %c0_87 = arith.constant 0 : index
    %c0_88 = arith.constant 0 : index
    %457 = vector.load %arg1[%c0_87, %c0_88] : memref<128x1152xbf16, #tpu.memory_space<vmem>>, vector<128x768xbf16>
    %cst_89 = arith.constant dense<0.000000e+00> : vector<8x768xf32>
    %458 = tpu.matmul %456, %457, %cst_89 {dimension_numbers = #tpu.dot_dimension_numbers<[1], [0], [0], [1], [0, 0, 1, 1], [], []>} : vector<8x128xbf16>, vector<128x768xbf16>, vector<8x768xf32> -> vector<8x768xf32>
    %459 = vector.extract_strided_slice %458 {offsets = [0, 0], sizes = [8, 384], strides = [1, 1]} : vector<8x768xf32> to vector<8x384xf32>
    %460 = vector.extract_strided_slice %458 {offsets = [0, 384], sizes = [8, 384], strides = [1, 1]} : vector<8x768xf32> to vector<8x384xf32>
    %461 = vector.broadcast %2 : vector<1x384xf32> to vector<8x384xf32>
    %462 = arith.addf %460, %461 : vector<8x384xf32>
    %463 = arith.truncf %427 : vector<8x128xf32> to vector<8x128xbf16>
    %c0_90 = arith.constant 0 : index
    %c768_91 = arith.constant 768 : index
    %464 = vector.load %arg1[%c0_90, %c768_91] : memref<128x1152xbf16, #tpu.memory_space<vmem>>, vector<128x384xbf16>
    %cst_92 = arith.constant dense<0.000000e+00> : vector<8x384xf32>
    %465 = tpu.matmul %463, %464, %cst_92 {dimension_numbers = #tpu.dot_dimension_numbers<[1], [0], [0], [1], [0, 0, 1, 1], [], []>} : vector<8x128xbf16>, vector<128x384xbf16>, vector<8x384xf32> -> vector<8x384xf32>
    %466 = vector.extract_strided_slice %462 {offsets = [0, 0], sizes = [8, 256], strides = [1, 1]} : vector<8x384xf32> to vector<8x256xf32>
    %467 = vector.extract_strided_slice %465 {offsets = [0, 0], sizes = [8, 256], strides = [1, 1]} : vector<8x384xf32> to vector<8x256xf32>
    %468 = arith.addf %466, %467 : vector<8x256xf32>
    %469 = arith.negf %468 : vector<8x256xf32>
    %470 = math.exp %469 : vector<8x256xf32>
    %cst_93 = arith.constant 1.000000e+00 : f32
    %471 = vector.broadcast %cst_93 : f32 to vector<8x256xf32>
    %472 = arith.addf %471, %470 : vector<8x256xf32>
    %473 = arith.divf %471, %472 : vector<8x256xf32>
    %474 = vector.extract_strided_slice %473 {offsets = [0, 0], sizes = [8, 128], strides = [1, 1]} : vector<8x256xf32> to vector<8x128xf32>
    %475 = vector.extract_strided_slice %473 {offsets = [0, 128], sizes = [8, 128], strides = [1, 1]} : vector<8x256xf32> to vector<8x128xf32>
    %476 = vector.extract_strided_slice %462 {offsets = [0, 256], sizes = [8, 128], strides = [1, 1]} : vector<8x384xf32> to vector<8x128xf32>
    %477 = vector.extract_strided_slice %465 {offsets = [0, 256], sizes = [8, 128], strides = [1, 1]} : vector<8x384xf32> to vector<8x128xf32>
    %478 = vector.broadcast %4 : vector<1x128xf32> to vector<8x128xf32>
    %479 = arith.addf %477, %478 : vector<8x128xf32>
    %480 = arith.mulf %474, %479 : vector<8x128xf32>
    %481 = arith.addf %476, %480 : vector<8x128xf32>
    %482 = math.tanh %481 : vector<8x128xf32>
    %cst_94 = arith.constant 1.000000e+00 : f32
    %483 = vector.broadcast %cst_94 : f32 to vector<8x128xf32>
    %484 = arith.subf %483, %475 : vector<8x128xf32>
    %485 = arith.mulf %484, %482 : vector<8x128xf32>
    %486 = arith.mulf %475, %427 : vector<8x128xf32>
    %487 = arith.addf %485, %486 : vector<8x128xf32>
    %c64 = arith.constant 64 : index
    %c0_95 = arith.constant 0 : index
    %488 = vector.load %arg0[%c64, %c0_95] : memref<80x1xf32, #tpu.memory_space<vmem>>, vector<8x1xf32>
    %489 = vector.broadcast %488 : vector<8x1xf32> to vector<8x384xf32>
    %490 = vector.broadcast %0 : vector<1x384xf32> to vector<8x384xf32>
    %491 = arith.mulf %489, %490 : vector<8x384xf32>
    %492 = vector.broadcast %1 : vector<1x384xf32> to vector<8x384xf32>
    %493 = arith.addf %491, %492 : vector<8x384xf32>
    %494 = vector.extract_strided_slice %493 {offsets = [0, 0], sizes = [8, 256], strides = [1, 1]} : vector<8x384xf32> to vector<8x256xf32>
    %495 = vector.extract_strided_slice %459 {offsets = [0, 0], sizes = [8, 256], strides = [1, 1]} : vector<8x384xf32> to vector<8x256xf32>
    %496 = arith.addf %494, %495 : vector<8x256xf32>
    %497 = arith.negf %496 : vector<8x256xf32>
    %498 = math.exp %497 : vector<8x256xf32>
    %cst_96 = arith.constant 1.000000e+00 : f32
    %499 = vector.broadcast %cst_96 : f32 to vector<8x256xf32>
    %500 = arith.addf %499, %498 : vector<8x256xf32>
    %501 = arith.divf %499, %500 : vector<8x256xf32>
    %502 = vector.extract_strided_slice %501 {offsets = [0, 0], sizes = [8, 128], strides = [1, 1]} : vector<8x256xf32> to vector<8x128xf32>
    %503 = vector.extract_strided_slice %501 {offsets = [0, 128], sizes = [8, 128], strides = [1, 1]} : vector<8x256xf32> to vector<8x128xf32>
    %504 = vector.extract_strided_slice %493 {offsets = [0, 256], sizes = [8, 128], strides = [1, 1]} : vector<8x384xf32> to vector<8x128xf32>
    %505 = vector.extract_strided_slice %459 {offsets = [0, 256], sizes = [8, 128], strides = [1, 1]} : vector<8x384xf32> to vector<8x128xf32>
    %506 = vector.broadcast %3 : vector<1x128xf32> to vector<8x128xf32>
    %507 = arith.addf %505, %506 : vector<8x128xf32>
    %508 = arith.mulf %502, %507 : vector<8x128xf32>
    %509 = arith.addf %504, %508 : vector<8x128xf32>
    %510 = math.tanh %509 : vector<8x128xf32>
    %cst_97 = arith.constant 1.000000e+00 : f32
    %511 = vector.broadcast %cst_97 : f32 to vector<8x128xf32>
    %512 = arith.subf %511, %503 : vector<8x128xf32>
    %513 = arith.mulf %512, %510 : vector<8x128xf32>
    %514 = arith.mulf %503, %455 : vector<8x128xf32>
    %515 = arith.addf %513, %514 : vector<8x128xf32>
    %516 = arith.truncf %515 : vector<8x128xf32> to vector<8x128xbf16>
    %c0_98 = arith.constant 0 : index
    %c0_99 = arith.constant 0 : index
    %517 = vector.load %arg1[%c0_98, %c0_99] : memref<128x1152xbf16, #tpu.memory_space<vmem>>, vector<128x768xbf16>
    %cst_100 = arith.constant dense<0.000000e+00> : vector<8x768xf32>
    %518 = tpu.matmul %516, %517, %cst_100 {dimension_numbers = #tpu.dot_dimension_numbers<[1], [0], [0], [1], [0, 0, 1, 1], [], []>} : vector<8x128xbf16>, vector<128x768xbf16>, vector<8x768xf32> -> vector<8x768xf32>
    %519 = vector.extract_strided_slice %518 {offsets = [0, 0], sizes = [8, 384], strides = [1, 1]} : vector<8x768xf32> to vector<8x384xf32>
    %520 = vector.extract_strided_slice %518 {offsets = [0, 384], sizes = [8, 384], strides = [1, 1]} : vector<8x768xf32> to vector<8x384xf32>
    %521 = vector.broadcast %2 : vector<1x384xf32> to vector<8x384xf32>
    %522 = arith.addf %520, %521 : vector<8x384xf32>
    %523 = arith.truncf %487 : vector<8x128xf32> to vector<8x128xbf16>
    %c0_101 = arith.constant 0 : index
    %c768_102 = arith.constant 768 : index
    %524 = vector.load %arg1[%c0_101, %c768_102] : memref<128x1152xbf16, #tpu.memory_space<vmem>>, vector<128x384xbf16>
    %cst_103 = arith.constant dense<0.000000e+00> : vector<8x384xf32>
    %525 = tpu.matmul %523, %524, %cst_103 {dimension_numbers = #tpu.dot_dimension_numbers<[1], [0], [0], [1], [0, 0, 1, 1], [], []>} : vector<8x128xbf16>, vector<128x384xbf16>, vector<8x384xf32> -> vector<8x384xf32>
    %526 = vector.extract_strided_slice %522 {offsets = [0, 0], sizes = [8, 256], strides = [1, 1]} : vector<8x384xf32> to vector<8x256xf32>
    %527 = vector.extract_strided_slice %525 {offsets = [0, 0], sizes = [8, 256], strides = [1, 1]} : vector<8x384xf32> to vector<8x256xf32>
    %528 = arith.addf %526, %527 : vector<8x256xf32>
    %529 = arith.negf %528 : vector<8x256xf32>
    %530 = math.exp %529 : vector<8x256xf32>
    %cst_104 = arith.constant 1.000000e+00 : f32
    %531 = vector.broadcast %cst_104 : f32 to vector<8x256xf32>
    %532 = arith.addf %531, %530 : vector<8x256xf32>
    %533 = arith.divf %531, %532 : vector<8x256xf32>
    %534 = vector.extract_strided_slice %533 {offsets = [0, 0], sizes = [8, 128], strides = [1, 1]} : vector<8x256xf32> to vector<8x128xf32>
    %535 = vector.extract_strided_slice %533 {offsets = [0, 128], sizes = [8, 128], strides = [1, 1]} : vector<8x256xf32> to vector<8x128xf32>
    %536 = vector.extract_strided_slice %522 {offsets = [0, 256], sizes = [8, 128], strides = [1, 1]} : vector<8x384xf32> to vector<8x128xf32>
    %537 = vector.extract_strided_slice %525 {offsets = [0, 256], sizes = [8, 128], strides = [1, 1]} : vector<8x384xf32> to vector<8x128xf32>
    %538 = vector.broadcast %4 : vector<1x128xf32> to vector<8x128xf32>
    %539 = arith.addf %537, %538 : vector<8x128xf32>
    %540 = arith.mulf %534, %539 : vector<8x128xf32>
    %541 = arith.addf %536, %540 : vector<8x128xf32>
    %542 = math.tanh %541 : vector<8x128xf32>
    %cst_105 = arith.constant 1.000000e+00 : f32
    %543 = vector.broadcast %cst_105 : f32 to vector<8x128xf32>
    %544 = arith.subf %543, %535 : vector<8x128xf32>
    %545 = arith.mulf %544, %542 : vector<8x128xf32>
    %546 = arith.mulf %535, %487 : vector<8x128xf32>
    %547 = arith.addf %545, %546 : vector<8x128xf32>
    %c72 = arith.constant 72 : index
    %c0_106 = arith.constant 0 : index
    %548 = vector.load %arg0[%c72, %c0_106] : memref<80x1xf32, #tpu.memory_space<vmem>>, vector<8x1xf32>
    %549 = vector.broadcast %548 : vector<8x1xf32> to vector<8x384xf32>
    %550 = vector.broadcast %0 : vector<1x384xf32> to vector<8x384xf32>
    %551 = arith.mulf %549, %550 : vector<8x384xf32>
    %552 = vector.broadcast %1 : vector<1x384xf32> to vector<8x384xf32>
    %553 = arith.addf %551, %552 : vector<8x384xf32>
    %554 = vector.extract_strided_slice %553 {offsets = [0, 0], sizes = [8, 256], strides = [1, 1]} : vector<8x384xf32> to vector<8x256xf32>
    %555 = vector.extract_strided_slice %519 {offsets = [0, 0], sizes = [8, 256], strides = [1, 1]} : vector<8x384xf32> to vector<8x256xf32>
    %556 = arith.addf %554, %555 : vector<8x256xf32>
    %557 = arith.negf %556 : vector<8x256xf32>
    %558 = math.exp %557 : vector<8x256xf32>
    %cst_107 = arith.constant 1.000000e+00 : f32
    %559 = vector.broadcast %cst_107 : f32 to vector<8x256xf32>
    %560 = arith.addf %559, %558 : vector<8x256xf32>
    %561 = arith.divf %559, %560 : vector<8x256xf32>
    %562 = vector.extract_strided_slice %561 {offsets = [0, 0], sizes = [8, 128], strides = [1, 1]} : vector<8x256xf32> to vector<8x128xf32>
    %563 = vector.extract_strided_slice %561 {offsets = [0, 128], sizes = [8, 128], strides = [1, 1]} : vector<8x256xf32> to vector<8x128xf32>
    %564 = vector.extract_strided_slice %553 {offsets = [0, 256], sizes = [8, 128], strides = [1, 1]} : vector<8x384xf32> to vector<8x128xf32>
    %565 = vector.extract_strided_slice %519 {offsets = [0, 256], sizes = [8, 128], strides = [1, 1]} : vector<8x384xf32> to vector<8x128xf32>
    %566 = vector.broadcast %3 : vector<1x128xf32> to vector<8x128xf32>
    %567 = arith.addf %565, %566 : vector<8x128xf32>
    %568 = arith.mulf %562, %567 : vector<8x128xf32>
    %569 = arith.addf %564, %568 : vector<8x128xf32>
    %570 = math.tanh %569 : vector<8x128xf32>
    %cst_108 = arith.constant 1.000000e+00 : f32
    %571 = vector.broadcast %cst_108 : f32 to vector<8x128xf32>
    %572 = arith.subf %571, %563 : vector<8x128xf32>
    %573 = arith.mulf %572, %570 : vector<8x128xf32>
    %574 = arith.mulf %563, %515 : vector<8x128xf32>
    %575 = arith.addf %573, %574 : vector<8x128xf32>
    %576 = arith.truncf %575 : vector<8x128xf32> to vector<8x128xbf16>
    %c0_109 = arith.constant 0 : index
    %c384 = arith.constant 384 : index
    %577 = vector.load %arg1[%c0_109, %c384] : memref<128x1152xbf16, #tpu.memory_space<vmem>>, vector<128x384xbf16>
    %cst_110 = arith.constant dense<0.000000e+00> : vector<8x384xf32>
    %578 = tpu.matmul %576, %577, %cst_110 {dimension_numbers = #tpu.dot_dimension_numbers<[1], [0], [0], [1], [0, 0, 1, 1], [], []>} : vector<8x128xbf16>, vector<128x384xbf16>, vector<8x384xf32> -> vector<8x384xf32>
    %579 = vector.broadcast %2 : vector<1x384xf32> to vector<8x384xf32>
    %580 = arith.addf %578, %579 : vector<8x384xf32>
    %581 = arith.truncf %547 : vector<8x128xf32> to vector<8x128xbf16>
    %c0_111 = arith.constant 0 : index
    %c768_112 = arith.constant 768 : index
    %582 = vector.load %arg1[%c0_111, %c768_112] : memref<128x1152xbf16, #tpu.memory_space<vmem>>, vector<128x384xbf16>
    %cst_113 = arith.constant dense<0.000000e+00> : vector<8x384xf32>
    %583 = tpu.matmul %581, %582, %cst_113 {dimension_numbers = #tpu.dot_dimension_numbers<[1], [0], [0], [1], [0, 0, 1, 1], [], []>} : vector<8x128xbf16>, vector<128x384xbf16>, vector<8x384xf32> -> vector<8x384xf32>
    %584 = vector.extract_strided_slice %580 {offsets = [0, 0], sizes = [8, 256], strides = [1, 1]} : vector<8x384xf32> to vector<8x256xf32>
    %585 = vector.extract_strided_slice %583 {offsets = [0, 0], sizes = [8, 256], strides = [1, 1]} : vector<8x384xf32> to vector<8x256xf32>
    %586 = arith.addf %584, %585 : vector<8x256xf32>
    %587 = arith.negf %586 : vector<8x256xf32>
    %588 = math.exp %587 : vector<8x256xf32>
    %cst_114 = arith.constant 1.000000e+00 : f32
    %589 = vector.broadcast %cst_114 : f32 to vector<8x256xf32>
    %590 = arith.addf %589, %588 : vector<8x256xf32>
    %591 = arith.divf %589, %590 : vector<8x256xf32>
    %592 = vector.extract_strided_slice %591 {offsets = [0, 0], sizes = [8, 128], strides = [1, 1]} : vector<8x256xf32> to vector<8x128xf32>
    %593 = vector.extract_strided_slice %591 {offsets = [0, 128], sizes = [8, 128], strides = [1, 1]} : vector<8x256xf32> to vector<8x128xf32>
    %594 = vector.extract_strided_slice %580 {offsets = [0, 256], sizes = [8, 128], strides = [1, 1]} : vector<8x384xf32> to vector<8x128xf32>
    %595 = vector.extract_strided_slice %583 {offsets = [0, 256], sizes = [8, 128], strides = [1, 1]} : vector<8x384xf32> to vector<8x128xf32>
    %596 = vector.broadcast %4 : vector<1x128xf32> to vector<8x128xf32>
    %597 = arith.addf %595, %596 : vector<8x128xf32>
    %598 = arith.mulf %592, %597 : vector<8x128xf32>
    %599 = arith.addf %594, %598 : vector<8x128xf32>
    %600 = math.tanh %599 : vector<8x128xf32>
    %cst_115 = arith.constant 1.000000e+00 : f32
    %601 = vector.broadcast %cst_115 : f32 to vector<8x128xf32>
    %602 = arith.subf %601, %593 : vector<8x128xf32>
    %603 = arith.mulf %602, %600 : vector<8x128xf32>
    %604 = arith.mulf %593, %547 : vector<8x128xf32>
    %605 = arith.addf %603, %604 : vector<8x128xf32>
    %606 = vector.broadcast %5 : vector<1x128xf32> to vector<8x128xf32>
    %607 = arith.mulf %605, %606 : vector<8x128xf32>
    %cst_116 = arith.constant dense<0.000000e+00> : vector<8xf32>
    %608 = vector.multi_reduction <add>, %607, %cst_116 [1] : vector<8x128xf32> to vector<8xf32>
    %609 = vector.shape_cast %608 : vector<8xf32> to vector<8x1xf32>
    %610 = vector.broadcast %6 : vector<1x1xf32> to vector<8x1xf32>
    %611 = arith.addf %609, %610 : vector<8x1xf32>
    %c0_117 = arith.constant 0 : index
    %c0_118 = arith.constant 0 : index
    %612 = vector.load %arg3[%c0_117, %c0_118] : memref<8x1xf32, #tpu.memory_space<vmem>>, vector<8x1xf32>
    tpu.vector_store %arg3[%c0_117, %c0_118], %611 {strides = array<i32>} : memref<8x1xf32, #tpu.memory_space<vmem>>, vector<8x1xf32>,
    return
  }
}

</mosaic_0001>

<llo_original>
// kernel: my_rnn_forward.1
$region0: #{my_rnn_forward.1}
  #allocation0 [shape = 'u32[]', space=smem, size = 0x4, offset = 0x4, fixed_abs, tag = 'smem constant byte address 0x4 - core index']
  #allocation1 [shape = 'u32[144,128]{1,0:T(1,128)}', space=vmem, size = 0x12000, scoped, tag = 'internal scratch']
  %s0 = inlined_call_operand.vmem [shape: f32[80,1], index: 0, kind: input, shape index: {}]
  %s1 = inlined_call_operand.hbm [shape: bf16[128,1152], index: 1, kind: input, shape index: {}]
  %s2 = inlined_call_operand.vmem [shape: f32[8,384], index: 2, kind: input, shape index: {}]
  %s3 = inlined_call_operand.vmem [shape: f32[8,1], index: 3, kind: output, shape index: {}]
  %s4 = sld [smem:[#allocation0]]
  $region26: #{my_rnn_forward.1} parent=0
    _
  %s6 = ssub.s32 1, %s4
  %s7 = scalar_select 0, %s6, %s4
  $region1: #{my_rnn_forward.1} parent=0
    #allocation2 [shape = 'u8[294912]{0}', space=vmem, size = 0x48000, scoped, tag = 'input window, operand 1, single buffered']
    #allocation3 [shape = 's32[1]{0}', space=sflag, size = 0x4, scoped, tag = 'scoped memory for my_rnn_forward.1']
    %8 = vsyncpa [#allocation3], 0
    // Predicated region
    $region2: #{my_rnn_forward.1} parent=1 // pred_check
      _
    $region3: #{my_rnn_forward.1} parent=1 // pred_check_branch
      %10 = sbr.rel (0) target = $region5
    $region4: #{my_rnn_forward.1} parent=1 // pred_region
      _
    $region5: #{my_rnn_forward.1} parent=1 // pred_fallthru
      _
    // Predicated region
    $region6: #{my_rnn_forward.1} parent=1 // pred_check
      _
    $region7: #{my_rnn_forward.1} parent=1 // pred_check_branch
      %12 = sbr.rel (0) target = $region9
    $region8: #{my_rnn_forward.1} parent=1 // pred_region
      %s14 = ssub.s32 9216, 9216
      %15 = vsyncadd [#allocation3], %s14
      %s16 = sshll.u32 [#allocation2], 4
      %s17 = int_to_ptr.vmem [resolvable:$true] %s16
      %22 = dma.hbm_to_vmem [thread:$0]  %s1, 9216, %s17, [#allocation3], 576, 576, 36
    $region9: #{my_rnn_forward.1} parent=1 // pred_fallthru
      _
    // Predicated region
    $region10: #{my_rnn_forward.1} parent=1 // pred_check
      _
    $region11: #{my_rnn_forward.1} parent=1 // pred_check_branch
      %24 = sbr.rel (0) target = $region13
    $region12: #{my_rnn_forward.1} parent=1 // pred_region
      _
    $region13: #{my_rnn_forward.1} parent=1 // pred_fallthru
      _
    // Predicated region
    $region14: #{my_rnn_forward.1} parent=1 // pred_check
      _
    $region15: #{my_rnn_forward.1} parent=1 // pred_check_branch
      %26 = sbr.rel (0) target = $region17
    $region16: #{my_rnn_forward.1} parent=1 // pred_region
      %27 = dma.done [#allocation3], 9216
    $region17: #{my_rnn_forward.1} parent=1 // pred_fallthru
      _
    %v29 = vld [vmem:[%s2] ss:$8 sm:$0x7]
    %s30 = scalar_lea.vmem %s2, 1
    %v31 = vld [vmem:[%s30] ss:$8 sm:$0x7]
    %s32 = scalar_lea.vmem %s2, 2
    %v33 = vld [vmem:[%s32] ss:$8 sm:$0x7]
    %v34 = vld [vmem:[%s2 + $0x3] ss:$0 sm:$0xff]
    %v35 = vld [vmem:[%s2 + $0xb] ss:$0 sm:$0xff]
    %v36 = vld [vmem:[%s2 + $0x13] ss:$0 sm:$0xff]
    %v37 = vld [vmem:[%s2 + $0x4] ss:$0 sm:$0xff]
    %v38 = vld [vmem:[%s0] sm:$0xff]
    %40 = vset.pattern.permute.xlu0 0
    %41 = vperm.xlu0 %40, %v38
    %v42 = vpop.permute.xlu0 %41
    %v45 = vlaneseq
    %v46 = vshrl.u32 %v45, 7
    %v47 = vsub.s32 0, %v46
    %v48 = vrot.slane %v29, %v47
    %v49 = vlaneseq
    %v50 = vshrl.u32 %v49, 7
    %v51 = vsub.s32 1, %v50
    %v52 = vrot.slane %v29, %v51
    %v53 = vlaneseq
    %v54 = vshrl.u32 %v53, 7
    %v55 = vsub.s32 2, %v54
    %v56 = vrot.slane %v29, %v55
    %v60 = vmul.f32 %v42, %v48
    %v61 = vmul.f32 %v42, %v52
    %v62 = vmul.f32 %v42, %v56
    %v64 = vlaneseq
    %v65 = vshrl.u32 %v64, 7
    %v66 = vsub.s32 0, %v65
    %v67 = vrot.slane %v31, %v66
    %v68 = vlaneseq
    %v69 = vshrl.u32 %v68, 7
    %v70 = vsub.s32 1, %v69
    %v71 = vrot.slane %v31, %v70
    %v72 = vlaneseq
    %v73 = vshrl.u32 %v72, 7
    %v74 = vsub.s32 2, %v73
    %v75 = vrot.slane %v31, %v74
    %v79 = vadd.f32 %v60, %v67
    %v80 = vadd.f32 %v61, %v71
    %v81 = vadd.f32 %v62, %v75
    %v82 = vadd.f32 %v79, 0.0
    %v83 = vadd.f32 %v80, 0.0
    %v84 = vxor.u32 %v82, 2147483648
    %v85 = vxor.u32 %v83, 2147483648
    %v86 = vmul.f32 %v84, 1.442695
    %v87 = vpow.pop %v86
    %v88 = vmul.f32 %v85, 1.442695
    %v89 = vpow.pop %v88
    %v90 = vadd.f32 %v87, 1.0
    %v91 = vadd.f32 %v89, 1.0
    %v92 = vrcp.pop %v90
    %v93 = vmul.f32 1.0, %v92
    %v94 = vrcp.pop %v91
    %v95 = vmul.f32 1.0, %v94
    %v96 = vadd.f32 %v34, 0.0
    %v97 = vmul.f32 %v93, %v96
    %v98 = vadd.f32 %v81, %v97
    %v99 = vtanh.pop %v98
    %v100 = vsub.f32 1.0, %v95
    %v101 = vmul.f32 %v100, %v99
    %v102 = vmul.f32 %v95, 0.0
    %v103 = vadd.f32 %v101, %v102
    %v104 = vpack.c.bf16 %v103, %v103
    %v105 = vld [vmem:[#allocation2] sm:$0xff]
    %v106 = vld [vmem:[#allocation2 + $0x8] sm:$0xff]
    %v107 = vld [vmem:[#allocation2 + $0x10] sm:$0xff]
    %v108 = vld [vmem:[#allocation2 + $0x24] sm:$0xff]
    %v109 = vld [vmem:[#allocation2 + $0x2c] sm:$0xff]
    %v110 = vld [vmem:[#allocation2 + $0x34] sm:$0xff]
    %v111 = vld [vmem:[#allocation2 + $0x48] sm:$0xff]
    %v112 = vld [vmem:[#allocation2 + $0x50] sm:$0xff]
    %v113 = vld [vmem:[#allocation2 + $0x58] sm:$0xff]
    %v114 = vld [vmem:[#allocation2 + $0x6c] sm:$0xff]
    %v115 = vld [vmem:[#allocation2 + $0x74] sm:$0xff]
    %v116 = vld [vmem:[#allocation2 + $0x7c] sm:$0xff]
    %v117 = vld [vmem:[#allocation2 + $0x90] sm:$0xff]
    %v118 = vld [vmem:[#allocation2 + $0x98] sm:$0xff]
    %v119 = vld [vmem:[#allocation2 + $0xa0] sm:$0xff]
    %v120 = vld [vmem:[#allocation2 + $0xb4] sm:$0xff]
    %v121 = vld [vmem:[#allocation2 + $0xbc] sm:$0xff]
    %v122 = vld [vmem:[#allocation2 + $0xc4] sm:$0xff]
    %v123 = vld [vmem:[#allocation2 + $0xd8] sm:$0xff]
    %v124 = vld [vmem:[#allocation2 + $0xe0] sm:$0xff]
    %v125 = vld [vmem:[#allocation2 + $0xe8] sm:$0xff]
    %v126 = vld [vmem:[#allocation2 + $0xfc] sm:$0xff]
    %v127 = vld [vmem:[#allocation2 + $0x104] sm:$0xff]
    %v128 = vld [vmem:[#allocation2 + $0x10c] sm:$0xff]
    %v129 = vld [vmem:[#allocation2 + $0x120] sm:$0xff]
    %v130 = vld [vmem:[#allocation2 + $0x128] sm:$0xff]
    %v131 = vld [vmem:[#allocation2 + $0x130] sm:$0xff]
    %v132 = vld [vmem:[#allocation2 + $0x144] sm:$0xff]
    %v133 = vld [vmem:[#allocation2 + $0x14c] sm:$0xff]
    %v134 = vld [vmem:[#allocation2 + $0x154] sm:$0xff]
    %v135 = vld [vmem:[#allocation2 + $0x168] sm:$0xff]
    %v136 = vld [vmem:[#allocation2 + $0x170] sm:$0xff]
    %v137 = vld [vmem:[#allocation2 + $0x178] sm:$0xff]
    %v138 = vld [vmem:[#allocation2 + $0x18c] sm:$0xff]
    %v139 = vld [vmem:[#allocation2 + $0x194] sm:$0xff]
    %v140 = vld [vmem:[#allocation2 + $0x19c] sm:$0xff]
    %v141 = vld [vmem:[#allocation2 + $0x1b0] sm:$0xff]
    %v142 = vld [vmem:[#allocation2 + $0x1b8] sm:$0xff]
    %v143 = vld [vmem:[#allocation2 + $0x1c0] sm:$0xff]
    %v144 = vld [vmem:[#allocation2 + $0x1d4] sm:$0xff]
    %v145 = vld [vmem:[#allocation2 + $0x1dc] sm:$0xff]
    %v146 = vld [vmem:[#allocation2 + $0x1e4] sm:$0xff]
    %v147 = vld [vmem:[#allocation2 + $0x1f8] sm:$0xff]
    %v148 = vld [vmem:[#allocation2 + $0x200] sm:$0xff]
    %v149 = vld [vmem:[#allocation2 + $0x208] sm:$0xff]
    %v150 = vld [vmem:[#allocation2 + $0x21c] sm:$0xff]
    %v151 = vld [vmem:[#allocation2 + $0x224] sm:$0xff]
    %v152 = vld [vmem:[#allocation2 + $0x22c] sm:$0xff]
    %v201 = vunpack.c.l.b16 %v105
    %v202 = vunpack.c.h.b16 %v105
    %v203 = vunpack.c.l.b16 %v106
    %v204 = vunpack.c.h.b16 %v106
    %v205 = vunpack.c.l.b16 %v107
    %v206 = vunpack.c.h.b16 %v107
    %v207 = vunpack.c.l.b16 %v108
    %v208 = vunpack.c.h.b16 %v108
    %v209 = vunpack.c.l.b16 %v109
    %v210 = vunpack.c.h.b16 %v109
    %v211 = vunpack.c.l.b16 %v110
    %v212 = vunpack.c.h.b16 %v110
    %v213 = vunpack.c.l.b16 %v111
    %v214 = vunpack.c.h.b16 %v111
    %v215 = vunpack.c.l.b16 %v112
    %v216 = vunpack.c.h.b16 %v112
    %v217 = vunpack.c.l.b16 %v113
    %v218 = vunpack.c.h.b16 %v113
    %v219 = vunpack.c.l.b16 %v114
    %v220 = vunpack.c.h.b16 %v114
    %v221 = vunpack.c.l.b16 %v115
    %v222 = vunpack.c.h.b16 %v115
    %v223 = vunpack.c.l.b16 %v116
    %v224 = vunpack.c.h.b16 %v116
    %v225 = vunpack.c.l.b16 %v117
    %v226 = vunpack.c.h.b16 %v117
    %v227 = vunpack.c.l.b16 %v118
    %v228 = vunpack.c.h.b16 %v118
    %v229 = vunpack.c.l.b16 %v119
    %v230 = vunpack.c.h.b16 %v119
    %v231 = vunpack.c.l.b16 %v120
    %v232 = vunpack.c.h.b16 %v120
    %v233 = vunpack.c.l.b16 %v121
    %v234 = vunpack.c.h.b16 %v121
    %v235 = vunpack.c.l.b16 %v122
    %v236 = vunpack.c.h.b16 %v122
    %v237 = vunpack.c.l.b16 %v123
    %v238 = vunpack.c.h.b16 %v123
    %v239 = vunpack.c.l.b16 %v124
    %v240 = vunpack.c.h.b16 %v124
    %v241 = vunpack.c.l.b16 %v125
    %v242 = vunpack.c.h.b16 %v125
    %v243 = vunpack.c.l.b16 %v126
    %v244 = vunpack.c.h.b16 %v126
    %v245 = vunpack.c.l.b16 %v127
    %v246 = vunpack.c.h.b16 %v127
    %v247 = vunpack.c.l.b16 %v128
    %v248 = vunpack.c.h.b16 %v128
    %v249 = vunpack.c.l.b16 %v129
    %v250 = vunpack.c.h.b16 %v129
    %v251 = vunpack.c.l.b16 %v130
    %v252 = vunpack.c.h.b16 %v130
    %v253 = vunpack.c.l.b16 %v131
    %v254 = vunpack.c.h.b16 %v131
    %v255 = vunpack.c.l.b16 %v132
    %v256 = vunpack.c.h.b16 %v132
    %v257 = vunpack.c.l.b16 %v133
    %v258 = vunpack.c.h.b16 %v133
    %v259 = vunpack.c.l.b16 %v134
    %v260 = vunpack.c.h.b16 %v134
    %v261 = vunpack.c.l.b16 %v135
    %v262 = vunpack.c.h.b16 %v135
    %v263 = vunpack.c.l.b16 %v136
    %v264 = vunpack.c.h.b16 %v136
    %v265 = vunpack.c.l.b16 %v137
    %v266 = vunpack.c.h.b16 %v137
    %v267 = vunpack.c.l.b16 %v138
    %v268 = vunpack.c.h.b16 %v138
    %v269 = vunpack.c.l.b16 %v139
    %v270 = vunpack.c.h.b16 %v139
    %v271 = vunpack.c.l.b16 %v140
    %v272 = vunpack.c.h.b16 %v140
    %v273 = vunpack.c.l.b16 %v141
    %v274 = vunpack.c.h.b16 %v141
    %v275 = vunpack.c.l.b16 %v142
    %v276 = vunpack.c.h.b16 %v142
    %v277 = vunpack.c.l.b16 %v143
    %v278 = vunpack.c.h.b16 %v143
    %v279 = vunpack.c.l.b16 %v144
    %v280 = vunpack.c.h.b16 %v144
    %v281 = vunpack.c.l.b16 %v145
    %v282 = vunpack.c.h.b16 %v145
    %v283 = vunpack.c.l.b16 %v146
    %v284 = vunpack.c.h.b16 %v146
    %v285 = vunpack.c.l.b16 %v147
    %v286 = vunpack.c.h.b16 %v147
    %v287 = vunpack.c.l.b16 %v148
    %v288 = vunpack.c.h.b16 %v148
    %v289 = vunpack.c.l.b16 %v149
    %v290 = vunpack.c.h.b16 %v149
    %v291 = vunpack.c.l.b16 %v150
    %v292 = vunpack.c.h.b16 %v150
    %v293 = vunpack.c.l.b16 %v151
    %v294 = vunpack.c.h.b16 %v151
    %v295 = vunpack.c.l.b16 %v152
    %v296 = vunpack.c.h.b16 %v152
    %v297 = vpack.c.b16 %v207, %v201
    %v298 = vpack.c.b16 %v208, %v202
    %v299 = vpack.c.b16 %v209, %v203
    %v300 = vpack.c.b16 %v210, %v204
    %v301 = vpack.c.b16 %v211, %v205
    %v302 = vpack.c.b16 %v212, %v206
    %v303 = vpack.c.b16 %v219, %v213
    %v304 = vpack.c.b16 %v220, %v214
    %v305 = vpack.c.b16 %v221, %v215
    %v306 = vpack.c.b16 %v222, %v216
    %v307 = vpack.c.b16 %v223, %v217
    %v308 = vpack.c.b16 %v224, %v218
    %v309 = vpack.c.b16 %v231, %v225
    %v310 = vpack.c.b16 %v232, %v226
    %v311 = vpack.c.b16 %v233, %v227
    %v312 = vpack.c.b16 %v234, %v228
    %v313 = vpack.c.b16 %v235, %v229
    %v314 = vpack.c.b16 %v236, %v230
    %v315 = vpack.c.b16 %v243, %v237
    %v316 = vpack.c.b16 %v244, %v238
    %v317 = vpack.c.b16 %v245, %v239
    %v318 = vpack.c.b16 %v246, %v240
    %v319 = vpack.c.b16 %v247, %v241
    %v320 = vpack.c.b16 %v248, %v242
    %v321 = vpack.c.b16 %v255, %v249
    %v322 = vpack.c.b16 %v256, %v250
    %v323 = vpack.c.b16 %v257, %v251
    %v324 = vpack.c.b16 %v258, %v252
    %v325 = vpack.c.b16 %v259, %v253
    %v326 = vpack.c.b16 %v260, %v254
    %v327 = vpack.c.b16 %v267, %v261
    %v328 = vpack.c.b16 %v268, %v262
    %v329 = vpack.c.b16 %v269, %v263
    %v330 = vpack.c.b16 %v270, %v264
    %v331 = vpack.c.b16 %v271, %v265
    %v332 = vpack.c.b16 %v272, %v266
    %v333 = vpack.c.b16 %v279, %v273
    %v334 = vpack.c.b16 %v280, %v274
    %v335 = vpack.c.b16 %v281, %v275
    %v336 = vpack.c.b16 %v282, %v276
    %v337 = vpack.c.b16 %v283, %v277
    %v338 = vpack.c.b16 %v284, %v278
    %v339 = vpack.c.b16 %v291, %v285
    %v340 = vpack.c.b16 %v292, %v286
    %v341 = vpack.c.b16 %v293, %v287
    %v342 = vpack.c.b16 %v294, %v288
    %v343 = vpack.c.b16 %v295, %v289
    %v344 = vpack.c.b16 %v296, %v290
    %393 = vmatprep.subr.bf16.mxu0 %v298
    %394 = vmatpush1.bf16.msra.mxu0 %v297
    %395 = vmatprep.subr.bf16.mxu0 %v304
    %396 = vmatpush1.bf16.msra.mxu0 %v303
    %397 = vmatprep.subr.bf16.mxu0 %v310
    %398 = vmatpush1.bf16.msra.mxu0 %v309
    %399 = vmatprep.subr.bf16.mxu0 %v316
    %400 = vmatpush1.bf16.msra.mxu0 %v315
    %401 = vmatprep.subr.bf16.mxu0 %v322
    %402 = vmatpush1.bf16.msra.mxu0 %v321
    %403 = vmatprep.subr.bf16.mxu0 %v328
    %404 = vmatpush1.bf16.msra.mxu0 %v327
    %405 = vmatprep.subr.bf16.mxu0 %v334
    %406 = vmatpush1.bf16.msra.mxu0 %v333
    %407 = vmatprep.subr.bf16.mxu0 %v340
    %408 = vmatpush1.bf16.msra.mxu0 %v339
    %409 = vmatprep.subr.bf16.mxu0 0
    %410 = vmatpush1.bf16.msra.mxu0 0
    %411 = vmatprep.subr.bf16.mxu0 0
    %412 = vmatpush1.bf16.msra.mxu0 0
    %413 = vmatprep.subr.bf16.mxu0 0
    %414 = vmatpush1.bf16.msra.mxu0 0
    %415 = vmatprep.subr.bf16.mxu0 0
    %416 = vmatpush1.bf16.msra.mxu0 0
    %417 = vmatprep.subr.bf16.mxu0 0
    %418 = vmatpush1.bf16.msra.mxu0 0
    %419 = vmatprep.subr.bf16.mxu0 0
    %420 = vmatpush1.bf16.msra.mxu0 0
    %421 = vmatprep.subr.bf16.mxu0 0
    %422 = vmatpush1.bf16.msra.mxu0 0
    %423 = vmatprep.subr.bf16.mxu0 0
    %424 = vmatpush1.bf16.msra.mxu0 0
    %425 = vmatprep.mubr.bf16.mxu0 0
    %426 = vmatmul.mubr.bf16.gmra.mrb[0].mxu0 %v104
    %v427 = vpop.f32.mrb[0].mxu0
    %v428 = vadd.f32 0.0, %v427
    %v429 = vpop.f32.mrb[0].mxu0
    %v430 = vadd.f32 0.0, %v429
    %v431 = vpop.f32.mrb[0].mxu0
    %v432 = vpop.f32.mrb[0].mxu0
    %433 = vdwg.mxu0
    %434 = vmatprep.subr.bf16.mxu0 %v300
    %435 = vmatpush1.bf16.msra.mxu0 %v299
    %436 = vmatprep.subr.bf16.mxu0 %v306
    %437 = vmatpush1.bf16.msra.mxu0 %v305
    %438 = vmatprep.subr.bf16.mxu0 %v312
    %439 = vmatpush1.bf16.msra.mxu0 %v311
    %440 = vmatprep.subr.bf16.mxu0 %v318
    %441 = vmatpush1.bf16.msra.mxu0 %v317
    %442 = vmatprep.subr.bf16.mxu0 %v324
    %443 = vmatpush1.bf16.msra.mxu0 %v323
    %444 = vmatprep.subr.bf16.mxu0 %v330
    %445 = vmatpush1.bf16.msra.mxu0 %v329
    %446 = vmatprep.subr.bf16.mxu0 %v336
    %447 = vmatpush1.bf16.msra.mxu0 %v335
    %448 = vmatprep.subr.bf16.mxu0 %v342
    %449 = vmatpush1.bf16.msra.mxu0 %v341
    %450 = vmatprep.subr.bf16.mxu0 0
    %451 = vmatpush1.bf16.msra.mxu0 0
    %452 = vmatprep.subr.bf16.mxu0 0
    %453 = vmatpush1.bf16.msra.mxu0 0
    %454 = vmatprep.subr.bf16.mxu0 0
    %455 = vmatpush1.bf16.msra.mxu0 0
    %456 = vmatprep.subr.bf16.mxu0 0
    %457 = vmatpush1.bf16.msra.mxu0 0
    %458 = vmatprep.subr.bf16.mxu0 0
    %459 = vmatpush1.bf16.msra.mxu0 0
    %460 = vmatprep.subr.bf16.mxu0 0
    %461 = vmatpush1.bf16.msra.mxu0 0
    %462 = vmatprep.subr.bf16.mxu0 0
    %463 = vmatpush1.bf16.msra.mxu0 0
    %464 = vmatprep.subr.bf16.mxu0 0
    %465 = vmatpush1.bf16.msra.mxu0 0
    %466 = vmatprep.mubr.bf16.mxu0 0
    %467 = vmatmul.mubr.bf16.gmra.mrb[0].mxu0 %v104
    %v468 = vpop.f32.mrb[0].mxu0
    %v469 = vadd.f32 0.0, %v468
    %v470 = vpop.f32.mrb[0].mxu0
    %v471 = vadd.f32 0.0, %v470
    %v472 = vpop.f32.mrb[0].mxu0
    %v473 = vpop.f32.mrb[0].mxu0
    %474 = vdwg.mxu0
    %475 = vmatprep.subr.bf16.mxu0 %v302
    %476 = vmatpush1.bf16.msra.mxu0 %v301
    %477 = vmatprep.subr.bf16.mxu0 %v308
    %478 = vmatpush1.bf16.msra.mxu0 %v307
    %479 = vmatprep.subr.bf16.mxu0 %v314
    %480 = vmatpush1.bf16.msra.mxu0 %v313
    %481 = vmatprep.subr.bf16.mxu0 %v320
    %482 = vmatpush1.bf16.msra.mxu0 %v319
    %483 = vmatprep.subr.bf16.mxu0 %v326
    %484 = vmatpush1.bf16.msra.mxu0 %v325
    %485 = vmatprep.subr.bf16.mxu0 %v332
    %486 = vmatpush1.bf16.msra.mxu0 %v331
    %487 = vmatprep.subr.bf16.mxu0 %v338
    %488 = vmatpush1.bf16.msra.mxu0 %v337
    %489 = vmatprep.subr.bf16.mxu0 %v344
    %490 = vmatpush1.bf16.msra.mxu0 %v343
    %491 = vmatprep.subr.bf16.mxu0 0
    %492 = vmatpush1.bf16.msra.mxu0 0
    %493 = vmatprep.subr.bf16.mxu0 0
    %494 = vmatpush1.bf16.msra.mxu0 0
    %495 = vmatprep.subr.bf16.mxu0 0
    %496 = vmatpush1.bf16.msra.mxu0 0
    %497 = vmatprep.subr.bf16.mxu0 0
    %498 = vmatpush1.bf16.msra.mxu0 0
    %499 = vmatprep.subr.bf16.mxu0 0
    %500 = vmatpush1.bf16.msra.mxu0 0
    %501 = vmatprep.subr.bf16.mxu0 0
    %502 = vmatpush1.bf16.msra.mxu0 0
    %503 = vmatprep.subr.bf16.mxu0 0
    %504 = vmatpush1.bf16.msra.mxu0 0
    %505 = vmatprep.subr.bf16.mxu0 0
    %506 = vmatpush1.bf16.msra.mxu0 0
    %507 = vmatprep.mubr.bf16.mxu0 0
    %508 = vmatmul.mubr.bf16.gmra.mrb[0].mxu0 %v104
    %v509 = vpop.f32.mrb[0].mxu0
    %v510 = vadd.f32 0.0, %v509
    %v511 = vpop.f32.mrb[0].mxu0
    %v512 = vadd.f32 0.0, %v511
    %v513 = vpop.f32.mrb[0].mxu0
    %v514 = vpop.f32.mrb[0].mxu0
    %515 = vdwg.mxu0
    %v517 = vlaneseq
    %v518 = vshrl.u32 %v517, 7
    %v519 = vsub.s32 0, %v518
    %v520 = vrot.slane %v33, %v519
    %v521 = vlaneseq
    %v522 = vshrl.u32 %v521, 7
    %v523 = vsub.s32 1, %v522
    %v524 = vrot.slane %v33, %v523
    %v525 = vlaneseq
    %v526 = vshrl.u32 %v525, 7
    %v527 = vsub.s32 2, %v526
    %v528 = vrot.slane %v33, %v527
    %v532 = vadd.f32 %v471, %v520
    %v533 = vadd.f32 %v510, %v524
    %v534 = vadd.f32 %v512, %v528
    %v535 = vadd.f32 %v532, 0.0
    %v536 = vadd.f32 %v533, 0.0
    %v537 = vxor.u32 %v535, 2147483648
    %v538 = vxor.u32 %v536, 2147483648
    %v539 = vmul.f32 %v537, 1.442695
    %v540 = vpow.pop %v539
    %v541 = vmul.f32 %v538, 1.442695
    %v542 = vpow.pop %v541
    %v543 = vadd.f32 %v540, 1.0
    %v544 = vadd.f32 %v542, 1.0
    %v545 = vrcp.pop %v543
    %v546 = vmul.f32 1.0, %v545
    %v547 = vrcp.pop %v544
    %v548 = vmul.f32 1.0, %v547
    %v549 = vadd.f32 %v35, 0.0
    %v550 = vmul.f32 %v546, %v549
    %v551 = vadd.f32 %v534, %v550
    %v552 = vtanh.pop %v551
    %v553 = vsub.f32 1.0, %v548
    %v554 = vmul.f32 %v553, %v552
    %v555 = vmul.f32 %v548, 0.0
    %v556 = vadd.f32 %v554, %v555
    %v557 = vld [vmem:[%s0 + $0x8] sm:$0xff]
    %559 = vset.pattern.permute.xlu0 0
    %560 = vperm.xlu0 %559, %v557
    %v561 = vpop.permute.xlu0 %560
    %v563 = vmul.f32 %v561, %v48
    %v564 = vmul.f32 %v561, %v52
    %v565 = vmul.f32 %v561, %v56
    %v566 = vadd.f32 %v563, %v67
    %v567 = vadd.f32 %v564, %v71
    %v568 = vadd.f32 %v565, %v75
    %v569 = vadd.f32 %v566, %v428
    %v570 = vadd.f32 %v567, %v430
    %v571 = vxor.u32 %v569, 2147483648
    %v572 = vxor.u32 %v570, 2147483648
    %v573 = vmul.f32 %v571, 1.442695
    %v574 = vpow.pop %v573
    %v575 = vmul.f32 %v572, 1.442695
    %v576 = vpow.pop %v575
    %v577 = vadd.f32 %v574, 1.0
    %v578 = vadd.f32 %v576, 1.0
    %v579 = vrcp.pop %v577
    %v580 = vmul.f32 1.0, %v579
    %v581 = vrcp.pop %v578
    %v582 = vmul.f32 1.0, %v581
    %v583 = vadd.f32 %v469, %v34
    %v584 = vmul.f32 %v580, %v583
    %v585 = vadd.f32 %v568, %v584
    %v586 = vtanh.pop %v585
    %v587 = vsub.f32 1.0, %v582
    %v588 = vmul.f32 %v587, %v586
    %v589 = vmul.f32 %v582, %v103
    %v590 = vadd.f32 %v588, %v589
    %v591 = vpack.c.bf16 %v590, %v590
    %592 = vmatprep.subr.bf16.mxu0 %v298
    %593 = vmatpush1.bf16.msra.mxu0 %v297
    %594 = vmatprep.subr.bf16.mxu0 %v304
    %595 = vmatpush1.bf16.msra.mxu0 %v303
    %596 = vmatprep.subr.bf16.mxu0 %v310
    %597 = vmatpush1.bf16.msra.mxu0 %v309
    %598 = vmatprep.subr.bf16.mxu0 %v316
    %599 = vmatpush1.bf16.msra.mxu0 %v315
    %600 = vmatprep.subr.bf16.mxu0 %v322
    %601 = vmatpush1.bf16.msra.mxu0 %v321
    %602 = vmatprep.subr.bf16.mxu0 %v328
    %603 = vmatpush1.bf16.msra.mxu0 %v327
    %604 = vmatprep.subr.bf16.mxu0 %v334
    %605 = vmatpush1.bf16.msra.mxu0 %v333
    %606 = vmatprep.subr.bf16.mxu0 %v340
    %607 = vmatpush1.bf16.msra.mxu0 %v339
    %608 = vmatprep.subr.bf16.mxu0 0
    %609 = vmatpush1.bf16.msra.mxu0 0
    %610 = vmatprep.subr.bf16.mxu0 0
    %611 = vmatpush1.bf16.msra.mxu0 0
    %612 = vmatprep.subr.bf16.mxu0 0
    %613 = vmatpush1.bf16.msra.mxu0 0
    %614 = vmatprep.subr.bf16.mxu0 0
    %615 = vmatpush1.bf16.msra.mxu0 0
    %616 = vmatprep.subr.bf16.mxu0 0
    %617 = vmatpush1.bf16.msra.mxu0 0
    %618 = vmatprep.subr.bf16.mxu0 0
    %619 = vmatpush1.bf16.msra.mxu0 0
    %620 = vmatprep.subr.bf16.mxu0 0
    %621 = vmatpush1.bf16.msra.mxu0 0
    %622 = vmatprep.subr.bf16.mxu0 0
    %623 = vmatpush1.bf16.msra.mxu0 0
    %624 = vmatprep.mubr.bf16.mxu0 0
    %625 = vmatmul.mubr.bf16.gmra.mrb[0].mxu0 %v591
    %v626 = vpop.f32.mrb[0].mxu0
    %v627 = vadd.f32 0.0, %v626
    %v628 = vpop.f32.mrb[0].mxu0
    %v629 = vadd.f32 0.0, %v628
    %v630 = vpop.f32.mrb[0].mxu0
    %v631 = vpop.f32.mrb[0].mxu0
    %632 = vdwg.mxu0
    %633 = vmatprep.subr.bf16.mxu0 %v300
    %634 = vmatpush1.bf16.msra.mxu0 %v299
    %635 = vmatprep.subr.bf16.mxu0 %v306
    %636 = vmatpush1.bf16.msra.mxu0 %v305
    %637 = vmatprep.subr.bf16.mxu0 %v312
    %638 = vmatpush1.bf16.msra.mxu0 %v311
    %639 = vmatprep.subr.bf16.mxu0 %v318
    %640 = vmatpush1.bf16.msra.mxu0 %v317
    %641 = vmatprep.subr.bf16.mxu0 %v324
    %642 = vmatpush1.bf16.msra.mxu0 %v323
    %643 = vmatprep.subr.bf16.mxu0 %v330
    %644 = vmatpush1.bf16.msra.mxu0 %v329
    %645 = vmatprep.subr.bf16.mxu0 %v336
    %646 = vmatpush1.bf16.msra.mxu0 %v335
    %647 = vmatprep.subr.bf16.mxu0 %v342
    %648 = vmatpush1.bf16.msra.mxu0 %v341
    %649 = vmatprep.subr.bf16.mxu0 0
    %650 = vmatpush1.bf16.msra.mxu0 0
    %651 = vmatprep.subr.bf16.mxu0 0
    %652 = vmatpush1.bf16.msra.mxu0 0
    %653 = vmatprep.subr.bf16.mxu0 0
    %654 = vmatpush1.bf16.msra.mxu0 0
    %655 = vmatprep.subr.bf16.mxu0 0
    %656 = vmatpush1.bf16.msra.mxu0 0
    %657 = vmatprep.subr.bf16.mxu0 0
    %658 = vmatpush1.bf16.msra.mxu0 0
    %659 = vmatprep.subr.bf16.mxu0 0
    %660 = vmatpush1.bf16.msra.mxu0 0
    %661 = vmatprep.subr.bf16.mxu0 0
    %662 = vmatpush1.bf16.msra.mxu0 0
    %663 = vmatprep.subr.bf16.mxu0 0
    %664 = vmatpush1.bf16.msra.mxu0 0
    %665 = vmatprep.mubr.bf16.mxu0 0
    %666 = vmatmul.mubr.bf16.gmra.mrb[0].mxu0 %v591
    %v667 = vpop.f32.mrb[0].mxu0
    %v668 = vadd.f32 0.0, %v667
    %v669 = vpop.f32.mrb[0].mxu0
    %v670 = vadd.f32 0.0, %v669
    %v671 = vpop.f32.mrb[0].mxu0
    %v672 = vpop.f32.mrb[0].mxu0
    %673 = vdwg.mxu0
    %674 = vmatprep.subr.bf16.mxu0 %v302
    %675 = vmatpush1.bf16.msra.mxu0 %v301
    %676 = vmatprep.subr.bf16.mxu0 %v308
    %677 = vmatpush1.bf16.msra.mxu0 %v307
    %678 = vmatprep.subr.bf16.mxu0 %v314
    %679 = vmatpush1.bf16.msra.mxu0 %v313
    %680 = vmatprep.subr.bf16.mxu0 %v320
    %681 = vmatpush1.bf16.msra.mxu0 %v319
    %682 = vmatprep.subr.bf16.mxu0 %v326
    %683 = vmatpush1.bf16.msra.mxu0 %v325
    %684 = vmatprep.subr.bf16.mxu0 %v332
    %685 = vmatpush1.bf16.msra.mxu0 %v331
    %686 = vmatprep.subr.bf16.mxu0 %v338
    %687 = vmatpush1.bf16.msra.mxu0 %v337
    %688 = vmatprep.subr.bf16.mxu0 %v344
    %689 = vmatpush1.bf16.msra.mxu0 %v343
    %690 = vmatprep.subr.bf16.mxu0 0
    %691 = vmatpush1.bf16.msra.mxu0 0
    %692 = vmatprep.subr.bf16.mxu0 0
    %693 = vmatpush1.bf16.msra.mxu0 0
    %694 = vmatprep.subr.bf16.mxu0 0
    %695 = vmatpush1.bf16.msra.mxu0 0
    %696 = vmatprep.subr.bf16.mxu0 0
    %697 = vmatpush1.bf16.msra.mxu0 0
    %698 = vmatprep.subr.bf16.mxu0 0
    %699 = vmatpush1.bf16.msra.mxu0 0
    %700 = vmatprep.subr.bf16.mxu0 0
    %701 = vmatpush1.bf16.msra.mxu0 0
    %702 = vmatprep.subr.bf16.mxu0 0
    %703 = vmatpush1.bf16.msra.mxu0 0
    %704 = vmatprep.subr.bf16.mxu0 0
    %705 = vmatpush1.bf16.msra.mxu0 0
    %706 = vmatprep.mubr.bf16.mxu0 0
    %707 = vmatmul.mubr.bf16.gmra.mrb[0].mxu0 %v591
    %v708 = vpop.f32.mrb[0].mxu0
    %v709 = vadd.f32 0.0, %v708
    %v710 = vpop.f32.mrb[0].mxu0
    %v711 = vadd.f32 0.0, %v710
    %v712 = vpop.f32.mrb[0].mxu0
    %v713 = vpop.f32.mrb[0].mxu0
    %714 = vdwg.mxu0
    %v715 = vadd.f32 %v670, %v520
    %v716 = vadd.f32 %v709, %v524
    %v717 = vadd.f32 %v711, %v528
    %v718 = vpack.c.bf16 %v556, %v556
    %v719 = vld [vmem:[#allocation2 + $0x18] sm:$0xff]
    %v720 = vld [vmem:[#allocation2 + $0x20] sm:$0xf]
    %v721 = vld [vmem:[#allocation2 + $0x3c] sm:$0xff]
    %v722 = vld [vmem:[#allocation2 + $0x44] sm:$0xf]
    %v723 = vld [vmem:[#allocation2 + $0x60] sm:$0xff]
    %v724 = vld [vmem:[#allocation2 + $0x68] sm:$0xf]
    %v725 = vld [vmem:[#allocation2 + $0x84] sm:$0xff]
    %v726 = vld [vmem:[#allocation2 + $0x8c] sm:$0xf]
    %v727 = vld [vmem:[#allocation2 + $0xa8] sm:$0xff]
    %v728 = vld [vmem:[#allocation2 + $0xb0] sm:$0xf]
    %v729 = vld [vmem:[#allocation2 + $0xcc] sm:$0xff]
    %v730 = vld [vmem:[#allocation2 + $0xd4] sm:$0xf]
    %v731 = vld [vmem:[#allocation2 + $0xf0] sm:$0xff]
    %v732 = vld [vmem:[#allocation2 + $0xf8] sm:$0xf]
    %v733 = vld [vmem:[#allocation2 + $0x114] sm:$0xff]
    %v734 = vld [vmem:[#allocation2 + $0x11c] sm:$0xf]
    %v735 = vld [vmem:[#allocation2 + $0x138] sm:$0xff]
    %v736 = vld [vmem:[#allocation2 + $0x140] sm:$0xf]
    %v737 = vld [vmem:[#allocation2 + $0x15c] sm:$0xff]
    %v738 = vld [vmem:[#allocation2 + $0x164] sm:$0xf]
    %v739 = vld [vmem:[#allocation2 + $0x180] sm:$0xff]
    %v740 = vld [vmem:[#allocation2 + $0x188] sm:$0xf]
    %v741 = vld [vmem:[#allocation2 + $0x1a4] sm:$0xff]
    %v742 = vld [vmem:[#allocation2 + $0x1ac] sm:$0xf]
    %v743 = vld [vmem:[#allocation2 + $0x1c8] sm:$0xff]
    %v744 = vld [vmem:[#allocation2 + $0x1d0] sm:$0xf]
    %v745 = vld [vmem:[#allocation2 + $0x1ec] sm:$0xff]
    %v746 = vld [vmem:[#allocation2 + $0x1f4] sm:$0xf]
    %v747 = vld [vmem:[#allocation2 + $0x210] sm:$0xff]
    %v748 = vld [vmem:[#allocation2 + $0x218] sm:$0xf]
    %v749 = vld [vmem:[#allocation2 + $0x234] sm:$0xff]
    %v750 = vld [vmem:[#allocation2 + $0x23c] sm:$0xf]
    %v783 = vunpack.c.l.b16 %v719
    %v784 = vunpack.c.h.b16 %v719
    %v785 = vunpack.c.l.b16 %v720
    %v786 = vunpack.c.l.b16 %v721
    %v787 = vunpack.c.h.b16 %v721
    %v788 = vunpack.c.l.b16 %v722
    %v789 = vunpack.c.l.b16 %v723
    %v790 = vunpack.c.h.b16 %v723
    %v791 = vunpack.c.l.b16 %v724
    %v792 = vunpack.c.l.b16 %v725
    %v793 = vunpack.c.h.b16 %v725
    %v794 = vunpack.c.l.b16 %v726
    %v795 = vunpack.c.l.b16 %v727
    %v796 = vunpack.c.h.b16 %v727
    %v797 = vunpack.c.l.b16 %v728
    %v798 = vunpack.c.l.b16 %v729
    %v799 = vunpack.c.h.b16 %v729
    %v800 = vunpack.c.l.b16 %v730
    %v801 = vunpack.c.l.b16 %v731
    %v802 = vunpack.c.h.b16 %v731
    %v803 = vunpack.c.l.b16 %v732
    %v804 = vunpack.c.l.b16 %v733
    %v805 = vunpack.c.h.b16 %v733
    %v806 = vunpack.c.l.b16 %v734
    %v807 = vunpack.c.l.b16 %v735
    %v808 = vunpack.c.h.b16 %v735
    %v809 = vunpack.c.l.b16 %v736
    %v810 = vunpack.c.l.b16 %v737
    %v811 = vunpack.c.h.b16 %v737
    %v812 = vunpack.c.l.b16 %v738
    %v813 = vunpack.c.l.b16 %v739
    %v814 = vunpack.c.h.b16 %v739
    %v815 = vunpack.c.l.b16 %v740
    %v816 = vunpack.c.l.b16 %v741
    %v817 = vunpack.c.h.b16 %v741
    %v818 = vunpack.c.l.b16 %v742
    %v819 = vunpack.c.l.b16 %v743
    %v820 = vunpack.c.h.b16 %v743
    %v821 = vunpack.c.l.b16 %v744
    %v822 = vunpack.c.l.b16 %v745
    %v823 = vunpack.c.h.b16 %v745
    %v824 = vunpack.c.l.b16 %v746
    %v825 = vunpack.c.l.b16 %v747
    %v826 = vunpack.c.h.b16 %v747
    %v827 = vunpack.c.l.b16 %v748
    %v828 = vunpack.c.l.b16 %v749
    %v829 = vunpack.c.h.b16 %v749
    %v830 = vunpack.c.l.b16 %v750
    %v831 = vpack.c.b16 %v786, %v783
    %v832 = vpack.c.b16 %v787, %v784
    %v833 = vpack.c.b16 %v788, %v785
    %v834 = vpack.c.b16 %v792, %v789
    %v835 = vpack.c.b16 %v793, %v790
    %v836 = vpack.c.b16 %v794, %v791
    %v837 = vpack.c.b16 %v798, %v795
    %v838 = vpack.c.b16 %v799, %v796
    %v839 = vpack.c.b16 %v800, %v797
    %v840 = vpack.c.b16 %v804, %v801
    %v841 = vpack.c.b16 %v805, %v802
    %v842 = vpack.c.b16 %v806, %v803
    %v843 = vpack.c.b16 %v810, %v807
    %v844 = vpack.c.b16 %v811, %v808
    %v845 = vpack.c.b16 %v812, %v809
    %v846 = vpack.c.b16 %v816, %v813
    %v847 = vpack.c.b16 %v817, %v814
    %v848 = vpack.c.b16 %v818, %v815
    %v849 = vpack.c.b16 %v822, %v819
    %v850 = vpack.c.b16 %v823, %v820
    %v851 = vpack.c.b16 %v824, %v821
    %v852 = vpack.c.b16 %v828, %v825
    %v853 = vpack.c.b16 %v829, %v826
    %v854 = vpack.c.b16 %v830, %v827
    %879 = vmatprep.subr.bf16.mxu0 %v832
    %880 = vmatpush1.bf16.msra.mxu0 %v831
    %881 = vmatprep.subr.bf16.mxu0 %v835
    %882 = vmatpush1.bf16.msra.mxu0 %v834
    %883 = vmatprep.subr.bf16.mxu0 %v838
    %884 = vmatpush1.bf16.msra.mxu0 %v837
    %885 = vmatprep.subr.bf16.mxu0 %v841
    %886 = vmatpush1.bf16.msra.mxu0 %v840
    %887 = vmatprep.subr.bf16.mxu0 %v844
    %888 = vmatpush1.bf16.msra.mxu0 %v843
    %889 = vmatprep.subr.bf16.mxu0 %v847
    %890 = vmatpush1.bf16.msra.mxu0 %v846
    %891 = vmatprep.subr.bf16.mxu0 %v850
    %892 = vmatpush1.bf16.msra.mxu0 %v849
    %893 = vmatprep.subr.bf16.mxu0 %v853
    %894 = vmatpush1.bf16.msra.mxu0 %v852
    %895 = vmatprep.subr.bf16.mxu0 0
    %896 = vmatpush1.bf16.msra.mxu0 0
    %897 = vmatprep.subr.bf16.mxu0 0
    %898 = vmatpush1.bf16.msra.mxu0 0
    %899 = vmatprep.subr.bf16.mxu0 0
    %900 = vmatpush1.bf16.msra.mxu0 0
    %901 = vmatprep.subr.bf16.mxu0 0
    %902 = vmatpush1.bf16.msra.mxu0 0
    %903 = vmatprep.subr.bf16.mxu0 0
    %904 = vmatpush1.bf16.msra.mxu0 0
    %905 = vmatprep.subr.bf16.mxu0 0
    %906 = vmatpush1.bf16.msra.mxu0 0
    %907 = vmatprep.subr.bf16.mxu0 0
    %908 = vmatpush1.bf16.msra.mxu0 0
    %909 = vmatprep.subr.bf16.mxu0 0
    %910 = vmatpush1.bf16.msra.mxu0 0
    %911 = vmatprep.mubr.bf16.mxu0 0
    %912 = vmatmul.mubr.bf16.gmra.mrb[0].mxu0 %v718
    %v913 = vpop.f32.mrb[0].mxu0
    %v914 = vadd.f32 0.0, %v913
    %v915 = vpop.f32.mrb[0].mxu0
    %v916 = vadd.f32 0.0, %v915
    %v917 = vpop.f32.mrb[0].mxu0
    %v918 = vpop.f32.mrb[0].mxu0
    %919 = vdwg.mxu0
    %920 = vmatprep.subr.bf16.mxu0 0
    %921 = vmatpush1.bf16.msra.mxu0 %v833
    %922 = vmatprep.subr.bf16.mxu0 0
    %923 = vmatpush1.bf16.msra.mxu0 %v836
    %924 = vmatprep.subr.bf16.mxu0 0
    %925 = vmatpush1.bf16.msra.mxu0 %v839
    %926 = vmatprep.subr.bf16.mxu0 0
    %927 = vmatpush1.bf16.msra.mxu0 %v842
    %928 = vmatprep.subr.bf16.mxu0 0
    %929 = vmatpush1.bf16.msra.mxu0 %v845
    %930 = vmatprep.subr.bf16.mxu0 0
    %931 = vmatpush1.bf16.msra.mxu0 %v848
    %932 = vmatprep.subr.bf16.mxu0 0
    %933 = vmatpush1.bf16.msra.mxu0 %v851
    %934 = vmatprep.subr.bf16.mxu0 0
    %935 = vmatpush1.bf16.msra.mxu0 %v854
    %936 = vmatprep.subr.bf16.mxu0 0
    %937 = vmatpush1.bf16.msra.mxu0 0
    %938 = vmatprep.subr.bf16.mxu0 0
    %939 = vmatpush1.bf16.msra.mxu0 0
    %940 = vmatprep.subr.bf16.mxu0 0
    %941 = vmatpush1.bf16.msra.mxu0 0
    %942 = vmatprep.subr.bf16.mxu0 0
    %943 = vmatpush1.bf16.msra.mxu0 0
    %944 = vmatprep.subr.bf16.mxu0 0
    %945 = vmatpush1.bf16.msra.mxu0 0
    %946 = vmatprep.subr.bf16.mxu0 0
    %947 = vmatpush1.bf16.msra.mxu0 0
    %948 = vmatprep.subr.bf16.mxu0 0
    %949 = vmatpush1.bf16.msra.mxu0 0
    %950 = vmatprep.subr.bf16.mxu0 0
    %951 = vmatpush1.bf16.msra.mxu0 0
    %952 = vmatprep.mubr.bf16.mxu0 0
    %953 = vmatmul.mubr.bf16.gmra.mrb[0].mxu0 %v718
    %v954 = vpop.f32.mrb[0].mxu0
    %v955 = vadd.f32 0.0, %v954
    %v956 = vpop.f32.mrb[0].mxu0
    %v957 = vpop.f32.mrb[0].mxu0
    %v958 = vpop.f32.mrb[0].mxu0
    %959 = vdwg.mxu0
    %v960 = vadd.f32 %v715, %v914
    %v961 = vadd.f32 %v716, %v916
    %v962 = vxor.u32 %v960, 2147483648
    %v963 = vxor.u32 %v961, 2147483648
    %v964 = vmul.f32 %v962, 1.442695
    %v965 = vpow.pop %v964
    %v966 = vmul.f32 %v963, 1.442695
    %v967 = vpow.pop %v966
    %v968 = vadd.f32 %v965, 1.0
    %v969 = vadd.f32 %v967, 1.0
    %v970 = vrcp.pop %v968
    %v971 = vmul.f32 1.0, %v970
    %v972 = vrcp.pop %v969
    %v973 = vmul.f32 1.0, %v972
    %v974 = vadd.f32 %v955, %v35
    %v975 = vmul.f32 %v971, %v974
    %v976 = vadd.f32 %v717, %v975
    %v977 = vtanh.pop %v976
    %v978 = vsub.f32 1.0, %v973
    %v979 = vmul.f32 %v978, %v977
    %v980 = vmul.f32 %v973, %v556
    %v981 = vadd.f32 %v979, %v980
    %v982 = vld [vmem:[%s0 + $0x10] sm:$0xff]
    %984 = vset.pattern.permute.xlu0 0
    %985 = vperm.xlu0 %984, %v982
    %v986 = vpop.permute.xlu0 %985
    %v988 = vmul.f32 %v986, %v48
    %v989 = vmul.f32 %v986, %v52
    %v990 = vmul.f32 %v986, %v56
    %v991 = vadd.f32 %v988, %v67
    %v992 = vadd.f32 %v989, %v71
    %v993 = vadd.f32 %v990, %v75
    %v994 = vadd.f32 %v991, %v627
    %v995 = vadd.f32 %v992, %v629
    %v996 = vxor.u32 %v994, 2147483648
    %v997 = vxor.u32 %v995, 2147483648
    %v998 = vmul.f32 %v996, 1.442695
    %v999 = vpow.pop %v998
    %v1000 = vmul.f32 %v997, 1.442695
    %v1001 = vpow.pop %v1000
    %v1002 = vadd.f32 %v999, 1.0
    %v1003 = vadd.f32 %v1001, 1.0
    %v1004 = vrcp.pop %v1002
    %v1005 = vmul.f32 1.0, %v1004
    %v1006 = vrcp.pop %v1003
    %v1007 = vmul.f32 1.0, %v1006
    %v1008 = vadd.f32 %v668, %v34
    %v1009 = vmul.f32 %v1005, %v1008
    %v1010 = vadd.f32 %v993, %v1009
    %v1011 = vtanh.pop %v1010
    %v1012 = vsub.f32 1.0, %v1007
    %v1013 = vmul.f32 %v1012, %v1011
    %v1014 = vmul.f32 %v1007, %v590
    %v1015 = vadd.f32 %v1013, %v1014
    %v1016 = vpack.c.bf16 %v1015, %v1015
    %1017 = vmatprep.subr.bf16.mxu0 %v298
    %1018 = vmatpush1.bf16.msra.mxu0 %v297
    %1019 = vmatprep.subr.bf16.mxu0 %v304
    %1020 = vmatpush1.bf16.msra.mxu0 %v303
    %1021 = vmatprep.subr.bf16.mxu0 %v310
    %1022 = vmatpush1.bf16.msra.mxu0 %v309
    %1023 = vmatprep.subr.bf16.mxu0 %v316
    %1024 = vmatpush1.bf16.msra.mxu0 %v315
    %1025 = vmatprep.subr.bf16.mxu0 %v322
    %1026 = vmatpush1.bf16.msra.mxu0 %v321
    %1027 = vmatprep.subr.bf16.mxu0 %v328
    %1028 = vmatpush1.bf16.msra.mxu0 %v327
    %1029 = vmatprep.subr.bf16.mxu0 %v334
    %1030 = vmatpush1.bf16.msra.mxu0 %v333
    %1031 = vmatprep.subr.bf16.mxu0 %v340
    %1032 = vmatpush1.bf16.msra.mxu0 %v339
    %1033 = vmatprep.subr.bf16.mxu0 0
    %1034 = vmatpush1.bf16.msra.mxu0 0
    %1035 = vmatprep.subr.bf16.mxu0 0
    %1036 = vmatpush1.bf16.msra.mxu0 0
    %1037 = vmatprep.subr.bf16.mxu0 0
    %1038 = vmatpush1.bf16.msra.mxu0 0
    %1039 = vmatprep.subr.bf16.mxu0 0
    %1040 = vmatpush1.bf16.msra.mxu0 0
    %1041 = vmatprep.subr.bf16.mxu0 0
    %1042 = vmatpush1.bf16.msra.mxu0 0
    %1043 = vmatprep.subr.bf16.mxu0 0
    %1044 = vmatpush1.bf16.msra.mxu0 0
    %1045 = vmatprep.subr.bf16.mxu0 0
    %1046 = vmatpush1.bf16.msra.mxu0 0
    %1047 = vmatprep.subr.bf16.mxu0 0
    %1048 = vmatpush1.bf16.msra.mxu0 0
    %1049 = vmatprep.mubr.bf16.mxu0 0
    %1050 = vmatmul.mubr.bf16.gmra.mrb[0].mxu0 %v1016
    %v1051 = vpop.f32.mrb[0].mxu0
    %v1052 = vadd.f32 0.0, %v1051
    %v1053 = vpop.f32.mrb[0].mxu0
    %v1054 = vadd.f32 0.0, %v1053
    %v1055 = vpop.f32.mrb[0].mxu0
    %v1056 = vpop.f32.mrb[0].mxu0
    %1057 = vdwg.mxu0
    %1058 = vmatprep.subr.bf16.mxu0 %v300
    %1059 = vmatpush1.bf16.msra.mxu0 %v299
    %1060 = vmatprep.subr.bf16.mxu0 %v306
    %1061 = vmatpush1.bf16.msra.mxu0 %v305
    %1062 = vmatprep.subr.bf16.mxu0 %v312
    %1063 = vmatpush1.bf16.msra.mxu0 %v311
    %1064 = vmatprep.subr.bf16.mxu0 %v318
    %1065 = vmatpush1.bf16.msra.mxu0 %v317
    %1066 = vmatprep.subr.bf16.mxu0 %v324
    %1067 = vmatpush1.bf16.msra.mxu0 %v323
    %1068 = vmatprep.subr.bf16.mxu0 %v330
    %1069 = vmatpush1.bf16.msra.mxu0 %v329
    %1070 = vmatprep.subr.bf16.mxu0 %v336
    %1071 = vmatpush1.bf16.msra.mxu0 %v335
    %1072 = vmatprep.subr.bf16.mxu0 %v342
    %1073 = vmatpush1.bf16.msra.mxu0 %v341
    %1074 = vmatprep.subr.bf16.mxu0 0
    %1075 = vmatpush1.bf16.msra.mxu0 0
    %1076 = vmatprep.subr.bf16.mxu0 0
    %1077 = vmatpush1.bf16.msra.mxu0 0
    %1078 = vmatprep.subr.bf16.mxu0 0
    %1079 = vmatpush1.bf16.msra.mxu0 0
    %1080 = vmatprep.subr.bf16.mxu0 0
    %1081 = vmatpush1.bf16.msra.mxu0 0
    %1082 = vmatprep.subr.bf16.mxu0 0
    %1083 = vmatpush1.bf16.msra.mxu0 0
    %1084 = vmatprep.subr.bf16.mxu0 0
    %1085 = vmatpush1.bf16.msra.mxu0 0
    %1086 = vmatprep.subr.bf16.mxu0 0
    %1087 = vmatpush1.bf16.msra.mxu0 0
    %1088 = vmatprep.subr.bf16.mxu0 0
    %1089 = vmatpush1.bf16.msra.mxu0 0
    %1090 = vmatprep.mubr.bf16.mxu0 0
    %1091 = vmatmul.mubr.bf16.gmra.mrb[0].mxu0 %v1016
    %v1092 = vpop.f32.mrb[0].mxu0
    %v1093 = vadd.f32 0.0, %v1092
    %v1094 = vpop.f32.mrb[0].mxu0
    %v1095 = vadd.f32 0.0, %v1094
    %v1096 = vpop.f32.mrb[0].mxu0
    %v1097 = vpop.f32.mrb[0].mxu0
    %1098 = vdwg.mxu0
    %1099 = vmatprep.subr.bf16.mxu0 %v302
    %1100 = vmatpush1.bf16.msra.mxu0 %v301
    %1101 = vmatprep.subr.bf16.mxu0 %v308
    %1102 = vmatpush1.bf16.msra.mxu0 %v307
    %1103 = vmatprep.subr.bf16.mxu0 %v314
    %1104 = vmatpush1.bf16.msra.mxu0 %v313
    %1105 = vmatprep.subr.bf16.mxu0 %v320
    %1106 = vmatpush1.bf16.msra.mxu0 %v319
    %1107 = vmatprep.subr.bf16.mxu0 %v326
    %1108 = vmatpush1.bf16.msra.mxu0 %v325
    %1109 = vmatprep.subr.bf16.mxu0 %v332
    %1110 = vmatpush1.bf16.msra.mxu0 %v331
    %1111 = vmatprep.subr.bf16.mxu0 %v338
    %1112 = vmatpush1.bf16.msra.mxu0 %v337
    %1113 = vmatprep.subr.bf16.mxu0 %v344
    %1114 = vmatpush1.bf16.msra.mxu0 %v343
    %1115 = vmatprep.subr.bf16.mxu0 0
    %1116 = vmatpush1.bf16.msra.mxu0 0
    %1117 = vmatprep.subr.bf16.mxu0 0
    %1118 = vmatpush1.bf16.msra.mxu0 0
    %1119 = vmatprep.subr.bf16.mxu0 0
    %1120 = vmatpush1.bf16.msra.mxu0 0
    %1121 = vmatprep.subr.bf16.mxu0 0
    %1122 = vmatpush1.bf16.msra.mxu0 0
    %1123 = vmatprep.subr.bf16.mxu0 0
    %1124 = vmatpush1.bf16.msra.mxu0 0
    %1125 = vmatprep.subr.bf16.mxu0 0
    %1126 = vmatpush1.bf16.msra.mxu0 0
    %1127 = vmatprep.subr.bf16.mxu0 0
    %1128 = vmatpush1.bf16.msra.mxu0 0
    %1129 = vmatprep.subr.bf16.mxu0 0
    %1130 = vmatpush1.bf16.msra.mxu0 0
    %1131 = vmatprep.mubr.bf16.mxu0 0
    %1132 = vmatmul.mubr.bf16.gmra.mrb[0].mxu0 %v1016
    %v1133 = vpop.f32.mrb[0].mxu0
    %v1134 = vadd.f32 0.0, %v1133
    %v1135 = vpop.f32.mrb[0].mxu0
    %v1136 = vadd.f32 0.0, %v1135
    %v1137 = vpop.f32.mrb[0].mxu0
    %v1138 = vpop.f32.mrb[0].mxu0
    %1139 = vdwg.mxu0
    %v1140 = vadd.f32 %v1095, %v520
    %v1141 = vadd.f32 %v1134, %v524
    %v1142 = vadd.f32 %v1136, %v528
    %v1143 = vpack.c.bf16 %v981, %v981
    %1144 = vmatprep.subr.bf16.mxu0 %v832
    %1145 = vmatpush1.bf16.msra.mxu0 %v831
    %1146 = vmatprep.subr.bf16.mxu0 %v835
    %1147 = vmatpush1.bf16.msra.mxu0 %v834
    %1148 = vmatprep.subr.bf16.mxu0 %v838
    %1149 = vmatpush1.bf16.msra.mxu0 %v837
    %1150 = vmatprep.subr.bf16.mxu0 %v841
    %1151 = vmatpush1.bf16.msra.mxu0 %v840
    %1152 = vmatprep.subr.bf16.mxu0 %v844
    %1153 = vmatpush1.bf16.msra.mxu0 %v843
    %1154 = vmatprep.subr.bf16.mxu0 %v847
    %1155 = vmatpush1.bf16.msra.mxu0 %v846
    %1156 = vmatprep.subr.bf16.mxu0 %v850
    %1157 = vmatpush1.bf16.msra.mxu0 %v849
    %1158 = vmatprep.subr.bf16.mxu0 %v853
    %1159 = vmatpush1.bf16.msra.mxu0 %v852
    %1160 = vmatprep.subr.bf16.mxu0 0
    %1161 = vmatpush1.bf16.msra.mxu0 0
    %1162 = vmatprep.subr.bf16.mxu0 0
    %1163 = vmatpush1.bf16.msra.mxu0 0
    %1164 = vmatprep.subr.bf16.mxu0 0
    %1165 = vmatpush1.bf16.msra.mxu0 0
    %1166 = vmatprep.subr.bf16.mxu0 0
    %1167 = vmatpush1.bf16.msra.mxu0 0
    %1168 = vmatprep.subr.bf16.mxu0 0
    %1169 = vmatpush1.bf16.msra.mxu0 0
    %1170 = vmatprep.subr.bf16.mxu0 0
    %1171 = vmatpush1.bf16.msra.mxu0 0
    %1172 = vmatprep.subr.bf16.mxu0 0
    %1173 = vmatpush1.bf16.msra.mxu0 0
    %1174 = vmatprep.subr.bf16.mxu0 0
    %1175 = vmatpush1.bf16.msra.mxu0 0
    %1176 = vmatprep.mubr.bf16.mxu0 0
    %1177 = vmatmul.mubr.bf16.gmra.mrb[0].mxu0 %v1143
    %v1178 = vpop.f32.mrb[0].mxu0
    %v1179 = vadd.f32 0.0, %v1178
    %v1180 = vpop.f32.mrb[0].mxu0
    %v1181 = vadd.f32 0.0, %v1180
    %v1182 = vpop.f32.mrb[0].mxu0
    %v1183 = vpop.f32.mrb[0].mxu0
    %1184 = vdwg.mxu0
    %1185 = vmatprep.subr.bf16.mxu0 0
    %1186 = vmatpush1.bf16.msra.mxu0 %v833
    %1187 = vmatprep.subr.bf16.mxu0 0
    %1188 = vmatpush1.bf16.msra.mxu0 %v836
    %1189 = vmatprep.subr.bf16.mxu0 0
    %1190 = vmatpush1.bf16.msra.mxu0 %v839
    %1191 = vmatprep.subr.bf16.mxu0 0
    %1192 = vmatpush1.bf16.msra.mxu0 %v842
    %1193 = vmatprep.subr.bf16.mxu0 0
    %1194 = vmatpush1.bf16.msra.mxu0 %v845
    %1195 = vmatprep.subr.bf16.mxu0 0
    %1196 = vmatpush1.bf16.msra.mxu0 %v848
    %1197 = vmatprep.subr.bf16.mxu0 0
    %1198 = vmatpush1.bf16.msra.mxu0 %v851
    %1199 = vmatprep.subr.bf16.mxu0 0
    %1200 = vmatpush1.bf16.msra.mxu0 %v854
    %1201 = vmatprep.subr.bf16.mxu0 0
    %1202 = vmatpush1.bf16.msra.mxu0 0
    %1203 = vmatprep.subr.bf16.mxu0 0
    %1204 = vmatpush1.bf16.msra.mxu0 0
    %1205 = vmatprep.subr.bf16.mxu0 0
    %1206 = vmatpush1.bf16.msra.mxu0 0
    %1207 = vmatprep.subr.bf16.mxu0 0
    %1208 = vmatpush1.bf16.msra.mxu0 0
    %1209 = vmatprep.subr.bf16.mxu0 0
    %1210 = vmatpush1.bf16.msra.mxu0 0
    %1211 = vmatprep.subr.bf16.mxu0 0
    %1212 = vmatpush1.bf16.msra.mxu0 0
    %1213 = vmatprep.subr.bf16.mxu0 0
    %1214 = vmatpush1.bf16.msra.mxu0 0
    %1215 = vmatprep.subr.bf16.mxu0 0
    %1216 = vmatpush1.bf16.msra.mxu0 0
    %1217 = vmatprep.mubr.bf16.mxu0 0
    %1218 = vmatmul.mubr.bf16.gmra.mrb[0].mxu0 %v1143
    %v1219 = vpop.f32.mrb[0].mxu0
    %v1220 = vadd.f32 0.0, %v1219
    %v1221 = vpop.f32.mrb[0].mxu0
    %v1222 = vpop.f32.mrb[0].mxu0
    %v1223 = vpop.f32.mrb[0].mxu0
    %1224 = vdwg.mxu0
    %v1225 = vadd.f32 %v1140, %v1179
    %v1226 = vadd.f32 %v1141, %v1181
    %v1227 = vxor.u32 %v1225, 2147483648
    %v1228 = vxor.u32 %v1226, 2147483648
    %v1229 = vmul.f32 %v1227, 1.442695
    %v1230 = vpow.pop %v1229
    %v1231 = vmul.f32 %v1228, 1.442695
    %v1232 = vpow.pop %v1231
    %v1233 = vadd.f32 %v1230, 1.0
    %v1234 = vadd.f32 %v1232, 1.0
    %v1235 = vrcp.pop %v1233
    %v1236 = vmul.f32 1.0, %v1235
    %v1237 = vrcp.pop %v1234
    %v1238 = vmul.f32 1.0, %v1237
    %v1239 = vadd.f32 %v1220, %v35
    %v1240 = vmul.f32 %v1236, %v1239
    %v1241 = vadd.f32 %v1142, %v1240
    %v1242 = vtanh.pop %v1241
    %v1243 = vsub.f32 1.0, %v1238
    %v1244 = vmul.f32 %v1243, %v1242
    %v1245 = vmul.f32 %v1238, %v981
    %v1246 = vadd.f32 %v1244, %v1245
    %v1247 = vld [vmem:[%s0 + $0x18] sm:$0xff]
    %1249 = vset.pattern.permute.xlu0 0
    %1250 = vperm.xlu0 %1249, %v1247
    %v1251 = vpop.permute.xlu0 %1250
    %v1253 = vmul.f32 %v1251, %v48
    %v1254 = vmul.f32 %v1251, %v52
    %v1255 = vmul.f32 %v1251, %v56
    %v1256 = vadd.f32 %v1253, %v67
    %v1257 = vadd.f32 %v1254, %v71
    %v1258 = vadd.f32 %v1255, %v75
    %v1259 = vadd.f32 %v1256, %v1052
    %v1260 = vadd.f32 %v1257, %v1054
    %v1261 = vxor.u32 %v1259, 2147483648
    %v1262 = vxor.u32 %v1260, 2147483648
    %v1263 = vmul.f32 %v1261, 1.442695
    %v1264 = vpow.pop %v1263
    %v1265 = vmul.f32 %v1262, 1.442695
    %v1266 = vpow.pop %v1265
    %v1267 = vadd.f32 %v1264, 1.0
    %v1268 = vadd.f32 %v1266, 1.0
    %v1269 = vrcp.pop %v1267
    %v1270 = vmul.f32 1.0, %v1269
    %v1271 = vrcp.pop %v1268
    %v1272 = vmul.f32 1.0, %v1271
    %v1273 = vadd.f32 %v1093, %v34
    %v1274 = vmul.f32 %v1270, %v1273
    %v1275 = vadd.f32 %v1258, %v1274
    %v1276 = vtanh.pop %v1275
    %v1277 = vsub.f32 1.0, %v1272
    %v1278 = vmul.f32 %v1277, %v1276
    %v1279 = vmul.f32 %v1272, %v1015
    %v1280 = vadd.f32 %v1278, %v1279
    %v1281 = vpack.c.bf16 %v1280, %v1280
    %1282 = vmatprep.subr.bf16.mxu0 %v298
    %1283 = vmatpush1.bf16.msra.mxu0 %v297
    %1284 = vmatprep.subr.bf16.mxu0 %v304
    %1285 = vmatpush1.bf16.msra.mxu0 %v303
    %1286 = vmatprep.subr.bf16.mxu0 %v310
    %1287 = vmatpush1.bf16.msra.mxu0 %v309
    %1288 = vmatprep.subr.bf16.mxu0 %v316
    %1289 = vmatpush1.bf16.msra.mxu0 %v315
    %1290 = vmatprep.subr.bf16.mxu0 %v322
    %1291 = vmatpush1.bf16.msra.mxu0 %v321
    %1292 = vmatprep.subr.bf16.mxu0 %v328
    %1293 = vmatpush1.bf16.msra.mxu0 %v327
    %1294 = vmatprep.subr.bf16.mxu0 %v334
    %1295 = vmatpush1.bf16.msra.mxu0 %v333
    %1296 = vmatprep.subr.bf16.mxu0 %v340
    %1297 = vmatpush1.bf16.msra.mxu0 %v339
    %1298 = vmatprep.subr.bf16.mxu0 0
    %1299 = vmatpush1.bf16.msra.mxu0 0
    %1300 = vmatprep.subr.bf16.mxu0 0
    %1301 = vmatpush1.bf16.msra.mxu0 0
    %1302 = vmatprep.subr.bf16.mxu0 0
    %1303 = vmatpush1.bf16.msra.mxu0 0
    %1304 = vmatprep.subr.bf16.mxu0 0
    %1305 = vmatpush1.bf16.msra.mxu0 0
    %1306 = vmatprep.subr.bf16.mxu0 0
    %1307 = vmatpush1.bf16.msra.mxu0 0
    %1308 = vmatprep.subr.bf16.mxu0 0
    %1309 = vmatpush1.bf16.msra.mxu0 0
    %1310 = vmatprep.subr.bf16.mxu0 0
    %1311 = vmatpush1.bf16.msra.mxu0 0
    %1312 = vmatprep.subr.bf16.mxu0 0
    %1313 = vmatpush1.bf16.msra.mxu0 0
    %1314 = vmatprep.mubr.bf16.mxu0 0
    %1315 = vmatmul.mubr.bf16.gmra.mrb[0].mxu0 %v1281
    %v1316 = vpop.f32.mrb[0].mxu0
    %v1317 = vadd.f32 0.0, %v1316
    %v1318 = vpop.f32.mrb[0].mxu0
    %v1319 = vadd.f32 0.0, %v1318
    %v1320 = vpop.f32.mrb[0].mxu0
    %v1321 = vpop.f32.mrb[0].mxu0
    %1322 = vdwg.mxu0
    %1323 = vmatprep.subr.bf16.mxu0 %v300
    %1324 = vmatpush1.bf16.msra.mxu0 %v299
    %1325 = vmatprep.subr.bf16.mxu0 %v306
    %1326 = vmatpush1.bf16.msra.mxu0 %v305
    %1327 = vmatprep.subr.bf16.mxu0 %v312
    %1328 = vmatpush1.bf16.msra.mxu0 %v311
    %1329 = vmatprep.subr.bf16.mxu0 %v318
    %1330 = vmatpush1.bf16.msra.mxu0 %v317
    %1331 = vmatprep.subr.bf16.mxu0 %v324
    %1332 = vmatpush1.bf16.msra.mxu0 %v323
    %1333 = vmatprep.subr.bf16.mxu0 %v330
    %1334 = vmatpush1.bf16.msra.mxu0 %v329
    %1335 = vmatprep.subr.bf16.mxu0 %v336
    %1336 = vmatpush1.bf16.msra.mxu0 %v335
    %1337 = vmatprep.subr.bf16.mxu0 %v342
    %1338 = vmatpush1.bf16.msra.mxu0 %v341
    %1339 = vmatprep.subr.bf16.mxu0 0
    %1340 = vmatpush1.bf16.msra.mxu0 0
    %1341 = vmatprep.subr.bf16.mxu0 0
    %1342 = vmatpush1.bf16.msra.mxu0 0
    %1343 = vmatprep.subr.bf16.mxu0 0
    %1344 = vmatpush1.bf16.msra.mxu0 0
    %1345 = vmatprep.subr.bf16.mxu0 0
    %1346 = vmatpush1.bf16.msra.mxu0 0
    %1347 = vmatprep.subr.bf16.mxu0 0
    %1348 = vmatpush1.bf16.msra.mxu0 0
    %1349 = vmatprep.subr.bf16.mxu0 0
    %1350 = vmatpush1.bf16.msra.mxu0 0
    %1351 = vmatprep.subr.bf16.mxu0 0
    %1352 = vmatpush1.bf16.msra.mxu0 0
    %1353 = vmatprep.subr.bf16.mxu0 0
    %1354 = vmatpush1.bf16.msra.mxu0 0
    %1355 = vmatprep.mubr.bf16.mxu0 0
    %1356 = vmatmul.mubr.bf16.gmra.mrb[0].mxu0 %v1281
    %v1357 = vpop.f32.mrb[0].mxu0
    %v1358 = vadd.f32 0.0, %v1357
    %v1359 = vpop.f32.mrb[0].mxu0
    %v1360 = vadd.f32 0.0, %v1359
    %v1361 = vpop.f32.mrb[0].mxu0
    %v1362 = vpop.f32.mrb[0].mxu0
    %1363 = vdwg.mxu0
    %1364 = vmatprep.subr.bf16.mxu0 %v302
    %1365 = vmatpush1.bf16.msra.mxu0 %v301
    %1366 = vmatprep.subr.bf16.mxu0 %v308
    %1367 = vmatpush1.bf16.msra.mxu0 %v307
    %1368 = vmatprep.subr.bf16.mxu0 %v314
    %1369 = vmatpush1.bf16.msra.mxu0 %v313
    %1370 = vmatprep.subr.bf16.mxu0 %v320
    %1371 = vmatpush1.bf16.msra.mxu0 %v319
    %1372 = vmatprep.subr.bf16.mxu0 %v326
    %1373 = vmatpush1.bf16.msra.mxu0 %v325
    %1374 = vmatprep.subr.bf16.mxu0 %v332
    %1375 = vmatpush1.bf16.msra.mxu0 %v331
    %1376 = vmatprep.subr.bf16.mxu0 %v338
    %1377 = vmatpush1.bf16.msra.mxu0 %v337
    %1378 = vmatprep.subr.bf16.mxu0 %v344
    %1379 = vmatpush1.bf16.msra.mxu0 %v343
    %1380 = vmatprep.subr.bf16.mxu0 0
    %1381 = vmatpush1.bf16.msra.mxu0 0
    %1382 = vmatprep.subr.bf16.mxu0 0
    %1383 = vmatpush1.bf16.msra.mxu0 0
    %1384 = vmatprep.subr.bf16.mxu0 0
    %1385 = vmatpush1.bf16.msra.mxu0 0
    %1386 = vmatprep.subr.bf16.mxu0 0
    %1387 = vmatpush1.bf16.msra.mxu0 0
    %1388 = vmatprep.subr.bf16.mxu0 0
    %1389 = vmatpush1.bf16.msra.mxu0 0
    %1390 = vmatprep.subr.bf16.mxu0 0
    %1391 = vmatpush1.bf16.msra.mxu0 0
    %1392 = vmatprep.subr.bf16.mxu0 0
    %1393 = vmatpush1.bf16.msra.mxu0 0
    %1394 = vmatprep.subr.bf16.mxu0 0
    %1395 = vmatpush1.bf16.msra.mxu0 0
    %1396 = vmatprep.mubr.bf16.mxu0 0
    %1397 = vmatmul.mubr.bf16.gmra.mrb[0].mxu0 %v1281
    %v1398 = vpop.f32.mrb[0].mxu0
    %v1399 = vadd.f32 0.0, %v1398
    %v1400 = vpop.f32.mrb[0].mxu0
    %v1401 = vadd.f32 0.0, %v1400
    %v1402 = vpop.f32.mrb[0].mxu0
    %v1403 = vpop.f32.mrb[0].mxu0
    %1404 = vdwg.mxu0
    %v1405 = vadd.f32 %v1360, %v520
    %v1406 = vadd.f32 %v1399, %v524
    %v1407 = vadd.f32 %v1401, %v528
    %v1408 = vpack.c.bf16 %v1246, %v1246
    %1409 = vmatprep.subr.bf16.mxu0 %v832
    %1410 = vmatpush1.bf16.msra.mxu0 %v831
    %1411 = vmatprep.subr.bf16.mxu0 %v835
    %1412 = vmatpush1.bf16.msra.mxu0 %v834
    %1413 = vmatprep.subr.bf16.mxu0 %v838
    %1414 = vmatpush1.bf16.msra.mxu0 %v837
    %1415 = vmatprep.subr.bf16.mxu0 %v841
    %1416 = vmatpush1.bf16.msra.mxu0 %v840
    %1417 = vmatprep.subr.bf16.mxu0 %v844
    %1418 = vmatpush1.bf16.msra.mxu0 %v843
    %1419 = vmatprep.subr.bf16.mxu0 %v847
    %1420 = vmatpush1.bf16.msra.mxu0 %v846
    %1421 = vmatprep.subr.bf16.mxu0 %v850
    %1422 = vmatpush1.bf16.msra.mxu0 %v849
    %1423 = vmatprep.subr.bf16.mxu0 %v853
    %1424 = vmatpush1.bf16.msra.mxu0 %v852
    %1425 = vmatprep.subr.bf16.mxu0 0
    %1426 = vmatpush1.bf16.msra.mxu0 0
    %1427 = vmatprep.subr.bf16.mxu0 0
    %1428 = vmatpush1.bf16.msra.mxu0 0
    %1429 = vmatprep.subr.bf16.mxu0 0
    %1430 = vmatpush1.bf16.msra.mxu0 0
    %1431 = vmatprep.subr.bf16.mxu0 0
    %1432 = vmatpush1.bf16.msra.mxu0 0
    %1433 = vmatprep.subr.bf16.mxu0 0
    %1434 = vmatpush1.bf16.msra.mxu0 0
    %1435 = vmatprep.subr.bf16.mxu0 0
    %1436 = vmatpush1.bf16.msra.mxu0 0
    %1437 = vmatprep.subr.bf16.mxu0 0
    %1438 = vmatpush1.bf16.msra.mxu0 0
    %1439 = vmatprep.subr.bf16.mxu0 0
    %1440 = vmatpush1.bf16.msra.mxu0 0
    %1441 = vmatprep.mubr.bf16.mxu0 0
    %1442 = vmatmul.mubr.bf16.gmra.mrb[0].mxu0 %v1408
    %v1443 = vpop.f32.mrb[0].mxu0
    %v1444 = vadd.f32 0.0, %v1443
    %v1445 = vpop.f32.mrb[0].mxu0
    %v1446 = vadd.f32 0.0, %v1445
    %v1447 = vpop.f32.mrb[0].mxu0
    %v1448 = vpop.f32.mrb[0].mxu0
    %1449 = vdwg.mxu0
    %1450 = vmatprep.subr.bf16.mxu0 0
    %1451 = vmatpush1.bf16.msra.mxu0 %v833
    %1452 = vmatprep.subr.bf16.mxu0 0
    %1453 = vmatpush1.bf16.msra.mxu0 %v836
    %1454 = vmatprep.subr.bf16.mxu0 0
    %1455 = vmatpush1.bf16.msra.mxu0 %v839
    %1456 = vmatprep.subr.bf16.mxu0 0
    %1457 = vmatpush1.bf16.msra.mxu0 %v842
    %1458 = vmatprep.subr.bf16.mxu0 0
    %1459 = vmatpush1.bf16.msra.mxu0 %v845
    %1460 = vmatprep.subr.bf16.mxu0 0
    %1461 = vmatpush1.bf16.msra.mxu0 %v848
    %1462 = vmatprep.subr.bf16.mxu0 0
    %1463 = vmatpush1.bf16.msra.mxu0 %v851
    %1464 = vmatprep.subr.bf16.mxu0 0
    %1465 = vmatpush1.bf16.msra.mxu0 %v854
    %1466 = vmatprep.subr.bf16.mxu0 0
    %1467 = vmatpush1.bf16.msra.mxu0 0
    %1468 = vmatprep.subr.bf16.mxu0 0
    %1469 = vmatpush1.bf16.msra.mxu0 0
    %1470 = vmatprep.subr.bf16.mxu0 0
    %1471 = vmatpush1.bf16.msra.mxu0 0
    %1472 = vmatprep.subr.bf16.mxu0 0
    %1473 = vmatpush1.bf16.msra.mxu0 0
    %1474 = vmatprep.subr.bf16.mxu0 0
    %1475 = vmatpush1.bf16.msra.mxu0 0
    %1476 = vmatprep.subr.bf16.mxu0 0
    %1477 = vmatpush1.bf16.msra.mxu0 0
    %1478 = vmatprep.subr.bf16.mxu0 0
    %1479 = vmatpush1.bf16.msra.mxu0 0
    %1480 = vmatprep.subr.bf16.mxu0 0
    %1481 = vmatpush1.bf16.msra.mxu0 0
    %1482 = vmatprep.mubr.bf16.mxu0 0
    %1483 = vmatmul.mubr.bf16.gmra.mrb[0].mxu0 %v1408
    %v1484 = vpop.f32.mrb[0].mxu0
    %v1485 = vadd.f32 0.0, %v1484
    %v1486 = vpop.f32.mrb[0].mxu0
    %v1487 = vpop.f32.mrb[0].mxu0
    %v1488 = vpop.f32.mrb[0].mxu0
    %1489 = vdwg.mxu0
    %v1490 = vadd.f32 %v1405, %v1444
    %v1491 = vadd.f32 %v1406, %v1446
    %v1492 = vxor.u32 %v1490, 2147483648
    %v1493 = vxor.u32 %v1491, 2147483648
    %v1494 = vmul.f32 %v1492, 1.442695
    %v1495 = vpow.pop %v1494
    %v1496 = vmul.f32 %v1493, 1.442695
    %v1497 = vpow.pop %v1496
    %v1498 = vadd.f32 %v1495, 1.0
    %v1499 = vadd.f32 %v1497, 1.0
    %v1500 = vrcp.pop %v1498
    %v1501 = vmul.f32 1.0, %v1500
    %v1502 = vrcp.pop %v1499
    %v1503 = vmul.f32 1.0, %v1502
    %v1504 = vadd.f32 %v1485, %v35
    %v1505 = vmul.f32 %v1501, %v1504
    %v1506 = vadd.f32 %v1407, %v1505
    %v1507 = vtanh.pop %v1506
    %v1508 = vsub.f32 1.0, %v1503
    %v1509 = vmul.f32 %v1508, %v1507
    %v1510 = vmul.f32 %v1503, %v1246
    %v1511 = vadd.f32 %v1509, %v1510
    %v1512 = vld [vmem:[%s0 + $0x20] sm:$0xff]
    %1514 = vset.pattern.permute.xlu0 0
    %1515 = vperm.xlu0 %1514, %v1512
    %v1516 = vpop.permute.xlu0 %1515
    %v1518 = vmul.f32 %v1516, %v48
    %v1519 = vmul.f32 %v1516, %v52
    %v1520 = vmul.f32 %v1516, %v56
    %v1521 = vadd.f32 %v1518, %v67
    %v1522 = vadd.f32 %v1519, %v71
    %v1523 = vadd.f32 %v1520, %v75
    %v1524 = vadd.f32 %v1521, %v1317
    %v1525 = vadd.f32 %v1522, %v1319
    %v1526 = vxor.u32 %v1524, 2147483648
    %v1527 = vxor.u32 %v1525, 2147483648
    %v1528 = vmul.f32 %v1526, 1.442695
    %v1529 = vpow.pop %v1528
    %v1530 = vmul.f32 %v1527, 1.442695
    %v1531 = vpow.pop %v1530
    %v1532 = vadd.f32 %v1529, 1.0
    %v1533 = vadd.f32 %v1531, 1.0
    %v1534 = vrcp.pop %v1532
    %v1535 = vmul.f32 1.0, %v1534
    %v1536 = vrcp.pop %v1533
    %v1537 = vmul.f32 1.0, %v1536
    %v1538 = vadd.f32 %v1358, %v34
    %v1539 = vmul.f32 %v1535, %v1538
    %v1540 = vadd.f32 %v1523, %v1539
    %v1541 = vtanh.pop %v1540
    %v1542 = vsub.f32 1.0, %v1537
    %v1543 = vmul.f32 %v1542, %v1541
    %v1544 = vmul.f32 %v1537, %v1280
    %v1545 = vadd.f32 %v1543, %v1544
    %v1546 = vpack.c.bf16 %v1545, %v1545
    %1547 = vmatprep.subr.bf16.mxu0 %v298
    %1548 = vmatpush1.bf16.msra.mxu0 %v297
    %1549 = vmatprep.subr.bf16.mxu0 %v304
    %1550 = vmatpush1.bf16.msra.mxu0 %v303
    %1551 = vmatprep.subr.bf16.mxu0 %v310
    %1552 = vmatpush1.bf16.msra.mxu0 %v309
    %1553 = vmatprep.subr.bf16.mxu0 %v316
    %1554 = vmatpush1.bf16.msra.mxu0 %v315
    %1555 = vmatprep.subr.bf16.mxu0 %v322
    %1556 = vmatpush1.bf16.msra.mxu0 %v321
    %1557 = vmatprep.subr.bf16.mxu0 %v328
    %1558 = vmatpush1.bf16.msra.mxu0 %v327
    %1559 = vmatprep.subr.bf16.mxu0 %v334
    %1560 = vmatpush1.bf16.msra.mxu0 %v333
    %1561 = vmatprep.subr.bf16.mxu0 %v340
    %1562 = vmatpush1.bf16.msra.mxu0 %v339
    %1563 = vmatprep.subr.bf16.mxu0 0
    %1564 = vmatpush1.bf16.msra.mxu0 0
    %1565 = vmatprep.subr.bf16.mxu0 0
    %1566 = vmatpush1.bf16.msra.mxu0 0
    %1567 = vmatprep.subr.bf16.mxu0 0
    %1568 = vmatpush1.bf16.msra.mxu0 0
    %1569 = vmatprep.subr.bf16.mxu0 0
    %1570 = vmatpush1.bf16.msra.mxu0 0
    %1571 = vmatprep.subr.bf16.mxu0 0
    %1572 = vmatpush1.bf16.msra.mxu0 0
    %1573 = vmatprep.subr.bf16.mxu0 0
    %1574 = vmatpush1.bf16.msra.mxu0 0
    %1575 = vmatprep.subr.bf16.mxu0 0
    %1576 = vmatpush1.bf16.msra.mxu0 0
    %1577 = vmatprep.subr.bf16.mxu0 0
    %1578 = vmatpush1.bf16.msra.mxu0 0
    %1579 = vmatprep.mubr.bf16.mxu0 0
    %1580 = vmatmul.mubr.bf16.gmra.mrb[0].mxu0 %v1546
    %v1581 = vpop.f32.mrb[0].mxu0
    %v1582 = vadd.f32 0.0, %v1581
    %v1583 = vpop.f32.mrb[0].mxu0
    %v1584 = vadd.f32 0.0, %v1583
    %v1585 = vpop.f32.mrb[0].mxu0
    %v1586 = vpop.f32.mrb[0].mxu0
    %1587 = vdwg.mxu0
    %1588 = vmatprep.subr.bf16.mxu0 %v300
    %1589 = vmatpush1.bf16.msra.mxu0 %v299
    %1590 = vmatprep.subr.bf16.mxu0 %v306
    %1591 = vmatpush1.bf16.msra.mxu0 %v305
    %1592 = vmatprep.subr.bf16.mxu0 %v312
    %1593 = vmatpush1.bf16.msra.mxu0 %v311
    %1594 = vmatprep.subr.bf16.mxu0 %v318
    %1595 = vmatpush1.bf16.msra.mxu0 %v317
    %1596 = vmatprep.subr.bf16.mxu0 %v324
    %1597 = vmatpush1.bf16.msra.mxu0 %v323
    %1598 = vmatprep.subr.bf16.mxu0 %v330
    %1599 = vmatpush1.bf16.msra.mxu0 %v329
    %1600 = vmatprep.subr.bf16.mxu0 %v336
    %1601 = vmatpush1.bf16.msra.mxu0 %v335
    %1602 = vmatprep.subr.bf16.mxu0 %v342
    %1603 = vmatpush1.bf16.msra.mxu0 %v341
    %1604 = vmatprep.subr.bf16.mxu0 0
    %1605 = vmatpush1.bf16.msra.mxu0 0
    %1606 = vmatprep.subr.bf16.mxu0 0
    %1607 = vmatpush1.bf16.msra.mxu0 0
    %1608 = vmatprep.subr.bf16.mxu0 0
    %1609 = vmatpush1.bf16.msra.mxu0 0
    %1610 = vmatprep.subr.bf16.mxu0 0
    %1611 = vmatpush1.bf16.msra.mxu0 0
    %1612 = vmatprep.subr.bf16.mxu0 0
    %1613 = vmatpush1.bf16.msra.mxu0 0
    %1614 = vmatprep.subr.bf16.mxu0 0
    %1615 = vmatpush1.bf16.msra.mxu0 0
    %1616 = vmatprep.subr.bf16.mxu0 0
    %1617 = vmatpush1.bf16.msra.mxu0 0
    %1618 = vmatprep.subr.bf16.mxu0 0
    %1619 = vmatpush1.bf16.msra.mxu0 0
    %1620 = vmatprep.mubr.bf16.mxu0 0
    %1621 = vmatmul.mubr.bf16.gmra.mrb[0].mxu0 %v1546
    %v1622 = vpop.f32.mrb[0].mxu0
    %v1623 = vadd.f32 0.0, %v1622
    %v1624 = vpop.f32.mrb[0].mxu0
    %v1625 = vadd.f32 0.0, %v1624
    %v1626 = vpop.f32.mrb[0].mxu0
    %v1627 = vpop.f32.mrb[0].mxu0
    %1628 = vdwg.mxu0
    %1629 = vmatprep.subr.bf16.mxu0 %v302
    %1630 = vmatpush1.bf16.msra.mxu0 %v301
    %1631 = vmatprep.subr.bf16.mxu0 %v308
    %1632 = vmatpush1.bf16.msra.mxu0 %v307
    %1633 = vmatprep.subr.bf16.mxu0 %v314
    %1634 = vmatpush1.bf16.msra.mxu0 %v313
    %1635 = vmatprep.subr.bf16.mxu0 %v320
    %1636 = vmatpush1.bf16.msra.mxu0 %v319
    %1637 = vmatprep.subr.bf16.mxu0 %v326
    %1638 = vmatpush1.bf16.msra.mxu0 %v325
    %1639 = vmatprep.subr.bf16.mxu0 %v332
    %1640 = vmatpush1.bf16.msra.mxu0 %v331
    %1641 = vmatprep.subr.bf16.mxu0 %v338
    %1642 = vmatpush1.bf16.msra.mxu0 %v337
    %1643 = vmatprep.subr.bf16.mxu0 %v344
    %1644 = vmatpush1.bf16.msra.mxu0 %v343
    %1645 = vmatprep.subr.bf16.mxu0 0
    %1646 = vmatpush1.bf16.msra.mxu0 0
    %1647 = vmatprep.subr.bf16.mxu0 0
    %1648 = vmatpush1.bf16.msra.mxu0 0
    %1649 = vmatprep.subr.bf16.mxu0 0
    %1650 = vmatpush1.bf16.msra.mxu0 0
    %1651 = vmatprep.subr.bf16.mxu0 0
    %1652 = vmatpush1.bf16.msra.mxu0 0
    %1653 = vmatprep.subr.bf16.mxu0 0
    %1654 = vmatpush1.bf16.msra.mxu0 0
    %1655 = vmatprep.subr.bf16.mxu0 0
    %1656 = vmatpush1.bf16.msra.mxu0 0
    %1657 = vmatprep.subr.bf16.mxu0 0
    %1658 = vmatpush1.bf16.msra.mxu0 0
    %1659 = vmatprep.subr.bf16.mxu0 0
    %1660 = vmatpush1.bf16.msra.mxu0 0
    %1661 = vmatprep.mubr.bf16.mxu0 0
    %1662 = vmatmul.mubr.bf16.gmra.mrb[0].mxu0 %v1546
    %v1663 = vpop.f32.mrb[0].mxu0
    %v1664 = vadd.f32 0.0, %v1663
    %v1665 = vpop.f32.mrb[0].mxu0
    %v1666 = vadd.f32 0.0, %v1665
    %v1667 = vpop.f32.mrb[0].mxu0
    %v1668 = vpop.f32.mrb[0].mxu0
    %1669 = vdwg.mxu0
    %v1670 = vadd.f32 %v1625, %v520
    %v1671 = vadd.f32 %v1664, %v524
    %v1672 = vadd.f32 %v1666, %v528
    %v1673 = vpack.c.bf16 %v1511, %v1511
    %1674 = vmatprep.subr.bf16.mxu0 %v832
    %1675 = vmatpush1.bf16.msra.mxu0 %v831
    %1676 = vmatprep.subr.bf16.mxu0 %v835
    %1677 = vmatpush1.bf16.msra.mxu0 %v834
    %1678 = vmatprep.subr.bf16.mxu0 %v838
    %1679 = vmatpush1.bf16.msra.mxu0 %v837
    %1680 = vmatprep.subr.bf16.mxu0 %v841
    %1681 = vmatpush1.bf16.msra.mxu0 %v840
    %1682 = vmatprep.subr.bf16.mxu0 %v844
    %1683 = vmatpush1.bf16.msra.mxu0 %v843
    %1684 = vmatprep.subr.bf16.mxu0 %v847
    %1685 = vmatpush1.bf16.msra.mxu0 %v846
    %1686 = vmatprep.subr.bf16.mxu0 %v850
    %1687 = vmatpush1.bf16.msra.mxu0 %v849
    %1688 = vmatprep.subr.bf16.mxu0 %v853
    %1689 = vmatpush1.bf16.msra.mxu0 %v852
    %1690 = vmatprep.subr.bf16.mxu0 0
    %1691 = vmatpush1.bf16.msra.mxu0 0
    %1692 = vmatprep.subr.bf16.mxu0 0
    %1693 = vmatpush1.bf16.msra.mxu0 0
    %1694 = vmatprep.subr.bf16.mxu0 0
    %1695 = vmatpush1.bf16.msra.mxu0 0
    %1696 = vmatprep.subr.bf16.mxu0 0
    %1697 = vmatpush1.bf16.msra.mxu0 0
    %1698 = vmatprep.subr.bf16.mxu0 0
    %1699 = vmatpush1.bf16.msra.mxu0 0
    %1700 = vmatprep.subr.bf16.mxu0 0
    %1701 = vmatpush1.bf16.msra.mxu0 0
    %1702 = vmatprep.subr.bf16.mxu0 0
    %1703 = vmatpush1.bf16.msra.mxu0 0
    %1704 = vmatprep.subr.bf16.mxu0 0
    %1705 = vmatpush1.bf16.msra.mxu0 0
    %1706 = vmatprep.mubr.bf16.mxu0 0
    %1707 = vmatmul.mubr.bf16.gmra.mrb[0].mxu0 %v1673
    %v1708 = vpop.f32.mrb[0].mxu0
    %v1709 = vadd.f32 0.0, %v1708
    %v1710 = vpop.f32.mrb[0].mxu0
    %v1711 = vadd.f32 0.0, %v1710
    %v1712 = vpop.f32.mrb[0].mxu0
    %v1713 = vpop.f32.mrb[0].mxu0
    %1714 = vdwg.mxu0
    %1715 = vmatprep.subr.bf16.mxu0 0
    %1716 = vmatpush1.bf16.msra.mxu0 %v833
    %1717 = vmatprep.subr.bf16.mxu0 0
    %1718 = vmatpush1.bf16.msra.mxu0 %v836
    %1719 = vmatprep.subr.bf16.mxu0 0
    %1720 = vmatpush1.bf16.msra.mxu0 %v839
    %1721 = vmatprep.subr.bf16.mxu0 0
    %1722 = vmatpush1.bf16.msra.mxu0 %v842
    %1723 = vmatprep.subr.bf16.mxu0 0
    %1724 = vmatpush1.bf16.msra.mxu0 %v845
    %1725 = vmatprep.subr.bf16.mxu0 0
    %1726 = vmatpush1.bf16.msra.mxu0 %v848
    %1727 = vmatprep.subr.bf16.mxu0 0
    %1728 = vmatpush1.bf16.msra.mxu0 %v851
    %1729 = vmatprep.subr.bf16.mxu0 0
    %1730 = vmatpush1.bf16.msra.mxu0 %v854
    %1731 = vmatprep.subr.bf16.mxu0 0
    %1732 = vmatpush1.bf16.msra.mxu0 0
    %1733 = vmatprep.subr.bf16.mxu0 0
    %1734 = vmatpush1.bf16.msra.mxu0 0
    %1735 = vmatprep.subr.bf16.mxu0 0
    %1736 = vmatpush1.bf16.msra.mxu0 0
    %1737 = vmatprep.subr.bf16.mxu0 0
    %1738 = vmatpush1.bf16.msra.mxu0 0
    %1739 = vmatprep.subr.bf16.mxu0 0
    %1740 = vmatpush1.bf16.msra.mxu0 0
    %1741 = vmatprep.subr.bf16.mxu0 0
    %1742 = vmatpush1.bf16.msra.mxu0 0
    %1743 = vmatprep.subr.bf16.mxu0 0
    %1744 = vmatpush1.bf16.msra.mxu0 0
    %1745 = vmatprep.subr.bf16.mxu0 0
    %1746 = vmatpush1.bf16.msra.mxu0 0
    %1747 = vmatprep.mubr.bf16.mxu0 0
    %1748 = vmatmul.mubr.bf16.gmra.mrb[0].mxu0 %v1673
    %v1749 = vpop.f32.mrb[0].mxu0
    %v1750 = vadd.f32 0.0, %v1749
    %v1751 = vpop.f32.mrb[0].mxu0
    %v1752 = vpop.f32.mrb[0].mxu0
    %v1753 = vpop.f32.mrb[0].mxu0
    %1754 = vdwg.mxu0
    %v1755 = vadd.f32 %v1670, %v1709
    %v1756 = vadd.f32 %v1671, %v1711
    %v1757 = vxor.u32 %v1755, 2147483648
    %v1758 = vxor.u32 %v1756, 2147483648
    %v1759 = vmul.f32 %v1757, 1.442695
    %v1760 = vpow.pop %v1759
    %v1761 = vmul.f32 %v1758, 1.442695
    %v1762 = vpow.pop %v1761
    %v1763 = vadd.f32 %v1760, 1.0
    %v1764 = vadd.f32 %v1762, 1.0
    %v1765 = vrcp.pop %v1763
    %v1766 = vmul.f32 1.0, %v1765
    %v1767 = vrcp.pop %v1764
    %v1768 = vmul.f32 1.0, %v1767
    %v1769 = vadd.f32 %v1750, %v35
    %v1770 = vmul.f32 %v1766, %v1769
    %v1771 = vadd.f32 %v1672, %v1770
    %v1772 = vtanh.pop %v1771
    %v1773 = vsub.f32 1.0, %v1768
    %v1774 = vmul.f32 %v1773, %v1772
    %v1775 = vmul.f32 %v1768, %v1511
    %v1776 = vadd.f32 %v1774, %v1775
    %v1777 = vld [vmem:[%s0 + $0x28] sm:$0xff]
    %1779 = vset.pattern.permute.xlu0 0
    %1780 = vperm.xlu0 %1779, %v1777
    %v1781 = vpop.permute.xlu0 %1780
    %v1783 = vmul.f32 %v1781, %v48
    %v1784 = vmul.f32 %v1781, %v52
    %v1785 = vmul.f32 %v1781, %v56
    %v1786 = vadd.f32 %v1783, %v67
    %v1787 = vadd.f32 %v1784, %v71
    %v1788 = vadd.f32 %v1785, %v75
    %v1789 = vadd.f32 %v1786, %v1582
    %v1790 = vadd.f32 %v1787, %v1584
    %v1791 = vxor.u32 %v1789, 2147483648
    %v1792 = vxor.u32 %v1790, 2147483648
    %v1793 = vmul.f32 %v1791, 1.442695
    %v1794 = vpow.pop %v1793
    %v1795 = vmul.f32 %v1792, 1.442695
    %v1796 = vpow.pop %v1795
    %v1797 = vadd.f32 %v1794, 1.0
    %v1798 = vadd.f32 %v1796, 1.0
    %v1799 = vrcp.pop %v1797
    %v1800 = vmul.f32 1.0, %v1799
    %v1801 = vrcp.pop %v1798
    %v1802 = vmul.f32 1.0, %v1801
    %v1803 = vadd.f32 %v1623, %v34
    %v1804 = vmul.f32 %v1800, %v1803
    %v1805 = vadd.f32 %v1788, %v1804
    %v1806 = vtanh.pop %v1805
    %v1807 = vsub.f32 1.0, %v1802
    %v1808 = vmul.f32 %v1807, %v1806
    %v1809 = vmul.f32 %v1802, %v1545
    %v1810 = vadd.f32 %v1808, %v1809
    %v1811 = vpack.c.bf16 %v1810, %v1810
    %1812 = vmatprep.subr.bf16.mxu0 %v298
    %1813 = vmatpush1.bf16.msra.mxu0 %v297
    %1814 = vmatprep.subr.bf16.mxu0 %v304
    %1815 = vmatpush1.bf16.msra.mxu0 %v303
    %1816 = vmatprep.subr.bf16.mxu0 %v310
    %1817 = vmatpush1.bf16.msra.mxu0 %v309
    %1818 = vmatprep.subr.bf16.mxu0 %v316
    %1819 = vmatpush1.bf16.msra.mxu0 %v315
    %1820 = vmatprep.subr.bf16.mxu0 %v322
    %1821 = vmatpush1.bf16.msra.mxu0 %v321
    %1822 = vmatprep.subr.bf16.mxu0 %v328
    %1823 = vmatpush1.bf16.msra.mxu0 %v327
    %1824 = vmatprep.subr.bf16.mxu0 %v334
    %1825 = vmatpush1.bf16.msra.mxu0 %v333
    %1826 = vmatprep.subr.bf16.mxu0 %v340
    %1827 = vmatpush1.bf16.msra.mxu0 %v339
    %1828 = vmatprep.subr.bf16.mxu0 0
    %1829 = vmatpush1.bf16.msra.mxu0 0
    %1830 = vmatprep.subr.bf16.mxu0 0
    %1831 = vmatpush1.bf16.msra.mxu0 0
    %1832 = vmatprep.subr.bf16.mxu0 0
    %1833 = vmatpush1.bf16.msra.mxu0 0
    %1834 = vmatprep.subr.bf16.mxu0 0
    %1835 = vmatpush1.bf16.msra.mxu0 0
    %1836 = vmatprep.subr.bf16.mxu0 0
    %1837 = vmatpush1.bf16.msra.mxu0 0
    %1838 = vmatprep.subr.bf16.mxu0 0
    %1839 = vmatpush1.bf16.msra.mxu0 0
    %1840 = vmatprep.subr.bf16.mxu0 0
    %1841 = vmatpush1.bf16.msra.mxu0 0
    %1842 = vmatprep.subr.bf16.mxu0 0
    %1843 = vmatpush1.bf16.msra.mxu0 0
    %1844 = vmatprep.mubr.bf16.mxu0 0
    %1845 = vmatmul.mubr.bf16.gmra.mrb[0].mxu0 %v1811
    %v1846 = vpop.f32.mrb[0].mxu0
    %v1847 = vadd.f32 0.0, %v1846
    %v1848 = vpop.f32.mrb[0].mxu0
    %v1849 = vadd.f32 0.0, %v1848
    %v1850 = vpop.f32.mrb[0].mxu0
    %v1851 = vpop.f32.mrb[0].mxu0
    %1852 = vdwg.mxu0
    %1853 = vmatprep.subr.bf16.mxu0 %v300
    %1854 = vmatpush1.bf16.msra.mxu0 %v299
    %1855 = vmatprep.subr.bf16.mxu0 %v306
    %1856 = vmatpush1.bf16.msra.mxu0 %v305
    %1857 = vmatprep.subr.bf16.mxu0 %v312
    %1858 = vmatpush1.bf16.msra.mxu0 %v311
    %1859 = vmatprep.subr.bf16.mxu0 %v318
    %1860 = vmatpush1.bf16.msra.mxu0 %v317
    %1861 = vmatprep.subr.bf16.mxu0 %v324
    %1862 = vmatpush1.bf16.msra.mxu0 %v323
    %1863 = vmatprep.subr.bf16.mxu0 %v330
    %1864 = vmatpush1.bf16.msra.mxu0 %v329
    %1865 = vmatprep.subr.bf16.mxu0 %v336
    %1866 = vmatpush1.bf16.msra.mxu0 %v335
    %1867 = vmatprep.subr.bf16.mxu0 %v342
    %1868 = vmatpush1.bf16.msra.mxu0 %v341
    %1869 = vmatprep.subr.bf16.mxu0 0
    %1870 = vmatpush1.bf16.msra.mxu0 0
    %1871 = vmatprep.subr.bf16.mxu0 0
    %1872 = vmatpush1.bf16.msra.mxu0 0
    %1873 = vmatprep.subr.bf16.mxu0 0
    %1874 = vmatpush1.bf16.msra.mxu0 0
    %1875 = vmatprep.subr.bf16.mxu0 0
    %1876 = vmatpush1.bf16.msra.mxu0 0
    %1877 = vmatprep.subr.bf16.mxu0 0
    %1878 = vmatpush1.bf16.msra.mxu0 0
    %1879 = vmatprep.subr.bf16.mxu0 0
    %1880 = vmatpush1.bf16.msra.mxu0 0
    %1881 = vmatprep.subr.bf16.mxu0 0
    %1882 = vmatpush1.bf16.msra.mxu0 0
    %1883 = vmatprep.subr.bf16.mxu0 0
    %1884 = vmatpush1.bf16.msra.mxu0 0
    %1885 = vmatprep.mubr.bf16.mxu0 0
    %1886 = vmatmul.mubr.bf16.gmra.mrb[0].mxu0 %v1811
    %v1887 = vpop.f32.mrb[0].mxu0
    %v1888 = vadd.f32 0.0, %v1887
    %v1889 = vpop.f32.mrb[0].mxu0
    %v1890 = vadd.f32 0.0, %v1889
    %v1891 = vpop.f32.mrb[0].mxu0
    %v1892 = vpop.f32.mrb[0].mxu0
    %1893 = vdwg.mxu0
    %1894 = vmatprep.subr.bf16.mxu0 %v302
    %1895 = vmatpush1.bf16.msra.mxu0 %v301
    %1896 = vmatprep.subr.bf16.mxu0 %v308
    %1897 = vmatpush1.bf16.msra.mxu0 %v307
    %1898 = vmatprep.subr.bf16.mxu0 %v314
    %1899 = vmatpush1.bf16.msra.mxu0 %v313
    %1900 = vmatprep.subr.bf16.mxu0 %v320
    %1901 = vmatpush1.bf16.msra.mxu0 %v319
    %1902 = vmatprep.subr.bf16.mxu0 %v326
    %1903 = vmatpush1.bf16.msra.mxu0 %v325
    %1904 = vmatprep.subr.bf16.mxu0 %v332
    %1905 = vmatpush1.bf16.msra.mxu0 %v331
    %1906 = vmatprep.subr.bf16.mxu0 %v338
    %1907 = vmatpush1.bf16.msra.mxu0 %v337
    %1908 = vmatprep.subr.bf16.mxu0 %v344
    %1909 = vmatpush1.bf16.msra.mxu0 %v343
    %1910 = vmatprep.subr.bf16.mxu0 0
    %1911 = vmatpush1.bf16.msra.mxu0 0
    %1912 = vmatprep.subr.bf16.mxu0 0
    %1913 = vmatpush1.bf16.msra.mxu0 0
    %1914 = vmatprep.subr.bf16.mxu0 0
    %1915 = vmatpush1.bf16.msra.mxu0 0
    %1916 = vmatprep.subr.bf16.mxu0 0
    %1917 = vmatpush1.bf16.msra.mxu0 0
    %1918 = vmatprep.subr.bf16.mxu0 0
    %1919 = vmatpush1.bf16.msra.mxu0 0
    %1920 = vmatprep.subr.bf16.mxu0 0
    %1921 = vmatpush1.bf16.msra.mxu0 0
    %1922 = vmatprep.subr.bf16.mxu0 0
    %1923 = vmatpush1.bf16.msra.mxu0 0
    %1924 = vmatprep.subr.bf16.mxu0 0
    %1925 = vmatpush1.bf16.msra.mxu0 0
    %1926 = vmatprep.mubr.bf16.mxu0 0
    %1927 = vmatmul.mubr.bf16.gmra.mrb[0].mxu0 %v1811
    %v1928 = vpop.f32.mrb[0].mxu0
    %v1929 = vadd.f32 0.0, %v1928
    %v1930 = vpop.f32.mrb[0].mxu0
    %v1931 = vadd.f32 0.0, %v1930
    %v1932 = vpop.f32.mrb[0].mxu0
    %v1933 = vpop.f32.mrb[0].mxu0
    %1934 = vdwg.mxu0
    %v1935 = vadd.f32 %v1890, %v520
    %v1936 = vadd.f32 %v1929, %v524
    %v1937 = vadd.f32 %v1931, %v528
    %v1938 = vpack.c.bf16 %v1776, %v1776
    %1939 = vmatprep.subr.bf16.mxu0 %v832
    %1940 = vmatpush1.bf16.msra.mxu0 %v831
    %1941 = vmatprep.subr.bf16.mxu0 %v835
    %1942 = vmatpush1.bf16.msra.mxu0 %v834
    %1943 = vmatprep.subr.bf16.mxu0 %v838
    %1944 = vmatpush1.bf16.msra.mxu0 %v837
    %1945 = vmatprep.subr.bf16.mxu0 %v841
    %1946 = vmatpush1.bf16.msra.mxu0 %v840
    %1947 = vmatprep.subr.bf16.mxu0 %v844
    %1948 = vmatpush1.bf16.msra.mxu0 %v843
    %1949 = vmatprep.subr.bf16.mxu0 %v847
    %1950 = vmatpush1.bf16.msra.mxu0 %v846
    %1951 = vmatprep.subr.bf16.mxu0 %v850
    %1952 = vmatpush1.bf16.msra.mxu0 %v849
    %1953 = vmatprep.subr.bf16.mxu0 %v853
    %1954 = vmatpush1.bf16.msra.mxu0 %v852
    %1955 = vmatprep.subr.bf16.mxu0 0
    %1956 = vmatpush1.bf16.msra.mxu0 0
    %1957 = vmatprep.subr.bf16.mxu0 0
    %1958 = vmatpush1.bf16.msra.mxu0 0
    %1959 = vmatprep.subr.bf16.mxu0 0
    %1960 = vmatpush1.bf16.msra.mxu0 0
    %1961 = vmatprep.subr.bf16.mxu0 0
    %1962 = vmatpush1.bf16.msra.mxu0 0
    %1963 = vmatprep.subr.bf16.mxu0 0
    %1964 = vmatpush1.bf16.msra.mxu0 0
    %1965 = vmatprep.subr.bf16.mxu0 0
    %1966 = vmatpush1.bf16.msra.mxu0 0
    %1967 = vmatprep.subr.bf16.mxu0 0
    %1968 = vmatpush1.bf16.msra.mxu0 0
    %1969 = vmatprep.subr.bf16.mxu0 0
    %1970 = vmatpush1.bf16.msra.mxu0 0
    %1971 = vmatprep.mubr.bf16.mxu0 0
    %1972 = vmatmul.mubr.bf16.gmra.mrb[0].mxu0 %v1938
    %v1973 = vpop.f32.mrb[0].mxu0
    %v1974 = vadd.f32 0.0, %v1973
    %v1975 = vpop.f32.mrb[0].mxu0
    %v1976 = vadd.f32 0.0, %v1975
    %v1977 = vpop.f32.mrb[0].mxu0
    %v1978 = vpop.f32.mrb[0].mxu0
    %1979 = vdwg.mxu0
    %1980 = vmatprep.subr.bf16.mxu0 0
    %1981 = vmatpush1.bf16.msra.mxu0 %v833
    %1982 = vmatprep.subr.bf16.mxu0 0
    %1983 = vmatpush1.bf16.msra.mxu0 %v836
    %1984 = vmatprep.subr.bf16.mxu0 0
    %1985 = vmatpush1.bf16.msra.mxu0 %v839
    %1986 = vmatprep.subr.bf16.mxu0 0
    %1987 = vmatpush1.bf16.msra.mxu0 %v842
    %1988 = vmatprep.subr.bf16.mxu0 0
    %1989 = vmatpush1.bf16.msra.mxu0 %v845
    %1990 = vmatprep.subr.bf16.mxu0 0
    %1991 = vmatpush1.bf16.msra.mxu0 %v848
    %1992 = vmatprep.subr.bf16.mxu0 0
    %1993 = vmatpush1.bf16.msra.mxu0 %v851
    %1994 = vmatprep.subr.bf16.mxu0 0
    %1995 = vmatpush1.bf16.msra.mxu0 %v854
    %1996 = vmatprep.subr.bf16.mxu0 0
    %1997 = vmatpush1.bf16.msra.mxu0 0
    %1998 = vmatprep.subr.bf16.mxu0 0
    %1999 = vmatpush1.bf16.msra.mxu0 0
    %2000 = vmatprep.subr.bf16.mxu0 0
    %2001 = vmatpush1.bf16.msra.mxu0 0
    %2002 = vmatprep.subr.bf16.mxu0 0
    %2003 = vmatpush1.bf16.msra.mxu0 0
    %2004 = vmatprep.subr.bf16.mxu0 0
    %2005 = vmatpush1.bf16.msra.mxu0 0
    %2006 = vmatprep.subr.bf16.mxu0 0
    %2007 = vmatpush1.bf16.msra.mxu0 0
    %2008 = vmatprep.subr.bf16.mxu0 0
    %2009 = vmatpush1.bf16.msra.mxu0 0
    %2010 = vmatprep.subr.bf16.mxu0 0
    %2011 = vmatpush1.bf16.msra.mxu0 0
    %2012 = vmatprep.mubr.bf16.mxu0 0
    %2013 = vmatmul.mubr.bf16.gmra.mrb[0].mxu0 %v1938
    %v2014 = vpop.f32.mrb[0].mxu0
    %v2015 = vadd.f32 0.0, %v2014
    %v2016 = vpop.f32.mrb[0].mxu0
    %v2017 = vpop.f32.mrb[0].mxu0
    %v2018 = vpop.f32.mrb[0].mxu0
    %2019 = vdwg.mxu0
    %v2020 = vadd.f32 %v1935, %v1974
    %v2021 = vadd.f32 %v1936, %v1976
    %v2022 = vxor.u32 %v2020, 2147483648
    %v2023 = vxor.u32 %v2021, 2147483648
    %v2024 = vmul.f32 %v2022, 1.442695
    %v2025 = vpow.pop %v2024
    %v2026 = vmul.f32 %v2023, 1.442695
    %v2027 = vpow.pop %v2026
    %v2028 = vadd.f32 %v2025, 1.0
    %v2029 = vadd.f32 %v2027, 1.0
    %v2030 = vrcp.pop %v2028
    %v2031 = vmul.f32 1.0, %v2030
    %v2032 = vrcp.pop %v2029
    %v2033 = vmul.f32 1.0, %v2032
    %v2034 = vadd.f32 %v2015, %v35
    %v2035 = vmul.f32 %v2031, %v2034
    %v2036 = vadd.f32 %v1937, %v2035
    %v2037 = vtanh.pop %v2036
    %v2038 = vsub.f32 1.0, %v2033
    %v2039 = vmul.f32 %v2038, %v2037
    %v2040 = vmul.f32 %v2033, %v1776
    %v2041 = vadd.f32 %v2039, %v2040
    %v2042 = vld [vmem:[%s0 + $0x30] sm:$0xff]
    %2044 = vset.pattern.permute.xlu0 0
    %2045 = vperm.xlu0 %2044, %v2042
    %v2046 = vpop.permute.xlu0 %2045
    %v2048 = vmul.f32 %v2046, %v48
    %v2049 = vmul.f32 %v2046, %v52
    %v2050 = vmul.f32 %v2046, %v56
    %v2051 = vadd.f32 %v2048, %v67
    %v2052 = vadd.f32 %v2049, %v71
    %v2053 = vadd.f32 %v2050, %v75
    %v2054 = vadd.f32 %v2051, %v1847
    %v2055 = vadd.f32 %v2052, %v1849
    %v2056 = vxor.u32 %v2054, 2147483648
    %v2057 = vxor.u32 %v2055, 2147483648
    %v2058 = vmul.f32 %v2056, 1.442695
    %v2059 = vpow.pop %v2058
    %v2060 = vmul.f32 %v2057, 1.442695
    %v2061 = vpow.pop %v2060
    %v2062 = vadd.f32 %v2059, 1.0
    %v2063 = vadd.f32 %v2061, 1.0
    %v2064 = vrcp.pop %v2062
    %v2065 = vmul.f32 1.0, %v2064
    %v2066 = vrcp.pop %v2063
    %v2067 = vmul.f32 1.0, %v2066
    %v2068 = vadd.f32 %v1888, %v34
    %v2069 = vmul.f32 %v2065, %v2068
    %v2070 = vadd.f32 %v2053, %v2069
    %v2071 = vtanh.pop %v2070
    %v2072 = vsub.f32 1.0, %v2067
    %v2073 = vmul.f32 %v2072, %v2071
    %v2074 = vmul.f32 %v2067, %v1810
    %v2075 = vadd.f32 %v2073, %v2074
    %v2076 = vpack.c.bf16 %v2075, %v2075
    %2077 = vmatprep.subr.bf16.mxu0 %v298
    %2078 = vmatpush1.bf16.msra.mxu0 %v297
    %2079 = vmatprep.subr.bf16.mxu0 %v304
    %2080 = vmatpush1.bf16.msra.mxu0 %v303
    %2081 = vmatprep.subr.bf16.mxu0 %v310
    %2082 = vmatpush1.bf16.msra.mxu0 %v309
    %2083 = vmatprep.subr.bf16.mxu0 %v316
    %2084 = vmatpush1.bf16.msra.mxu0 %v315
    %2085 = vmatprep.subr.bf16.mxu0 %v322
    %2086 = vmatpush1.bf16.msra.mxu0 %v321
    %2087 = vmatprep.subr.bf16.mxu0 %v328
    %2088 = vmatpush1.bf16.msra.mxu0 %v327
    %2089 = vmatprep.subr.bf16.mxu0 %v334
    %2090 = vmatpush1.bf16.msra.mxu0 %v333
    %2091 = vmatprep.subr.bf16.mxu0 %v340
    %2092 = vmatpush1.bf16.msra.mxu0 %v339
    %2093 = vmatprep.subr.bf16.mxu0 0
    %2094 = vmatpush1.bf16.msra.mxu0 0
    %2095 = vmatprep.subr.bf16.mxu0 0
    %2096 = vmatpush1.bf16.msra.mxu0 0
    %2097 = vmatprep.subr.bf16.mxu0 0
    %2098 = vmatpush1.bf16.msra.mxu0 0
    %2099 = vmatprep.subr.bf16.mxu0 0
    %2100 = vmatpush1.bf16.msra.mxu0 0
    %2101 = vmatprep.subr.bf16.mxu0 0
    %2102 = vmatpush1.bf16.msra.mxu0 0
    %2103 = vmatprep.subr.bf16.mxu0 0
    %2104 = vmatpush1.bf16.msra.mxu0 0
    %2105 = vmatprep.subr.bf16.mxu0 0
    %2106 = vmatpush1.bf16.msra.mxu0 0
    %2107 = vmatprep.subr.bf16.mxu0 0
    %2108 = vmatpush1.bf16.msra.mxu0 0
    %2109 = vmatprep.mubr.bf16.mxu0 0
    %2110 = vmatmul.mubr.bf16.gmra.mrb[0].mxu0 %v2076
    %v2111 = vpop.f32.mrb[0].mxu0
    %v2112 = vadd.f32 0.0, %v2111
    %v2113 = vpop.f32.mrb[0].mxu0
    %v2114 = vadd.f32 0.0, %v2113
    %v2115 = vpop.f32.mrb[0].mxu0
    %v2116 = vpop.f32.mrb[0].mxu0
    %2117 = vdwg.mxu0
    %2118 = vmatprep.subr.bf16.mxu0 %v300
    %2119 = vmatpush1.bf16.msra.mxu0 %v299
    %2120 = vmatprep.subr.bf16.mxu0 %v306
    %2121 = vmatpush1.bf16.msra.mxu0 %v305
    %2122 = vmatprep.subr.bf16.mxu0 %v312
    %2123 = vmatpush1.bf16.msra.mxu0 %v311
    %2124 = vmatprep.subr.bf16.mxu0 %v318
    %2125 = vmatpush1.bf16.msra.mxu0 %v317
    %2126 = vmatprep.subr.bf16.mxu0 %v324
    %2127 = vmatpush1.bf16.msra.mxu0 %v323
    %2128 = vmatprep.subr.bf16.mxu0 %v330
    %2129 = vmatpush1.bf16.msra.mxu0 %v329
    %2130 = vmatprep.subr.bf16.mxu0 %v336
    %2131 = vmatpush1.bf16.msra.mxu0 %v335
    %2132 = vmatprep.subr.bf16.mxu0 %v342
    %2133 = vmatpush1.bf16.msra.mxu0 %v341
    %2134 = vmatprep.subr.bf16.mxu0 0
    %2135 = vmatpush1.bf16.msra.mxu0 0
    %2136 = vmatprep.subr.bf16.mxu0 0
    %2137 = vmatpush1.bf16.msra.mxu0 0
    %2138 = vmatprep.subr.bf16.mxu0 0
    %2139 = vmatpush1.bf16.msra.mxu0 0
    %2140 = vmatprep.subr.bf16.mxu0 0
    %2141 = vmatpush1.bf16.msra.mxu0 0
    %2142 = vmatprep.subr.bf16.mxu0 0
    %2143 = vmatpush1.bf16.msra.mxu0 0
    %2144 = vmatprep.subr.bf16.mxu0 0
    %2145 = vmatpush1.bf16.msra.mxu0 0
    %2146 = vmatprep.subr.bf16.mxu0 0
    %2147 = vmatpush1.bf16.msra.mxu0 0
    %2148 = vmatprep.subr.bf16.mxu0 0
    %2149 = vmatpush1.bf16.msra.mxu0 0
    %2150 = vmatprep.mubr.bf16.mxu0 0
    %2151 = vmatmul.mubr.bf16.gmra.mrb[0].mxu0 %v2076
    %v2152 = vpop.f32.mrb[0].mxu0
    %v2153 = vadd.f32 0.0, %v2152
    %v2154 = vpop.f32.mrb[0].mxu0
    %v2155 = vadd.f32 0.0, %v2154
    %v2156 = vpop.f32.mrb[0].mxu0
    %v2157 = vpop.f32.mrb[0].mxu0
    %2158 = vdwg.mxu0
    %2159 = vmatprep.subr.bf16.mxu0 %v302
    %2160 = vmatpush1.bf16.msra.mxu0 %v301
    %2161 = vmatprep.subr.bf16.mxu0 %v308
    %2162 = vmatpush1.bf16.msra.mxu0 %v307
    %2163 = vmatprep.subr.bf16.mxu0 %v314
    %2164 = vmatpush1.bf16.msra.mxu0 %v313
    %2165 = vmatprep.subr.bf16.mxu0 %v320
    %2166 = vmatpush1.bf16.msra.mxu0 %v319
    %2167 = vmatprep.subr.bf16.mxu0 %v326
    %2168 = vmatpush1.bf16.msra.mxu0 %v325
    %2169 = vmatprep.subr.bf16.mxu0 %v332
    %2170 = vmatpush1.bf16.msra.mxu0 %v331
    %2171 = vmatprep.subr.bf16.mxu0 %v338
    %2172 = vmatpush1.bf16.msra.mxu0 %v337
    %2173 = vmatprep.subr.bf16.mxu0 %v344
    %2174 = vmatpush1.bf16.msra.mxu0 %v343
    %2175 = vmatprep.subr.bf16.mxu0 0
    %2176 = vmatpush1.bf16.msra.mxu0 0
    %2177 = vmatprep.subr.bf16.mxu0 0
    %2178 = vmatpush1.bf16.msra.mxu0 0
    %2179 = vmatprep.subr.bf16.mxu0 0
    %2180 = vmatpush1.bf16.msra.mxu0 0
    %2181 = vmatprep.subr.bf16.mxu0 0
    %2182 = vmatpush1.bf16.msra.mxu0 0
    %2183 = vmatprep.subr.bf16.mxu0 0
    %2184 = vmatpush1.bf16.msra.mxu0 0
    %2185 = vmatprep.subr.bf16.mxu0 0
    %2186 = vmatpush1.bf16.msra.mxu0 0
    %2187 = vmatprep.subr.bf16.mxu0 0
    %2188 = vmatpush1.bf16.msra.mxu0 0
    %2189 = vmatprep.subr.bf16.mxu0 0
    %2190 = vmatpush1.bf16.msra.mxu0 0
    %2191 = vmatprep.mubr.bf16.mxu0 0
    %2192 = vmatmul.mubr.bf16.gmra.mrb[0].mxu0 %v2076
    %v2193 = vpop.f32.mrb[0].mxu0
    %v2194 = vadd.f32 0.0, %v2193
    %v2195 = vpop.f32.mrb[0].mxu0
    %v2196 = vadd.f32 0.0, %v2195
    %v2197 = vpop.f32.mrb[0].mxu0
    %v2198 = vpop.f32.mrb[0].mxu0
    %2199 = vdwg.mxu0
    %v2200 = vadd.f32 %v2155, %v520
    %v2201 = vadd.f32 %v2194, %v524
    %v2202 = vadd.f32 %v2196, %v528
    %v2203 = vpack.c.bf16 %v2041, %v2041
    %2204 = vmatprep.subr.bf16.mxu0 %v832
    %2205 = vmatpush1.bf16.msra.mxu0 %v831
    %2206 = vmatprep.subr.bf16.mxu0 %v835
    %2207 = vmatpush1.bf16.msra.mxu0 %v834
    %2208 = vmatprep.subr.bf16.mxu0 %v838
    %2209 = vmatpush1.bf16.msra.mxu0 %v837
    %2210 = vmatprep.subr.bf16.mxu0 %v841
    %2211 = vmatpush1.bf16.msra.mxu0 %v840
    %2212 = vmatprep.subr.bf16.mxu0 %v844
    %2213 = vmatpush1.bf16.msra.mxu0 %v843
    %2214 = vmatprep.subr.bf16.mxu0 %v847
    %2215 = vmatpush1.bf16.msra.mxu0 %v846
    %2216 = vmatprep.subr.bf16.mxu0 %v850
    %2217 = vmatpush1.bf16.msra.mxu0 %v849
    %2218 = vmatprep.subr.bf16.mxu0 %v853
    %2219 = vmatpush1.bf16.msra.mxu0 %v852
    %2220 = vmatprep.subr.bf16.mxu0 0
    %2221 = vmatpush1.bf16.msra.mxu0 0
    %2222 = vmatprep.subr.bf16.mxu0 0
    %2223 = vmatpush1.bf16.msra.mxu0 0
    %2224 = vmatprep.subr.bf16.mxu0 0
    %2225 = vmatpush1.bf16.msra.mxu0 0
    %2226 = vmatprep.subr.bf16.mxu0 0
    %2227 = vmatpush1.bf16.msra.mxu0 0
    %2228 = vmatprep.subr.bf16.mxu0 0
    %2229 = vmatpush1.bf16.msra.mxu0 0
    %2230 = vmatprep.subr.bf16.mxu0 0
    %2231 = vmatpush1.bf16.msra.mxu0 0
    %2232 = vmatprep.subr.bf16.mxu0 0
    %2233 = vmatpush1.bf16.msra.mxu0 0
    %2234 = vmatprep.subr.bf16.mxu0 0
    %2235 = vmatpush1.bf16.msra.mxu0 0
    %2236 = vmatprep.mubr.bf16.mxu0 0
    %2237 = vmatmul.mubr.bf16.gmra.mrb[0].mxu0 %v2203
    %v2238 = vpop.f32.mrb[0].mxu0
    %v2239 = vadd.f32 0.0, %v2238
    %v2240 = vpop.f32.mrb[0].mxu0
    %v2241 = vadd.f32 0.0, %v2240
    %v2242 = vpop.f32.mrb[0].mxu0
    %v2243 = vpop.f32.mrb[0].mxu0
    %2244 = vdwg.mxu0
    %2245 = vmatprep.subr.bf16.mxu0 0
    %2246 = vmatpush1.bf16.msra.mxu0 %v833
    %2247 = vmatprep.subr.bf16.mxu0 0
    %2248 = vmatpush1.bf16.msra.mxu0 %v836
    %2249 = vmatprep.subr.bf16.mxu0 0
    %2250 = vmatpush1.bf16.msra.mxu0 %v839
    %2251 = vmatprep.subr.bf16.mxu0 0
    %2252 = vmatpush1.bf16.msra.mxu0 %v842
    %2253 = vmatprep.subr.bf16.mxu0 0
    %2254 = vmatpush1.bf16.msra.mxu0 %v845
    %2255 = vmatprep.subr.bf16.mxu0 0
    %2256 = vmatpush1.bf16.msra.mxu0 %v848
    %2257 = vmatprep.subr.bf16.mxu0 0
    %2258 = vmatpush1.bf16.msra.mxu0 %v851
    %2259 = vmatprep.subr.bf16.mxu0 0
    %2260 = vmatpush1.bf16.msra.mxu0 %v854
    %2261 = vmatprep.subr.bf16.mxu0 0
    %2262 = vmatpush1.bf16.msra.mxu0 0
    %2263 = vmatprep.subr.bf16.mxu0 0
    %2264 = vmatpush1.bf16.msra.mxu0 0
    %2265 = vmatprep.subr.bf16.mxu0 0
    %2266 = vmatpush1.bf16.msra.mxu0 0
    %2267 = vmatprep.subr.bf16.mxu0 0
    %2268 = vmatpush1.bf16.msra.mxu0 0
    %2269 = vmatprep.subr.bf16.mxu0 0
    %2270 = vmatpush1.bf16.msra.mxu0 0
    %2271 = vmatprep.subr.bf16.mxu0 0
    %2272 = vmatpush1.bf16.msra.mxu0 0
    %2273 = vmatprep.subr.bf16.mxu0 0
    %2274 = vmatpush1.bf16.msra.mxu0 0
    %2275 = vmatprep.subr.bf16.mxu0 0
    %2276 = vmatpush1.bf16.msra.mxu0 0
    %2277 = vmatprep.mubr.bf16.mxu0 0
    %2278 = vmatmul.mubr.bf16.gmra.mrb[0].mxu0 %v2203
    %v2279 = vpop.f32.mrb[0].mxu0
    %v2280 = vadd.f32 0.0, %v2279
    %v2281 = vpop.f32.mrb[0].mxu0
    %v2282 = vpop.f32.mrb[0].mxu0
    %v2283 = vpop.f32.mrb[0].mxu0
    %2284 = vdwg.mxu0
    %v2285 = vadd.f32 %v2200, %v2239
    %v2286 = vadd.f32 %v2201, %v2241
    %v2287 = vxor.u32 %v2285, 2147483648
    %v2288 = vxor.u32 %v2286, 2147483648
    %v2289 = vmul.f32 %v2287, 1.442695
    %v2290 = vpow.pop %v2289
    %v2291 = vmul.f32 %v2288, 1.442695
    %v2292 = vpow.pop %v2291
    %v2293 = vadd.f32 %v2290, 1.0
    %v2294 = vadd.f32 %v2292, 1.0
    %v2295 = vrcp.pop %v2293
    %v2296 = vmul.f32 1.0, %v2295
    %v2297 = vrcp.pop %v2294
    %v2298 = vmul.f32 1.0, %v2297
    %v2299 = vadd.f32 %v2280, %v35
    %v2300 = vmul.f32 %v2296, %v2299
    %v2301 = vadd.f32 %v2202, %v2300
    %v2302 = vtanh.pop %v2301
    %v2303 = vsub.f32 1.0, %v2298
    %v2304 = vmul.f32 %v2303, %v2302
    %v2305 = vmul.f32 %v2298, %v2041
    %v2306 = vadd.f32 %v2304, %v2305
    %v2307 = vld [vmem:[%s0 + $0x38] sm:$0xff]
    %2309 = vset.pattern.permute.xlu0 0
    %2310 = vperm.xlu0 %2309, %v2307
    %v2311 = vpop.permute.xlu0 %2310
    %v2313 = vmul.f32 %v2311, %v48
    %v2314 = vmul.f32 %v2311, %v52
    %v2315 = vmul.f32 %v2311, %v56
    %v2316 = vadd.f32 %v2313, %v67
    %v2317 = vadd.f32 %v2314, %v71
    %v2318 = vadd.f32 %v2315, %v75
    %v2319 = vadd.f32 %v2316, %v2112
    %v2320 = vadd.f32 %v2317, %v2114
    %v2321 = vxor.u32 %v2319, 2147483648
    %v2322 = vxor.u32 %v2320, 2147483648
    %v2323 = vmul.f32 %v2321, 1.442695
    %v2324 = vpow.pop %v2323
    %v2325 = vmul.f32 %v2322, 1.442695
    %v2326 = vpow.pop %v2325
    %v2327 = vadd.f32 %v2324, 1.0
    %v2328 = vadd.f32 %v2326, 1.0
    %v2329 = vrcp.pop %v2327
    %v2330 = vmul.f32 1.0, %v2329
    %v2331 = vrcp.pop %v2328
    %v2332 = vmul.f32 1.0, %v2331
    %v2333 = vadd.f32 %v2153, %v34
    %v2334 = vmul.f32 %v2330, %v2333
    %v2335 = vadd.f32 %v2318, %v2334
    %v2336 = vtanh.pop %v2335
    %v2337 = vsub.f32 1.0, %v2332
    %v2338 = vmul.f32 %v2337, %v2336
    %v2339 = vmul.f32 %v2332, %v2075
    %v2340 = vadd.f32 %v2338, %v2339
    %v2341 = vpack.c.bf16 %v2340, %v2340
    %2342 = vmatprep.subr.bf16.mxu0 %v298
    %2343 = vmatpush1.bf16.msra.mxu0 %v297
    %2344 = vmatprep.subr.bf16.mxu0 %v304
    %2345 = vmatpush1.bf16.msra.mxu0 %v303
    %2346 = vmatprep.subr.bf16.mxu0 %v310
    %2347 = vmatpush1.bf16.msra.mxu0 %v309
    %2348 = vmatprep.subr.bf16.mxu0 %v316
    %2349 = vmatpush1.bf16.msra.mxu0 %v315
    %2350 = vmatprep.subr.bf16.mxu0 %v322
    %2351 = vmatpush1.bf16.msra.mxu0 %v321
    %2352 = vmatprep.subr.bf16.mxu0 %v328
    %2353 = vmatpush1.bf16.msra.mxu0 %v327
    %2354 = vmatprep.subr.bf16.mxu0 %v334
    %2355 = vmatpush1.bf16.msra.mxu0 %v333
    %2356 = vmatprep.subr.bf16.mxu0 %v340
    %2357 = vmatpush1.bf16.msra.mxu0 %v339
    %2358 = vmatprep.subr.bf16.mxu0 0
    %2359 = vmatpush1.bf16.msra.mxu0 0
    %2360 = vmatprep.subr.bf16.mxu0 0
    %2361 = vmatpush1.bf16.msra.mxu0 0
    %2362 = vmatprep.subr.bf16.mxu0 0
    %2363 = vmatpush1.bf16.msra.mxu0 0
    %2364 = vmatprep.subr.bf16.mxu0 0
    %2365 = vmatpush1.bf16.msra.mxu0 0
    %2366 = vmatprep.subr.bf16.mxu0 0
    %2367 = vmatpush1.bf16.msra.mxu0 0
    %2368 = vmatprep.subr.bf16.mxu0 0
    %2369 = vmatpush1.bf16.msra.mxu0 0
    %2370 = vmatprep.subr.bf16.mxu0 0
    %2371 = vmatpush1.bf16.msra.mxu0 0
    %2372 = vmatprep.subr.bf16.mxu0 0
    %2373 = vmatpush1.bf16.msra.mxu0 0
    %2374 = vmatprep.mubr.bf16.mxu0 0
    %2375 = vmatmul.mubr.bf16.gmra.mrb[0].mxu0 %v2341
    %v2376 = vpop.f32.mrb[0].mxu0
    %v2377 = vadd.f32 0.0, %v2376
    %v2378 = vpop.f32.mrb[0].mxu0
    %v2379 = vadd.f32 0.0, %v2378
    %v2380 = vpop.f32.mrb[0].mxu0
    %v2381 = vpop.f32.mrb[0].mxu0
    %2382 = vdwg.mxu0
    %2383 = vmatprep.subr.bf16.mxu0 %v300
    %2384 = vmatpush1.bf16.msra.mxu0 %v299
    %2385 = vmatprep.subr.bf16.mxu0 %v306
    %2386 = vmatpush1.bf16.msra.mxu0 %v305
    %2387 = vmatprep.subr.bf16.mxu0 %v312
    %2388 = vmatpush1.bf16.msra.mxu0 %v311
    %2389 = vmatprep.subr.bf16.mxu0 %v318
    %2390 = vmatpush1.bf16.msra.mxu0 %v317
    %2391 = vmatprep.subr.bf16.mxu0 %v324
    %2392 = vmatpush1.bf16.msra.mxu0 %v323
    %2393 = vmatprep.subr.bf16.mxu0 %v330
    %2394 = vmatpush1.bf16.msra.mxu0 %v329
    %2395 = vmatprep.subr.bf16.mxu0 %v336
    %2396 = vmatpush1.bf16.msra.mxu0 %v335
    %2397 = vmatprep.subr.bf16.mxu0 %v342
    %2398 = vmatpush1.bf16.msra.mxu0 %v341
    %2399 = vmatprep.subr.bf16.mxu0 0
    %2400 = vmatpush1.bf16.msra.mxu0 0
    %2401 = vmatprep.subr.bf16.mxu0 0
    %2402 = vmatpush1.bf16.msra.mxu0 0
    %2403 = vmatprep.subr.bf16.mxu0 0
    %2404 = vmatpush1.bf16.msra.mxu0 0
    %2405 = vmatprep.subr.bf16.mxu0 0
    %2406 = vmatpush1.bf16.msra.mxu0 0
    %2407 = vmatprep.subr.bf16.mxu0 0
    %2408 = vmatpush1.bf16.msra.mxu0 0
    %2409 = vmatprep.subr.bf16.mxu0 0
    %2410 = vmatpush1.bf16.msra.mxu0 0
    %2411 = vmatprep.subr.bf16.mxu0 0
    %2412 = vmatpush1.bf16.msra.mxu0 0
    %2413 = vmatprep.subr.bf16.mxu0 0
    %2414 = vmatpush1.bf16.msra.mxu0 0
    %2415 = vmatprep.mubr.bf16.mxu0 0
    %2416 = vmatmul.mubr.bf16.gmra.mrb[0].mxu0 %v2341
    %v2417 = vpop.f32.mrb[0].mxu0
    %v2418 = vadd.f32 0.0, %v2417
    %v2419 = vpop.f32.mrb[0].mxu0
    %v2420 = vadd.f32 0.0, %v2419
    %v2421 = vpop.f32.mrb[0].mxu0
    %v2422 = vpop.f32.mrb[0].mxu0
    %2423 = vdwg.mxu0
    %2424 = vmatprep.subr.bf16.mxu0 %v302
    %2425 = vmatpush1.bf16.msra.mxu0 %v301
    %2426 = vmatprep.subr.bf16.mxu0 %v308
    %2427 = vmatpush1.bf16.msra.mxu0 %v307
    %2428 = vmatprep.subr.bf16.mxu0 %v314
    %2429 = vmatpush1.bf16.msra.mxu0 %v313
    %2430 = vmatprep.subr.bf16.mxu0 %v320
    %2431 = vmatpush1.bf16.msra.mxu0 %v319
    %2432 = vmatprep.subr.bf16.mxu0 %v326
    %2433 = vmatpush1.bf16.msra.mxu0 %v325
    %2434 = vmatprep.subr.bf16.mxu0 %v332
    %2435 = vmatpush1.bf16.msra.mxu0 %v331
    %2436 = vmatprep.subr.bf16.mxu0 %v338
    %2437 = vmatpush1.bf16.msra.mxu0 %v337
    %2438 = vmatprep.subr.bf16.mxu0 %v344
    %2439 = vmatpush1.bf16.msra.mxu0 %v343
    %2440 = vmatprep.subr.bf16.mxu0 0
    %2441 = vmatpush1.bf16.msra.mxu0 0
    %2442 = vmatprep.subr.bf16.mxu0 0
    %2443 = vmatpush1.bf16.msra.mxu0 0
    %2444 = vmatprep.subr.bf16.mxu0 0
    %2445 = vmatpush1.bf16.msra.mxu0 0
    %2446 = vmatprep.subr.bf16.mxu0 0
    %2447 = vmatpush1.bf16.msra.mxu0 0
    %2448 = vmatprep.subr.bf16.mxu0 0
    %2449 = vmatpush1.bf16.msra.mxu0 0
    %2450 = vmatprep.subr.bf16.mxu0 0
    %2451 = vmatpush1.bf16.msra.mxu0 0
    %2452 = vmatprep.subr.bf16.mxu0 0
    %2453 = vmatpush1.bf16.msra.mxu0 0
    %2454 = vmatprep.subr.bf16.mxu0 0
    %2455 = vmatpush1.bf16.msra.mxu0 0
    %2456 = vmatprep.mubr.bf16.mxu0 0
    %2457 = vmatmul.mubr.bf16.gmra.mrb[0].mxu0 %v2341
    %v2458 = vpop.f32.mrb[0].mxu0
    %v2459 = vadd.f32 0.0, %v2458
    %v2460 = vpop.f32.mrb[0].mxu0
    %v2461 = vadd.f32 0.0, %v2460
    %v2462 = vpop.f32.mrb[0].mxu0
    %v2463 = vpop.f32.mrb[0].mxu0
    %2464 = vdwg.mxu0
    %v2465 = vadd.f32 %v2420, %v520
    %v2466 = vadd.f32 %v2459, %v524
    %v2467 = vadd.f32 %v2461, %v528
    %v2468 = vpack.c.bf16 %v2306, %v2306
    %2469 = vmatprep.subr.bf16.mxu0 %v832
    %2470 = vmatpush1.bf16.msra.mxu0 %v831
    %2471 = vmatprep.subr.bf16.mxu0 %v835
    %2472 = vmatpush1.bf16.msra.mxu0 %v834
    %2473 = vmatprep.subr.bf16.mxu0 %v838
    %2474 = vmatpush1.bf16.msra.mxu0 %v837
    %2475 = vmatprep.subr.bf16.mxu0 %v841
    %2476 = vmatpush1.bf16.msra.mxu0 %v840
    %2477 = vmatprep.subr.bf16.mxu0 %v844
    %2478 = vmatpush1.bf16.msra.mxu0 %v843
    %2479 = vmatprep.subr.bf16.mxu0 %v847
    %2480 = vmatpush1.bf16.msra.mxu0 %v846
    %2481 = vmatprep.subr.bf16.mxu0 %v850
    %2482 = vmatpush1.bf16.msra.mxu0 %v849
    %2483 = vmatprep.subr.bf16.mxu0 %v853
    %2484 = vmatpush1.bf16.msra.mxu0 %v852
    %2485 = vmatprep.subr.bf16.mxu0 0
    %2486 = vmatpush1.bf16.msra.mxu0 0
    %2487 = vmatprep.subr.bf16.mxu0 0
    %2488 = vmatpush1.bf16.msra.mxu0 0
    %2489 = vmatprep.subr.bf16.mxu0 0
    %2490 = vmatpush1.bf16.msra.mxu0 0
    %2491 = vmatprep.subr.bf16.mxu0 0
    %2492 = vmatpush1.bf16.msra.mxu0 0
    %2493 = vmatprep.subr.bf16.mxu0 0
    %2494 = vmatpush1.bf16.msra.mxu0 0
    %2495 = vmatprep.subr.bf16.mxu0 0
    %2496 = vmatpush1.bf16.msra.mxu0 0
    %2497 = vmatprep.subr.bf16.mxu0 0
    %2498 = vmatpush1.bf16.msra.mxu0 0
    %2499 = vmatprep.subr.bf16.mxu0 0
    %2500 = vmatpush1.bf16.msra.mxu0 0
    %2501 = vmatprep.mubr.bf16.mxu0 0
    %2502 = vmatmul.mubr.bf16.gmra.mrb[0].mxu0 %v2468
    %v2503 = vpop.f32.mrb[0].mxu0
    %v2504 = vadd.f32 0.0, %v2503
    %v2505 = vpop.f32.mrb[0].mxu0
    %v2506 = vadd.f32 0.0, %v2505
    %v2507 = vpop.f32.mrb[0].mxu0
    %v2508 = vpop.f32.mrb[0].mxu0
    %2509 = vdwg.mxu0
    %2510 = vmatprep.subr.bf16.mxu0 0
    %2511 = vmatpush1.bf16.msra.mxu0 %v833
    %2512 = vmatprep.subr.bf16.mxu0 0
    %2513 = vmatpush1.bf16.msra.mxu0 %v836
    %2514 = vmatprep.subr.bf16.mxu0 0
    %2515 = vmatpush1.bf16.msra.mxu0 %v839
    %2516 = vmatprep.subr.bf16.mxu0 0
    %2517 = vmatpush1.bf16.msra.mxu0 %v842
    %2518 = vmatprep.subr.bf16.mxu0 0
    %2519 = vmatpush1.bf16.msra.mxu0 %v845
    %2520 = vmatprep.subr.bf16.mxu0 0
    %2521 = vmatpush1.bf16.msra.mxu0 %v848
    %2522 = vmatprep.subr.bf16.mxu0 0
    %2523 = vmatpush1.bf16.msra.mxu0 %v851
    %2524 = vmatprep.subr.bf16.mxu0 0
    %2525 = vmatpush1.bf16.msra.mxu0 %v854
    %2526 = vmatprep.subr.bf16.mxu0 0
    %2527 = vmatpush1.bf16.msra.mxu0 0
    %2528 = vmatprep.subr.bf16.mxu0 0
    %2529 = vmatpush1.bf16.msra.mxu0 0
    %2530 = vmatprep.subr.bf16.mxu0 0
    %2531 = vmatpush1.bf16.msra.mxu0 0
    %2532 = vmatprep.subr.bf16.mxu0 0
    %2533 = vmatpush1.bf16.msra.mxu0 0
    %2534 = vmatprep.subr.bf16.mxu0 0
    %2535 = vmatpush1.bf16.msra.mxu0 0
    %2536 = vmatprep.subr.bf16.mxu0 0
    %2537 = vmatpush1.bf16.msra.mxu0 0
    %2538 = vmatprep.subr.bf16.mxu0 0
    %2539 = vmatpush1.bf16.msra.mxu0 0
    %2540 = vmatprep.subr.bf16.mxu0 0
    %2541 = vmatpush1.bf16.msra.mxu0 0
    %2542 = vmatprep.mubr.bf16.mxu0 0
    %2543 = vmatmul.mubr.bf16.gmra.mrb[0].mxu0 %v2468
    %v2544 = vpop.f32.mrb[0].mxu0
    %v2545 = vadd.f32 0.0, %v2544
    %v2546 = vpop.f32.mrb[0].mxu0
    %v2547 = vpop.f32.mrb[0].mxu0
    %v2548 = vpop.f32.mrb[0].mxu0
    %2549 = vdwg.mxu0
    %v2550 = vadd.f32 %v2465, %v2504
    %v2551 = vadd.f32 %v2466, %v2506
    %v2552 = vxor.u32 %v2550, 2147483648
    %v2553 = vxor.u32 %v2551, 2147483648
    %v2554 = vmul.f32 %v2552, 1.442695
    %v2555 = vpow.pop %v2554
    %v2556 = vmul.f32 %v2553, 1.442695
    %v2557 = vpow.pop %v2556
    %v2558 = vadd.f32 %v2555, 1.0
    %v2559 = vadd.f32 %v2557, 1.0
    %v2560 = vrcp.pop %v2558
    %v2561 = vmul.f32 1.0, %v2560
    %v2562 = vrcp.pop %v2559
    %v2563 = vmul.f32 1.0, %v2562
    %v2564 = vadd.f32 %v2545, %v35
    %v2565 = vmul.f32 %v2561, %v2564
    %v2566 = vadd.f32 %v2467, %v2565
    %v2567 = vtanh.pop %v2566
    %v2568 = vsub.f32 1.0, %v2563
    %v2569 = vmul.f32 %v2568, %v2567
    %v2570 = vmul.f32 %v2563, %v2306
    %v2571 = vadd.f32 %v2569, %v2570
    %v2572 = vld [vmem:[%s0 + $0x40] sm:$0xff]
    %2574 = vset.pattern.permute.xlu0 0
    %2575 = vperm.xlu0 %2574, %v2572
    %v2576 = vpop.permute.xlu0 %2575
    %v2578 = vmul.f32 %v2576, %v48
    %v2579 = vmul.f32 %v2576, %v52
    %v2580 = vmul.f32 %v2576, %v56
    %v2581 = vadd.f32 %v2578, %v67
    %v2582 = vadd.f32 %v2579, %v71
    %v2583 = vadd.f32 %v2580, %v75
    %v2584 = vadd.f32 %v2581, %v2377
    %v2585 = vadd.f32 %v2582, %v2379
    %v2586 = vxor.u32 %v2584, 2147483648
    %v2587 = vxor.u32 %v2585, 2147483648
    %v2588 = vmul.f32 %v2586, 1.442695
    %v2589 = vpow.pop %v2588
    %v2590 = vmul.f32 %v2587, 1.442695
    %v2591 = vpow.pop %v2590
    %v2592 = vadd.f32 %v2589, 1.0
    %v2593 = vadd.f32 %v2591, 1.0
    %v2594 = vrcp.pop %v2592
    %v2595 = vmul.f32 1.0, %v2594
    %v2596 = vrcp.pop %v2593
    %v2597 = vmul.f32 1.0, %v2596
    %v2598 = vadd.f32 %v2418, %v34
    %v2599 = vmul.f32 %v2595, %v2598
    %v2600 = vadd.f32 %v2583, %v2599
    %v2601 = vtanh.pop %v2600
    %v2602 = vsub.f32 1.0, %v2597
    %v2603 = vmul.f32 %v2602, %v2601
    %v2604 = vmul.f32 %v2597, %v2340
    %v2605 = vadd.f32 %v2603, %v2604
    %v2606 = vpack.c.bf16 %v2605, %v2605
    %2607 = vmatprep.subr.bf16.mxu0 %v298
    %2608 = vmatpush1.bf16.msra.mxu0 %v297
    %2609 = vmatprep.subr.bf16.mxu0 %v304
    %2610 = vmatpush1.bf16.msra.mxu0 %v303
    %2611 = vmatprep.subr.bf16.mxu0 %v310
    %2612 = vmatpush1.bf16.msra.mxu0 %v309
    %2613 = vmatprep.subr.bf16.mxu0 %v316
    %2614 = vmatpush1.bf16.msra.mxu0 %v315
    %2615 = vmatprep.subr.bf16.mxu0 %v322
    %2616 = vmatpush1.bf16.msra.mxu0 %v321
    %2617 = vmatprep.subr.bf16.mxu0 %v328
    %2618 = vmatpush1.bf16.msra.mxu0 %v327
    %2619 = vmatprep.subr.bf16.mxu0 %v334
    %2620 = vmatpush1.bf16.msra.mxu0 %v333
    %2621 = vmatprep.subr.bf16.mxu0 %v340
    %2622 = vmatpush1.bf16.msra.mxu0 %v339
    %2623 = vmatprep.subr.bf16.mxu0 0
    %2624 = vmatpush1.bf16.msra.mxu0 0
    %2625 = vmatprep.subr.bf16.mxu0 0
    %2626 = vmatpush1.bf16.msra.mxu0 0
    %2627 = vmatprep.subr.bf16.mxu0 0
    %2628 = vmatpush1.bf16.msra.mxu0 0
    %2629 = vmatprep.subr.bf16.mxu0 0
    %2630 = vmatpush1.bf16.msra.mxu0 0
    %2631 = vmatprep.subr.bf16.mxu0 0
    %2632 = vmatpush1.bf16.msra.mxu0 0
    %2633 = vmatprep.subr.bf16.mxu0 0
    %2634 = vmatpush1.bf16.msra.mxu0 0
    %2635 = vmatprep.subr.bf16.mxu0 0
    %2636 = vmatpush1.bf16.msra.mxu0 0
    %2637 = vmatprep.subr.bf16.mxu0 0
    %2638 = vmatpush1.bf16.msra.mxu0 0
    %2639 = vmatprep.mubr.bf16.mxu0 0
    %2640 = vmatmul.mubr.bf16.gmra.mrb[0].mxu0 %v2606
    %v2641 = vpop.f32.mrb[0].mxu0
    %v2642 = vadd.f32 0.0, %v2641
    %v2643 = vpop.f32.mrb[0].mxu0
    %v2644 = vadd.f32 0.0, %v2643
    %v2645 = vpop.f32.mrb[0].mxu0
    %v2646 = vpop.f32.mrb[0].mxu0
    %2647 = vdwg.mxu0
    %2648 = vmatprep.subr.bf16.mxu0 %v300
    %2649 = vmatpush1.bf16.msra.mxu0 %v299
    %2650 = vmatprep.subr.bf16.mxu0 %v306
    %2651 = vmatpush1.bf16.msra.mxu0 %v305
    %2652 = vmatprep.subr.bf16.mxu0 %v312
    %2653 = vmatpush1.bf16.msra.mxu0 %v311
    %2654 = vmatprep.subr.bf16.mxu0 %v318
    %2655 = vmatpush1.bf16.msra.mxu0 %v317
    %2656 = vmatprep.subr.bf16.mxu0 %v324
    %2657 = vmatpush1.bf16.msra.mxu0 %v323
    %2658 = vmatprep.subr.bf16.mxu0 %v330
    %2659 = vmatpush1.bf16.msra.mxu0 %v329
    %2660 = vmatprep.subr.bf16.mxu0 %v336
    %2661 = vmatpush1.bf16.msra.mxu0 %v335
    %2662 = vmatprep.subr.bf16.mxu0 %v342
    %2663 = vmatpush1.bf16.msra.mxu0 %v341
    %2664 = vmatprep.subr.bf16.mxu0 0
    %2665 = vmatpush1.bf16.msra.mxu0 0
    %2666 = vmatprep.subr.bf16.mxu0 0
    %2667 = vmatpush1.bf16.msra.mxu0 0
    %2668 = vmatprep.subr.bf16.mxu0 0
    %2669 = vmatpush1.bf16.msra.mxu0 0
    %2670 = vmatprep.subr.bf16.mxu0 0
    %2671 = vmatpush1.bf16.msra.mxu0 0
    %2672 = vmatprep.subr.bf16.mxu0 0
    %2673 = vmatpush1.bf16.msra.mxu0 0
    %2674 = vmatprep.subr.bf16.mxu0 0
    %2675 = vmatpush1.bf16.msra.mxu0 0
    %2676 = vmatprep.subr.bf16.mxu0 0
    %2677 = vmatpush1.bf16.msra.mxu0 0
    %2678 = vmatprep.subr.bf16.mxu0 0
    %2679 = vmatpush1.bf16.msra.mxu0 0
    %2680 = vmatprep.mubr.bf16.mxu0 0
    %2681 = vmatmul.mubr.bf16.gmra.mrb[0].mxu0 %v2606
    %v2682 = vpop.f32.mrb[0].mxu0
    %v2683 = vadd.f32 0.0, %v2682
    %v2684 = vpop.f32.mrb[0].mxu0
    %v2685 = vadd.f32 0.0, %v2684
    %v2686 = vpop.f32.mrb[0].mxu0
    %v2687 = vpop.f32.mrb[0].mxu0
    %2688 = vdwg.mxu0
    %2689 = vmatprep.subr.bf16.mxu0 %v302
    %2690 = vmatpush1.bf16.msra.mxu0 %v301
    %2691 = vmatprep.subr.bf16.mxu0 %v308
    %2692 = vmatpush1.bf16.msra.mxu0 %v307
    %2693 = vmatprep.subr.bf16.mxu0 %v314
    %2694 = vmatpush1.bf16.msra.mxu0 %v313
    %2695 = vmatprep.subr.bf16.mxu0 %v320
    %2696 = vmatpush1.bf16.msra.mxu0 %v319
    %2697 = vmatprep.subr.bf16.mxu0 %v326
    %2698 = vmatpush1.bf16.msra.mxu0 %v325
    %2699 = vmatprep.subr.bf16.mxu0 %v332
    %2700 = vmatpush1.bf16.msra.mxu0 %v331
    %2701 = vmatprep.subr.bf16.mxu0 %v338
    %2702 = vmatpush1.bf16.msra.mxu0 %v337
    %2703 = vmatprep.subr.bf16.mxu0 %v344
    %2704 = vmatpush1.bf16.msra.mxu0 %v343
    %2705 = vmatprep.subr.bf16.mxu0 0
    %2706 = vmatpush1.bf16.msra.mxu0 0
    %2707 = vmatprep.subr.bf16.mxu0 0
    %2708 = vmatpush1.bf16.msra.mxu0 0
    %2709 = vmatprep.subr.bf16.mxu0 0
    %2710 = vmatpush1.bf16.msra.mxu0 0
    %2711 = vmatprep.subr.bf16.mxu0 0
    %2712 = vmatpush1.bf16.msra.mxu0 0
    %2713 = vmatprep.subr.bf16.mxu0 0
    %2714 = vmatpush1.bf16.msra.mxu0 0
    %2715 = vmatprep.subr.bf16.mxu0 0
    %2716 = vmatpush1.bf16.msra.mxu0 0
    %2717 = vmatprep.subr.bf16.mxu0 0
    %2718 = vmatpush1.bf16.msra.mxu0 0
    %2719 = vmatprep.subr.bf16.mxu0 0
    %2720 = vmatpush1.bf16.msra.mxu0 0
    %2721 = vmatprep.mubr.bf16.mxu0 0
    %2722 = vmatmul.mubr.bf16.gmra.mrb[0].mxu0 %v2606
    %v2723 = vpop.f32.mrb[0].mxu0
    %v2724 = vadd.f32 0.0, %v2723
    %v2725 = vpop.f32.mrb[0].mxu0
    %v2726 = vadd.f32 0.0, %v2725
    %v2727 = vpop.f32.mrb[0].mxu0
    %v2728 = vpop.f32.mrb[0].mxu0
    %2729 = vdwg.mxu0
    %v2730 = vadd.f32 %v2685, %v520
    %v2731 = vadd.f32 %v2724, %v524
    %v2732 = vadd.f32 %v2726, %v528
    %v2733 = vpack.c.bf16 %v2571, %v2571
    %2734 = vmatprep.subr.bf16.mxu0 %v832
    %2735 = vmatpush1.bf16.msra.mxu0 %v831
    %2736 = vmatprep.subr.bf16.mxu0 %v835
    %2737 = vmatpush1.bf16.msra.mxu0 %v834
    %2738 = vmatprep.subr.bf16.mxu0 %v838
    %2739 = vmatpush1.bf16.msra.mxu0 %v837
    %2740 = vmatprep.subr.bf16.mxu0 %v841
    %2741 = vmatpush1.bf16.msra.mxu0 %v840
    %2742 = vmatprep.subr.bf16.mxu0 %v844
    %2743 = vmatpush1.bf16.msra.mxu0 %v843
    %2744 = vmatprep.subr.bf16.mxu0 %v847
    %2745 = vmatpush1.bf16.msra.mxu0 %v846
    %2746 = vmatprep.subr.bf16.mxu0 %v850
    %2747 = vmatpush1.bf16.msra.mxu0 %v849
    %2748 = vmatprep.subr.bf16.mxu0 %v853
    %2749 = vmatpush1.bf16.msra.mxu0 %v852
    %2750 = vmatprep.subr.bf16.mxu0 0
    %2751 = vmatpush1.bf16.msra.mxu0 0
    %2752 = vmatprep.subr.bf16.mxu0 0
    %2753 = vmatpush1.bf16.msra.mxu0 0
    %2754 = vmatprep.subr.bf16.mxu0 0
    %2755 = vmatpush1.bf16.msra.mxu0 0
    %2756 = vmatprep.subr.bf16.mxu0 0
    %2757 = vmatpush1.bf16.msra.mxu0 0
    %2758 = vmatprep.subr.bf16.mxu0 0
    %2759 = vmatpush1.bf16.msra.mxu0 0
    %2760 = vmatprep.subr.bf16.mxu0 0
    %2761 = vmatpush1.bf16.msra.mxu0 0
    %2762 = vmatprep.subr.bf16.mxu0 0
    %2763 = vmatpush1.bf16.msra.mxu0 0
    %2764 = vmatprep.subr.bf16.mxu0 0
    %2765 = vmatpush1.bf16.msra.mxu0 0
    %2766 = vmatprep.mubr.bf16.mxu0 0
    %2767 = vmatmul.mubr.bf16.gmra.mrb[0].mxu0 %v2733
    %v2768 = vpop.f32.mrb[0].mxu0
    %v2769 = vadd.f32 0.0, %v2768
    %v2770 = vpop.f32.mrb[0].mxu0
    %v2771 = vadd.f32 0.0, %v2770
    %v2772 = vpop.f32.mrb[0].mxu0
    %v2773 = vpop.f32.mrb[0].mxu0
    %2774 = vdwg.mxu0
    %2775 = vmatprep.subr.bf16.mxu0 0
    %2776 = vmatpush1.bf16.msra.mxu0 %v833
    %2777 = vmatprep.subr.bf16.mxu0 0
    %2778 = vmatpush1.bf16.msra.mxu0 %v836
    %2779 = vmatprep.subr.bf16.mxu0 0
    %2780 = vmatpush1.bf16.msra.mxu0 %v839
    %2781 = vmatprep.subr.bf16.mxu0 0
    %2782 = vmatpush1.bf16.msra.mxu0 %v842
    %2783 = vmatprep.subr.bf16.mxu0 0
    %2784 = vmatpush1.bf16.msra.mxu0 %v845
    %2785 = vmatprep.subr.bf16.mxu0 0
    %2786 = vmatpush1.bf16.msra.mxu0 %v848
    %2787 = vmatprep.subr.bf16.mxu0 0
    %2788 = vmatpush1.bf16.msra.mxu0 %v851
    %2789 = vmatprep.subr.bf16.mxu0 0
    %2790 = vmatpush1.bf16.msra.mxu0 %v854
    %2791 = vmatprep.subr.bf16.mxu0 0
    %2792 = vmatpush1.bf16.msra.mxu0 0
    %2793 = vmatprep.subr.bf16.mxu0 0
    %2794 = vmatpush1.bf16.msra.mxu0 0
    %2795 = vmatprep.subr.bf16.mxu0 0
    %2796 = vmatpush1.bf16.msra.mxu0 0
    %2797 = vmatprep.subr.bf16.mxu0 0
    %2798 = vmatpush1.bf16.msra.mxu0 0
    %2799 = vmatprep.subr.bf16.mxu0 0
    %2800 = vmatpush1.bf16.msra.mxu0 0
    %2801 = vmatprep.subr.bf16.mxu0 0
    %2802 = vmatpush1.bf16.msra.mxu0 0
    %2803 = vmatprep.subr.bf16.mxu0 0
    %2804 = vmatpush1.bf16.msra.mxu0 0
    %2805 = vmatprep.subr.bf16.mxu0 0
    %2806 = vmatpush1.bf16.msra.mxu0 0
    %2807 = vmatprep.mubr.bf16.mxu0 0
    %2808 = vmatmul.mubr.bf16.gmra.mrb[0].mxu0 %v2733
    %v2809 = vpop.f32.mrb[0].mxu0
    %v2810 = vadd.f32 0.0, %v2809
    %v2811 = vpop.f32.mrb[0].mxu0
    %v2812 = vpop.f32.mrb[0].mxu0
    %v2813 = vpop.f32.mrb[0].mxu0
    %2814 = vdwg.mxu0
    %v2815 = vadd.f32 %v2730, %v2769
    %v2816 = vadd.f32 %v2731, %v2771
    %v2817 = vxor.u32 %v2815, 2147483648
    %v2818 = vxor.u32 %v2816, 2147483648
    %v2819 = vmul.f32 %v2817, 1.442695
    %v2820 = vpow.pop %v2819
    %v2821 = vmul.f32 %v2818, 1.442695
    %v2822 = vpow.pop %v2821
    %v2823 = vadd.f32 %v2820, 1.0
    %v2824 = vadd.f32 %v2822, 1.0
    %v2825 = vrcp.pop %v2823
    %v2826 = vmul.f32 1.0, %v2825
    %v2827 = vrcp.pop %v2824
    %v2828 = vmul.f32 1.0, %v2827
    %v2829 = vadd.f32 %v2810, %v35
    %v2830 = vmul.f32 %v2826, %v2829
    %v2831 = vadd.f32 %v2732, %v2830
    %v2832 = vtanh.pop %v2831
    %v2833 = vsub.f32 1.0, %v2828
    %v2834 = vmul.f32 %v2833, %v2832
    %v2835 = vmul.f32 %v2828, %v2571
    %v2836 = vadd.f32 %v2834, %v2835
    %v2837 = vld [vmem:[%s0 + $0x48] sm:$0xff]
    %2839 = vset.pattern.permute.xlu0 0
    %2840 = vperm.xlu0 %2839, %v2837
    %v2841 = vpop.permute.xlu0 %2840
    %v2843 = vmul.f32 %v2841, %v48
    %v2844 = vmul.f32 %v2841, %v52
    %v2845 = vmul.f32 %v2841, %v56
    %v2846 = vadd.f32 %v2843, %v67
    %v2847 = vadd.f32 %v2844, %v71
    %v2848 = vadd.f32 %v2845, %v75
    %v2849 = vadd.f32 %v2846, %v2642
    %v2850 = vadd.f32 %v2847, %v2644
    %v2851 = vxor.u32 %v2849, 2147483648
    %v2852 = vxor.u32 %v2850, 2147483648
    %v2853 = vmul.f32 %v2851, 1.442695
    %v2854 = vpow.pop %v2853
    %v2855 = vmul.f32 %v2852, 1.442695
    %v2856 = vpow.pop %v2855
    %v2857 = vadd.f32 %v2854, 1.0
    %v2858 = vadd.f32 %v2856, 1.0
    %v2859 = vrcp.pop %v2857
    %v2860 = vmul.f32 1.0, %v2859
    %v2861 = vrcp.pop %v2858
    %v2862 = vmul.f32 1.0, %v2861
    %v2863 = vadd.f32 %v2683, %v34
    %v2864 = vmul.f32 %v2860, %v2863
    %v2865 = vadd.f32 %v2848, %v2864
    %v2866 = vtanh.pop %v2865
    %v2867 = vsub.f32 1.0, %v2862
    %v2868 = vmul.f32 %v2867, %v2866
    %v2869 = vmul.f32 %v2862, %v2605
    %v2870 = vadd.f32 %v2868, %v2869
    %v2871 = vpack.c.bf16 %v2870, %v2870
    %v2872 = vld [vmem:[#allocation2 + $0xc] sm:$0xff]
    %v2873 = vld [vmem:[#allocation2 + $0x14] sm:$0xf]
    %v2874 = vld [vmem:[#allocation2 + $0x30] sm:$0xff]
    %v2875 = vld [vmem:[#allocation2 + $0x38] sm:$0xf]
    %v2876 = vld [vmem:[#allocation2 + $0x54] sm:$0xff]
    %v2877 = vld [vmem:[#allocation2 + $0x5c] sm:$0xf]
    %v2878 = vld [vmem:[#allocation2 + $0x78] sm:$0xff]
    %v2879 = vld [vmem:[#allocation2 + $0x80] sm:$0xf]
    %v2880 = vld [vmem:[#allocation2 + $0x9c] sm:$0xff]
    %v2881 = vld [vmem:[#allocation2 + $0xa4] sm:$0xf]
    %v2882 = vld [vmem:[#allocation2 + $0xc0] sm:$0xff]
    %v2883 = vld [vmem:[#allocation2 + $0xc8] sm:$0xf]
    %v2884 = vld [vmem:[#allocation2 + $0xe4] sm:$0xff]
    %v2885 = vld [vmem:[#allocation2 + $0xec] sm:$0xf]
    %v2886 = vld [vmem:[#allocation2 + $0x108] sm:$0xff]
    %v2887 = vld [vmem:[#allocation2 + $0x110] sm:$0xf]
    %v2888 = vld [vmem:[#allocation2 + $0x12c] sm:$0xff]
    %v2889 = vld [vmem:[#allocation2 + $0x134] sm:$0xf]
    %v2890 = vld [vmem:[#allocation2 + $0x150] sm:$0xff]
    %v2891 = vld [vmem:[#allocation2 + $0x158] sm:$0xf]
    %v2892 = vld [vmem:[#allocation2 + $0x174] sm:$0xff]
    %v2893 = vld [vmem:[#allocation2 + $0x17c] sm:$0xf]
    %v2894 = vld [vmem:[#allocation2 + $0x198] sm:$0xff]
    %v2895 = vld [vmem:[#allocation2 + $0x1a0] sm:$0xf]
    %v2896 = vld [vmem:[#allocation2 + $0x1bc] sm:$0xff]
    %v2897 = vld [vmem:[#allocation2 + $0x1c4] sm:$0xf]
    %v2898 = vld [vmem:[#allocation2 + $0x1e0] sm:$0xff]
    %v2899 = vld [vmem:[#allocation2 + $0x1e8] sm:$0xf]
    %v2900 = vld [vmem:[#allocation2 + $0x204] sm:$0xff]
    %v2901 = vld [vmem:[#allocation2 + $0x20c] sm:$0xf]
    %v2902 = vld [vmem:[#allocation2 + $0x228] sm:$0xff]
    %v2903 = vld [vmem:[#allocation2 + $0x230] sm:$0xf]
    %v2936 = vunpack.c.l.b16 %v2872
    %v2937 = vunpack.c.h.b16 %v2872
    %v2938 = vunpack.c.l.b16 %v2873
    %v2939 = vunpack.c.l.b16 %v2874
    %v2940 = vunpack.c.h.b16 %v2874
    %v2941 = vunpack.c.l.b16 %v2875
    %v2942 = vunpack.c.l.b16 %v2876
    %v2943 = vunpack.c.h.b16 %v2876
    %v2944 = vunpack.c.l.b16 %v2877
    %v2945 = vunpack.c.l.b16 %v2878
    %v2946 = vunpack.c.h.b16 %v2878
    %v2947 = vunpack.c.l.b16 %v2879
    %v2948 = vunpack.c.l.b16 %v2880
    %v2949 = vunpack.c.h.b16 %v2880
    %v2950 = vunpack.c.l.b16 %v2881
    %v2951 = vunpack.c.l.b16 %v2882
    %v2952 = vunpack.c.h.b16 %v2882
    %v2953 = vunpack.c.l.b16 %v2883
    %v2954 = vunpack.c.l.b16 %v2884
    %v2955 = vunpack.c.h.b16 %v2884
    %v2956 = vunpack.c.l.b16 %v2885
    %v2957 = vunpack.c.l.b16 %v2886
    %v2958 = vunpack.c.h.b16 %v2886
    %v2959 = vunpack.c.l.b16 %v2887
    %v2960 = vunpack.c.l.b16 %v2888
    %v2961 = vunpack.c.h.b16 %v2888
    %v2962 = vunpack.c.l.b16 %v2889
    %v2963 = vunpack.c.l.b16 %v2890
    %v2964 = vunpack.c.h.b16 %v2890
    %v2965 = vunpack.c.l.b16 %v2891
    %v2966 = vunpack.c.l.b16 %v2892
    %v2967 = vunpack.c.h.b16 %v2892
    %v2968 = vunpack.c.l.b16 %v2893
    %v2969 = vunpack.c.l.b16 %v2894
    %v2970 = vunpack.c.h.b16 %v2894
    %v2971 = vunpack.c.l.b16 %v2895
    %v2972 = vunpack.c.l.b16 %v2896
    %v2973 = vunpack.c.h.b16 %v2896
    %v2974 = vunpack.c.l.b16 %v2897
    %v2975 = vunpack.c.l.b16 %v2898
    %v2976 = vunpack.c.h.b16 %v2898
    %v2977 = vunpack.c.l.b16 %v2899
    %v2978 = vunpack.c.l.b16 %v2900
    %v2979 = vunpack.c.h.b16 %v2900
    %v2980 = vunpack.c.l.b16 %v2901
    %v2981 = vunpack.c.l.b16 %v2902
    %v2982 = vunpack.c.h.b16 %v2902
    %v2983 = vunpack.c.l.b16 %v2903
    %v2984 = vpack.c.b16 %v2939, %v2936
    %v2985 = vpack.c.b16 %v2940, %v2937
    %v2986 = vpack.c.b16 %v2941, %v2938
    %v2987 = vpack.c.b16 %v2945, %v2942
    %v2988 = vpack.c.b16 %v2946, %v2943
    %v2989 = vpack.c.b16 %v2947, %v2944
    %v2990 = vpack.c.b16 %v2951, %v2948
    %v2991 = vpack.c.b16 %v2952, %v2949
    %v2992 = vpack.c.b16 %v2953, %v2950
    %v2993 = vpack.c.b16 %v2957, %v2954
    %v2994 = vpack.c.b16 %v2958, %v2955
    %v2995 = vpack.c.b16 %v2959, %v2956
    %v2996 = vpack.c.b16 %v2963, %v2960
    %v2997 = vpack.c.b16 %v2964, %v2961
    %v2998 = vpack.c.b16 %v2965, %v2962
    %v2999 = vpack.c.b16 %v2969, %v2966
    %v3000 = vpack.c.b16 %v2970, %v2967
    %v3001 = vpack.c.b16 %v2971, %v2968
    %v3002 = vpack.c.b16 %v2975, %v2972
    %v3003 = vpack.c.b16 %v2976, %v2973
    %v3004 = vpack.c.b16 %v2977, %v2974
    %v3005 = vpack.c.b16 %v2981, %v2978
    %v3006 = vpack.c.b16 %v2982, %v2979
    %v3007 = vpack.c.b16 %v2983, %v2980
    %3032 = vmatprep.subr.bf16.mxu0 %v2985
    %3033 = vmatpush1.bf16.msra.mxu0 %v2984
    %3034 = vmatprep.subr.bf16.mxu0 %v2988
    %3035 = vmatpush1.bf16.msra.mxu0 %v2987
    %3036 = vmatprep.subr.bf16.mxu0 %v2991
    %3037 = vmatpush1.bf16.msra.mxu0 %v2990
    %3038 = vmatprep.subr.bf16.mxu0 %v2994
    %3039 = vmatpush1.bf16.msra.mxu0 %v2993
    %3040 = vmatprep.subr.bf16.mxu0 %v2997
    %3041 = vmatpush1.bf16.msra.mxu0 %v2996
    %3042 = vmatprep.subr.bf16.mxu0 %v3000
    %3043 = vmatpush1.bf16.msra.mxu0 %v2999
    %3044 = vmatprep.subr.bf16.mxu0 %v3003
    %3045 = vmatpush1.bf16.msra.mxu0 %v3002
    %3046 = vmatprep.subr.bf16.mxu0 %v3006
    %3047 = vmatpush1.bf16.msra.mxu0 %v3005
    %3048 = vmatprep.subr.bf16.mxu0 0
    %3049 = vmatpush1.bf16.msra.mxu0 0
    %3050 = vmatprep.subr.bf16.mxu0 0
    %3051 = vmatpush1.bf16.msra.mxu0 0
    %3052 = vmatprep.subr.bf16.mxu0 0
    %3053 = vmatpush1.bf16.msra.mxu0 0
    %3054 = vmatprep.subr.bf16.mxu0 0
    %3055 = vmatpush1.bf16.msra.mxu0 0
    %3056 = vmatprep.subr.bf16.mxu0 0
    %3057 = vmatpush1.bf16.msra.mxu0 0
    %3058 = vmatprep.subr.bf16.mxu0 0
    %3059 = vmatpush1.bf16.msra.mxu0 0
    %3060 = vmatprep.subr.bf16.mxu0 0
    %3061 = vmatpush1.bf16.msra.mxu0 0
    %3062 = vmatprep.subr.bf16.mxu0 0
    %3063 = vmatpush1.bf16.msra.mxu0 0
    %3064 = vmatprep.mubr.bf16.mxu0 0
    %3065 = vmatmul.mubr.bf16.gmra.mrb[0].mxu0 %v2871
    %v3066 = vpop.f32.mrb[0].mxu0
    %v3067 = vadd.f32 %v520, %v3066
    %v3068 = vpop.f32.mrb[0].mxu0
    %v3069 = vadd.f32 %v524, %v3068
    %v3070 = vpop.f32.mrb[0].mxu0
    %v3071 = vpop.f32.mrb[0].mxu0
    %3072 = vdwg.mxu0
    %3073 = vmatprep.subr.bf16.mxu0 0
    %3074 = vmatpush1.bf16.msra.mxu0 %v2986
    %3075 = vmatprep.subr.bf16.mxu0 0
    %3076 = vmatpush1.bf16.msra.mxu0 %v2989
    %3077 = vmatprep.subr.bf16.mxu0 0
    %3078 = vmatpush1.bf16.msra.mxu0 %v2992
    %3079 = vmatprep.subr.bf16.mxu0 0
    %3080 = vmatpush1.bf16.msra.mxu0 %v2995
    %3081 = vmatprep.subr.bf16.mxu0 0
    %3082 = vmatpush1.bf16.msra.mxu0 %v2998
    %3083 = vmatprep.subr.bf16.mxu0 0
    %3084 = vmatpush1.bf16.msra.mxu0 %v3001
    %3085 = vmatprep.subr.bf16.mxu0 0
    %3086 = vmatpush1.bf16.msra.mxu0 %v3004
    %3087 = vmatprep.subr.bf16.mxu0 0
    %3088 = vmatpush1.bf16.msra.mxu0 %v3007
    %3089 = vmatprep.subr.bf16.mxu0 0
    %3090 = vmatpush1.bf16.msra.mxu0 0
    %3091 = vmatprep.subr.bf16.mxu0 0
    %3092 = vmatpush1.bf16.msra.mxu0 0
    %3093 = vmatprep.subr.bf16.mxu0 0
    %3094 = vmatpush1.bf16.msra.mxu0 0
    %3095 = vmatprep.subr.bf16.mxu0 0
    %3096 = vmatpush1.bf16.msra.mxu0 0
    %3097 = vmatprep.subr.bf16.mxu0 0
    %3098 = vmatpush1.bf16.msra.mxu0 0
    %3099 = vmatprep.subr.bf16.mxu0 0
    %3100 = vmatpush1.bf16.msra.mxu0 0
    %3101 = vmatprep.subr.bf16.mxu0 0
    %3102 = vmatpush1.bf16.msra.mxu0 0
    %3103 = vmatprep.subr.bf16.mxu0 0
    %3104 = vmatpush1.bf16.msra.mxu0 0
    %3105 = vmatprep.mubr.bf16.mxu0 0
    %3106 = vmatmul.mubr.bf16.gmra.mrb[0].mxu0 %v2871
    %v3107 = vpop.f32.mrb[0].mxu0
    %v3108 = vadd.f32 %v528, %v3107
    %v3109 = vpop.f32.mrb[0].mxu0
    %v3110 = vpop.f32.mrb[0].mxu0
    %v3111 = vpop.f32.mrb[0].mxu0
    %3112 = vdwg.mxu0
    %v3113 = vpack.c.bf16 %v2836, %v2836
    %3114 = vmatprep.subr.bf16.mxu0 %v832
    %3115 = vmatpush1.bf16.msra.mxu0 %v831
    %3116 = vmatprep.subr.bf16.mxu0 %v835
    %3117 = vmatpush1.bf16.msra.mxu0 %v834
    %3118 = vmatprep.subr.bf16.mxu0 %v838
    %3119 = vmatpush1.bf16.msra.mxu0 %v837
    %3120 = vmatprep.subr.bf16.mxu0 %v841
    %3121 = vmatpush1.bf16.msra.mxu0 %v840
    %3122 = vmatprep.subr.bf16.mxu0 %v844
    %3123 = vmatpush1.bf16.msra.mxu0 %v843
    %3124 = vmatprep.subr.bf16.mxu0 %v847
    %3125 = vmatpush1.bf16.msra.mxu0 %v846
    %3126 = vmatprep.subr.bf16.mxu0 %v850
    %3127 = vmatpush1.bf16.msra.mxu0 %v849
    %3128 = vmatprep.subr.bf16.mxu0 %v853
    %3129 = vmatpush1.bf16.msra.mxu0 %v852
    %3130 = vmatprep.subr.bf16.mxu0 0
    %3131 = vmatpush1.bf16.msra.mxu0 0
    %3132 = vmatprep.subr.bf16.mxu0 0
    %3133 = vmatpush1.bf16.msra.mxu0 0
    %3134 = vmatprep.subr.bf16.mxu0 0
    %3135 = vmatpush1.bf16.msra.mxu0 0
    %3136 = vmatprep.subr.bf16.mxu0 0
    %3137 = vmatpush1.bf16.msra.mxu0 0
    %3138 = vmatprep.subr.bf16.mxu0 0
    %3139 = vmatpush1.bf16.msra.mxu0 0
    %3140 = vmatprep.subr.bf16.mxu0 0
    %3141 = vmatpush1.bf16.msra.mxu0 0
    %3142 = vmatprep.subr.bf16.mxu0 0
    %3143 = vmatpush1.bf16.msra.mxu0 0
    %3144 = vmatprep.subr.bf16.mxu0 0
    %3145 = vmatpush1.bf16.msra.mxu0 0
    %3146 = vmatprep.mubr.bf16.mxu0 0
    %3147 = vmatmul.mubr.bf16.gmra.mrb[0].mxu0 %v3113
    %v3148 = vpop.f32.mrb[0].mxu0
    %v3149 = vadd.f32 0.0, %v3148
    %v3150 = vpop.f32.mrb[0].mxu0
    %v3151 = vadd.f32 0.0, %v3150
    %v3152 = vpop.f32.mrb[0].mxu0
    %v3153 = vpop.f32.mrb[0].mxu0
    %3154 = vdwg.mxu0
    %3155 = vmatprep.subr.bf16.mxu0 0
    %3156 = vmatpush1.bf16.msra.mxu0 %v833
    %3157 = vmatprep.subr.bf16.mxu0 0
    %3158 = vmatpush1.bf16.msra.mxu0 %v836
    %3159 = vmatprep.subr.bf16.mxu0 0
    %3160 = vmatpush1.bf16.msra.mxu0 %v839
    %3161 = vmatprep.subr.bf16.mxu0 0
    %3162 = vmatpush1.bf16.msra.mxu0 %v842
    %3163 = vmatprep.subr.bf16.mxu0 0
    %3164 = vmatpush1.bf16.msra.mxu0 %v845
    %3165 = vmatprep.subr.bf16.mxu0 0
    %3166 = vmatpush1.bf16.msra.mxu0 %v848
    %3167 = vmatprep.subr.bf16.mxu0 0
    %3168 = vmatpush1.bf16.msra.mxu0 %v851
    %3169 = vmatprep.subr.bf16.mxu0 0
    %3170 = vmatpush1.bf16.msra.mxu0 %v854
    %3171 = vmatprep.subr.bf16.mxu0 0
    %3172 = vmatpush1.bf16.msra.mxu0 0
    %3173 = vmatprep.subr.bf16.mxu0 0
    %3174 = vmatpush1.bf16.msra.mxu0 0
    %3175 = vmatprep.subr.bf16.mxu0 0
    %3176 = vmatpush1.bf16.msra.mxu0 0
    %3177 = vmatprep.subr.bf16.mxu0 0
    %3178 = vmatpush1.bf16.msra.mxu0 0
    %3179 = vmatprep.subr.bf16.mxu0 0
    %3180 = vmatpush1.bf16.msra.mxu0 0
    %3181 = vmatprep.subr.bf16.mxu0 0
    %3182 = vmatpush1.bf16.msra.mxu0 0
    %3183 = vmatprep.subr.bf16.mxu0 0
    %3184 = vmatpush1.bf16.msra.mxu0 0
    %3185 = vmatprep.subr.bf16.mxu0 0
    %3186 = vmatpush1.bf16.msra.mxu0 0
    %3187 = vmatprep.mubr.bf16.mxu0 0
    %3188 = vmatmul.mubr.bf16.gmra.mrb[0].mxu0 %v3113
    %v3189 = vpop.f32.mrb[0].mxu0
    %v3190 = vadd.f32 0.0, %v3189
    %v3191 = vpop.f32.mrb[0].mxu0
    %v3192 = vpop.f32.mrb[0].mxu0
    %v3193 = vpop.f32.mrb[0].mxu0
    %3194 = vdwg.mxu0
    %v3195 = vadd.f32 %v3067, %v3149
    %v3196 = vadd.f32 %v3069, %v3151
    %v3197 = vxor.u32 %v3195, 2147483648
    %v3198 = vxor.u32 %v3196, 2147483648
    %v3199 = vmul.f32 %v3197, 1.442695
    %v3200 = vpow.pop %v3199
    %v3201 = vmul.f32 %v3198, 1.442695
    %v3202 = vpow.pop %v3201
    %v3203 = vadd.f32 %v3200, 1.0
    %v3204 = vadd.f32 %v3202, 1.0
    %v3205 = vrcp.pop %v3203
    %v3206 = vmul.f32 1.0, %v3205
    %v3207 = vrcp.pop %v3204
    %v3208 = vmul.f32 1.0, %v3207
    %v3209 = vadd.f32 %v3190, %v35
    %v3210 = vmul.f32 %v3206, %v3209
    %v3211 = vadd.f32 %v3108, %v3210
    %v3212 = vtanh.pop %v3211
    %v3213 = vsub.f32 1.0, %v3208
    %v3214 = vmul.f32 %v3213, %v3212
    %v3215 = vmul.f32 %v3208, %v2836
    %v3216 = vadd.f32 %v3214, %v3215
    %v3217 = vmul.f32 %v3216, %v36
    %3218 = vadd.xlane.f32.xlu0 %v3217
    %v3219 = vpop.xlane.xlu0 %3218
    %v3220 = vadd.f32 %v3219, %v37
    %vm3221 = vcmask 7168
    %3222 = vst.msk [vmem:[%s3] sm:$0xff] %vm3221, %v3220
    // Predicated region
    $region18: #{my_rnn_forward.1} parent=1 // pred_check
      _
    $region19: #{my_rnn_forward.1} parent=1 // pred_check_branch
      %3224 = sbr.rel (0) target = $region21
    $region20: #{my_rnn_forward.1} parent=1 // pred_region
      _
    $region21: #{my_rnn_forward.1} parent=1 // pred_fallthru
      _
    // Predicated region
    $region22: #{my_rnn_forward.1} parent=1 // pred_check
      _
    $region23: #{my_rnn_forward.1} parent=1 // pred_check_branch
      %3226 = sbr.rel (0) target = $region25
    $region24: #{my_rnn_forward.1} parent=1 // pred_region
      _
    $region25: #{my_rnn_forward.1} parent=1 // pred_fallthru
      _
    %3227 = vsyncpa [#allocation3], 1

</llo_original>
